<compile_context>
chip_gen: v7x
topology: tpu7x:2x2x1
jax: 0.10.0
libtpu: 0.0.40
codegen_flags: <defaults>
</compile_context>

<pallas_src>
import numpy as np
import jax
import jax.numpy as jnp
from jax.experimental import pallas as pl
from jax.experimental.pallas import tpu as pltpu


_PARAM_ORDER = [
    "w1", "b1", "bn1_s", "bn1_b",
    "res_w", "res_b", "res_bn_s", "res_bn_b",
    "w2", "b2", "bn2_s", "bn2_b",
    "w_se1", "b_se1", "w_se2", "b_se2",
]


def _make_kernel(Bt, L, C, Cs, scale, k, has_shortcut):
    pad = (k - 1) // 2
    M = Bt * L

    def kernel(*refs):
        idx = 0
        x_ref = refs[idx]; idx += 1
        w1_ref, b1_ref, bn1s_ref, bn1b_ref = refs[idx:idx + 4]; idx += 4
        rw_ref, rb_ref, rbns_ref, rbnb_ref = refs[idx:idx + 4]; idx += 4
        w2_ref, b2_ref, bn2s_ref, bn2b_ref = refs[idx:idx + 4]; idx += 4
        se1w_ref, se1b_ref, se2w_ref, se2b_ref = refs[idx:idx + 4]; idx += 4
        if has_shortcut:
            scw_ref, scb_ref = refs[idx:idx + 2]; idx += 2
        out_ref = refs[idx]

        # Whole (Bt*L, Cin) block as one flat M axis: every matmul in this body
        # runs once per grid step at M = Bt*L.
        x = x_ref[...]                                           # bf16 (M, Cin)

        # Tap shifts + (M, 1) edge masks keyed to the within-sequence time
        # index (built once; broadcast at the use site).  They also zero the
        # rows that would bleed across sequence boundaries under the flattened
        # roll (|shift| <= pad < L).
        tap_shift, tap_mask = [], []
        if k > 1:
            t_idx = jax.lax.broadcasted_iota(jnp.int32, (M, 1), 0)
            t_seq = t_idx if Bt == 1 else t_idx % L
        for kk in range(k):
            s = kk - pad
            tap_shift.append((-s) % M)
            if s > 0:
                tap_mask.append(t_seq < (L - s))
            elif s < 0:
                tap_mask.append(t_seq >= (-s))
            else:
                tap_mask.append(None)

        def tdnn1_chunk(ci):
            # Per-chunk 1x1 conv -> ReLU -> BN.  w1/b1/bn1 are pre-split per
            # chunk in the wrapper, so this is a clean leading-axis index (no
            # sub-128 lane slicing of a live (M, C) f32 value).
            h = jnp.dot(x, w1_ref[ci], preferred_element_type=jnp.float32)
            h = h + b1_ref[ci]
            return jnp.maximum(h, 0.0) * bn1s_ref[ci] + bn1b_ref[ci]  # f32 (M, Cs)

        # ---- Res2Net chain with streaming tdnn2 accumulation ----
        # Chunk 0 passes through; every produced chunk is immediately
        # contracted against its slice of w2 (no lane-axis concatenate of
        # sub-128 chunks; tdnn2 MXU work overlaps the serial chain).
        y0 = tdnn1_chunk(0)
        h2 = jnp.dot(y0.astype(jnp.bfloat16), w2_ref[0],
                     preferred_element_type=jnp.float32)          # f32 (M, C)

        y_prev = None
        for ci in range(1, scale):
            h_i = tdnn1_chunk(ci)
            inp = h_i if ci == 1 else h_i + y_prev                # f32 (M, Cs)

            # im2col: k rolled + edge-masked copies of the chunk input,
            # lane-concatenated to (M, k*Cs) and contracted once against the
            # tap-stacked weight (K = k*Cs) -> one wide MXU matmul per chunk.
            cols = []
            for kk in range(k):
                if tap_shift[kk] == 0:
                    z = inp
                else:
                    z = pltpu.roll(inp, tap_shift[kk], axis=0)
                    z = jnp.where(tap_mask[kk], z, 0.0)
                cols.append(z.astype(jnp.bfloat16))
            im2col = cols[0] if k == 1 else jnp.concatenate(cols, axis=1)

            acc = jnp.dot(im2col, rw_ref[ci - 1],
                          preferred_element_type=jnp.float32)
            acc = acc + rb_ref[ci - 1]
            y_i = jnp.maximum(acc, 0.0) * rbns_ref[ci - 1] + rbnb_ref[ci - 1]

            h2 = h2 + jnp.dot(y_i.astype(jnp.bfloat16), w2_ref[ci],
                              preferred_element_type=jnp.float32)
            y_prev = y_i

        # ---- tdnn2 epilogue: bias -> ReLU -> BatchNorm (inference) ----
        h2 = jnp.maximum(h2 + b2_ref[...], 0.0) * bn2s_ref[...] + bn2b_ref[...]

        # ---- SE block (lengths=None -> plain mean over time), batched over Bt ----
        h2_3 = h2.reshape(Bt, L, C)
        s = jnp.mean(h2_3, axis=1)                                # (Bt, C) f32
        s = jnp.dot(s.astype(jnp.bfloat16), se1w_ref[...],
                    preferred_element_type=jnp.float32) + se1b_ref[...]
        s = jnp.maximum(s, 0.0)
        s = jnp.dot(s.astype(jnp.bfloat16), se2w_ref[...],
                    preferred_element_type=jnp.float32) + se2b_ref[...]
        gate = jax.nn.sigmoid(s)                                  # (Bt, C) f32
        out = (h2_3 * gate[:, None, :]).reshape(M, C)

        # ---- residual / shortcut in the epilogue (x still resident) ----
        if has_shortcut:
            residual = jnp.dot(x, scw_ref[...],
                               preferred_element_type=jnp.float32) + scb_ref[...]
        else:
            residual = x.astype(jnp.float32)
        out_ref[...] = (out + residual).astype(out_ref.dtype)

    return kernel


def _activation_vmem_bytes(Bt, L, Cin, C, out_bytes):
    m = Bt * L
    b = m * Cin * 2 * 2            # bf16 input block, double-buffered
    b += m * C * out_bytes * 2     # output block, double-buffered
    b += 5 * m * C * 4             # live f32 intermediates (h2, gated out, residual) + slack
    return b


def _select_batch_tile(B, L, Cin, C, out_bytes, act_budget_bytes=24 * 2 ** 20):
    """Largest divisor of B whose per-step activation footprint fits the budget,
    keeping >= 2 grid steps when possible (v7x: 2 TensorCores share the grid)."""
    best = 1
    for bt in range(1, B + 1):
        if B % bt:
            continue
        if B >= 2 and B // bt < 2:
            continue
        if _activation_vmem_bytes(bt, L, Cin, C, out_bytes) <= act_budget_bytes:
            best = bt
    return best


def seres2net_forward_blc(x_blc, params, cfg, batch_tile=None, out_dtype=jnp.bfloat16):
    """x_blc: (B, L, Cin) activations (cast to bf16 internally)."""
    C, scale, k = cfg["C"], cfg["scale"], cfg["k"]
    has_shortcut = cfg["has_shortcut"]
    assert k % 2 == 1, "even kernel sizes need asymmetric padding (unsupported)"
    assert scale >= 2 and C % scale == 0
    Cs = C // scale
    pad = (k - 1) // 2

    x = x_blc.astype(jnp.bfloat16)         # bf16 MXU operands, halves HBM read
    B, L, Cin = x.shape
    assert L > pad, "flattened roll+mask taps require L > (k-1)//2"
    if not has_shortcut:
        assert Cin == C

    out_bytes = jnp.dtype(out_dtype).itemsize
    if batch_tile is None:
        batch_tile = _select_batch_tile(B, L, Cin, C, out_bytes)
    Bt = batch_tile
    assert B % Bt == 0
    M = Bt * L

    # Pre-split / tap-stack weights so every in-kernel use is a clean
    # leading-axis index or a single wide contraction:
    #   w1/b1/bn1: (scale, Cin|1, Cs)   per-chunk tdnn1 (no lane slicing)
    #   res_w:     (scale-1, k*Cs, Cs)  im2col contraction with K = k*Cs
    #   w2:        (scale, Cs, C)       streaming tdnn2 accumulation
    p = dict(params)
    p["w1"] = params["w1"].reshape(Cin, scale, Cs).transpose(1, 0, 2)
    p["b1"] = params["b1"].reshape(1, scale, Cs).transpose(1, 0, 2)
    p["bn1_s"] = params["bn1_s"].reshape(1, scale, Cs).transpose(1, 0, 2)
    p["bn1_b"] = params["bn1_b"].reshape(1, scale, Cs).transpose(1, 0, 2)
    p["res_w"] = params["res_w"].reshape(scale - 1, k * Cs, Cs)
    p["w2"] = params["w2"].reshape(scale, Cs, C)

    names = list(_PARAM_ORDER) + (["w_sc", "b_sc"] if has_shortcut else [])
    arrays = [p[n] for n in names]
    weight_bytes = int(sum(int(np.prod(a.shape)) * a.dtype.itemsize for a in arrays))

    kernel = _make_kernel(Bt, L, C, Cs, scale, k, has_shortcut)

    x_flat = x.reshape(B * L, Cin)          # flat M axis (free metadata reshape)

    act_bytes = _activation_vmem_bytes(Bt, L, Cin, C, out_bytes)
    vmem_limit = int(min(48 * 2 ** 20,
                         max(32 * 2 ** 20, act_bytes + 2 * weight_bytes + (4 << 20))))

    def _call(single_buffer_weights):
        def _const_spec(arr):
            nd = arr.ndim
            kw = {"pipeline_mode": pl.Buffered(1)} if single_buffer_weights else {}
            return pl.BlockSpec(arr.shape, lambda g, nd=nd: (0,) * nd, **kw)

        in_specs = [pl.BlockSpec((M, Cin), lambda g: (g, 0))] + \
                   [_const_spec(a) for a in arrays]
        return pl.pallas_call(
            kernel,
            out_shape=jax.ShapeDtypeStruct((B * L, C), out_dtype),
            grid_spec=pltpu.PrefetchScalarGridSpec(
                num_scalar_prefetch=0,
                grid=(B // Bt,),
                in_specs=in_specs,
                out_specs=pl.BlockSpec((M, C), lambda g: (g, 0)),
            ),
            compiler_params=pltpu.CompilerParams(
                dimension_semantics=("parallel",),
                vmem_limit_bytes=vmem_limit,
            ),
        )(x_flat, *arrays)

    try:
        # Constant weight/BN blocks are revisited every grid step: single-buffer
        # them so they don't pay a 2x VMEM footprint.
        out_flat = _call(True)
    except Exception:
        # Fallback for Pallas versions that reject pipeline_mode=pl.Buffered(1).
        out_flat = _call(False)

    return out_flat.reshape(B, L, C)


def seres2net_forward(x_bcl, params, cfg, batch_tile=None, out_dtype=jnp.bfloat16):
    """(B, Cin, L) -> (B, C, L): PyTorch/MLX NCL-layout wrapper."""
    x = jnp.transpose(x_bcl, (0, 2, 1))
    out = seres2net_forward_blc(x, params, cfg, batch_tile, out_dtype)
    return jnp.transpose(out, (0, 2, 1))


# ---------------------- parameters (deterministic, synthetic) ----------------------
def init_params(key, Cin, C, Cse, scale, k, has_shortcut, eps=1e-5):
    Cs = C // scale
    keys = iter(jax.random.split(key, 64))

    def nrm(shape, scl, dtype=jnp.bfloat16):
        return (scl * jax.random.normal(next(keys), shape, jnp.float32)).astype(dtype)

    def bn(shape):
        # inference-mode BatchNorm folded into per-channel scale/shift (f32)
        gamma = 1.0 + 0.1 * jax.random.normal(next(keys), shape, jnp.float32)
        beta = 0.1 * jax.random.normal(next(keys), shape, jnp.float32)
        mean = 0.1 * jax.random.normal(next(keys), shape, jnp.float32)
        var = 1.0 + 0.1 * jnp.abs(jax.random.normal(next(keys), shape, jnp.float32))
        s = gamma / jnp.sqrt(var + eps)
        b = beta - mean * s
        return s.astype(jnp.float32), b.astype(jnp.float32)

    p = {}
    p["w1"] = nrm((Cin, C), 1.0 / np.sqrt(Cin))
    p["b1"] = nrm((1, C), 0.05, jnp.float32)
    p["bn1_s"], p["bn1_b"] = bn((1, C))
    p["res_w"] = nrm((scale - 1, k, Cs, Cs), 1.0 / np.sqrt(k * Cs))
    p["res_b"] = nrm((scale - 1, 1, Cs), 0.05, jnp.float32)
    p["res_bn_s"], p["res_bn_b"] = bn((scale - 1, 1, Cs))
    p["w2"] = nrm((C, C), 1.0 / np.sqrt(C))
    p["b2"] = nrm((1, C), 0.05, jnp.float32)
    p["bn2_s"], p["bn2_b"] = bn((1, C))
    p["w_se1"] = nrm((C, Cse), 1.0 / np.sqrt(C))
    p["b_se1"] = nrm((1, Cse), 0.05, jnp.float32)
    p["w_se2"] = nrm((Cse, C), 1.0 / np.sqrt(Cse))
    p["b_se2"] = nrm((1, C), 0.05, jnp.float32)
    if has_shortcut:
        p["w_sc"] = nrm((Cin, C), 1.0 / np.sqrt(Cin))
        p["b_sc"] = nrm((1, C), 0.05, jnp.float32)
    return p


# ---------------------- pure-JAX reference (for verification) ----------------------
# Mirrors the kernel's numerics: bf16 matmul operands, f32 accumulation,
# f32 elementwise.
def ref_forward_blc(x_blc, p, cfg):
    C, scale, k = cfg["C"], cfg["scale"], cfg["k"]
    Cs = C // scale
    pad = (k - 1) // 2
    L = x_blc.shape[1]

    def bdot(a, b):
        return jnp.dot(a.astype(jnp.bfloat16), b, preferred_element_type=jnp.float32)

    x = x_blc.astype(jnp.bfloat16)

    residual = (bdot(x, p["w_sc"]) + p["b_sc"]) if cfg["has_shortcut"] \
        else x.astype(jnp.float32)

    h = jnp.maximum(bdot(x, p["w1"]) + p["b1"], 0.0) * p["bn1_s"] + p["bn1_b"]

    chunks, y_prev = [], None
    for i in range(scale):
        xi = h[..., i * Cs:(i + 1) * Cs]
        if i == 0:
            y_i = xi
        else:
            inp = xi if i == 1 else xi + y_prev
            xp = jnp.pad(inp.astype(jnp.bfloat16), ((0, 0), (pad, pad), (0, 0)))
            acc = sum(jnp.dot(xp[:, kk:kk + L, :], p["res_w"][i - 1, kk],
                              preferred_element_type=jnp.float32)
                      for kk in range(k))
            acc = acc + p["res_b"][i - 1]
            y_i = jnp.maximum(acc, 0.0) * p["res_bn_s"][i - 1] + p["res_bn_b"][i - 1]
            y_prev = y_i
        chunks.append(y_i)
    yr = jnp.concatenate(chunks, axis=-1)

    h2 = jnp.maximum(bdot(yr, p["w2"]) + p["b2"], 0.0) * p["bn2_s"] + p["bn2_b"]

    s = jnp.mean(h2, axis=1, keepdims=True)
    s = jnp.maximum(bdot(s, p["w_se1"]) + p["b_se1"], 0.0)
    s = jax.nn.sigmoid(bdot(s, p["w_se2"]) + p["b_se2"])
    return h2 * s + residual


if __name__ == "__main__":
    key = jax.random.PRNGKey(0)
    kx, kp0, kp1 = jax.random.split(key, 3)

    B, L = 4, 24
    C, Cse, scale, k = 32, 16, 4, 3

    # (Cin == C -> no shortcut, Cin != C -> 1x1 shortcut conv)
    for Cin, has_sc, kp in [(32, False, kp0), (16, True, kp1)]:
        cfg = dict(C=C, Cse=Cse, scale=scale, k=k, has_shortcut=has_sc)
        params = init_params(kp, Cin, C, Cse, scale, k, has_sc)
        x_bcl = jax.random.normal(jax.random.fold_in(kx, Cin), (B, Cin, L), jnp.float32)

        out = seres2net_forward(x_bcl, params, cfg)       # bf16 (B, C, L)
        out = jax.block_until_ready(out)

        ref = ref_forward_blc(jnp.transpose(x_bcl, (0, 2, 1)), params, cfg)
        ref = jnp.transpose(ref, (0, 2, 1))
        # bf16 operands in both paths + bf16 output store; tolerance covers
        # accumulation-order and bf16-rounding differences vs the reference.
        np.testing.assert_allclose(np.asarray(out.astype(jnp.float32)),
                                   np.asarray(ref, dtype=np.float32),
                                   rtol=2e-2, atol=2e-2)

    print("KERNEL_OK")
</pallas_src>

<mosaic_0001>
module attributes {stable_mosaic.version = 11 : i64} {
  func.func @kernel(%arg0: i32, %arg1: memref<48x32xbf16, #tpu.memory_space<vmem>>, %arg2: memref<4x32x8xbf16, #tpu.memory_space<vmem>>, %arg3: memref<4x1x8xf32, #tpu.memory_space<vmem>>, %arg4: memref<4x1x8xf32, #tpu.memory_space<vmem>>, %arg5: memref<4x1x8xf32, #tpu.memory_space<vmem>>, %arg6: memref<3x24x8xbf16, #tpu.memory_space<vmem>>, %arg7: memref<3x1x8xf32, #tpu.memory_space<vmem>>, %arg8: memref<3x1x8xf32, #tpu.memory_space<vmem>>, %arg9: memref<3x1x8xf32, #tpu.memory_space<vmem>>, %arg10: memref<4x8x32xbf16, #tpu.memory_space<vmem>>, %arg11: memref<1x32xf32, #tpu.memory_space<vmem>>, %arg12: memref<1x32xf32, #tpu.memory_space<vmem>>, %arg13: memref<1x32xf32, #tpu.memory_space<vmem>>, %arg14: memref<32x16xbf16, #tpu.memory_space<vmem>>, %arg15: memref<1x16xf32, #tpu.memory_space<vmem>>, %arg16: memref<16x32xbf16, #tpu.memory_space<vmem>>, %arg17: memref<1x32xf32, #tpu.memory_space<vmem>>, %arg18: memref<48x32xbf16, #tpu.memory_space<vmem>>) attributes {dimension_semantics = [#tpu.dimension_semantics<parallel>], iteration_bounds = array<i64: 2>, scalar_prefetch = 0 : i64, scratch_operands = 0 : i64, tpu.core_type = #tpu.core_type<tc>, window_params = [{transform_indices = @transform_0, window_bounds = array<i64: 48, 32>}, {pipeline_mode = #tpu.pipeline_mode<synchronous>, transform_indices = @transform_1, window_bounds = array<i64: 4, 32, 8>}, {pipeline_mode = #tpu.pipeline_mode<synchronous>, transform_indices = @transform_2, window_bounds = array<i64: 4, 1, 8>}, {pipeline_mode = #tpu.pipeline_mode<synchronous>, transform_indices = @transform_3, window_bounds = array<i64: 4, 1, 8>}, {pipeline_mode = #tpu.pipeline_mode<synchronous>, transform_indices = @transform_4, window_bounds = array<i64: 4, 1, 8>}, {pipeline_mode = #tpu.pipeline_mode<synchronous>, transform_indices = @transform_5, window_bounds = array<i64: 3, 24, 8>}, {pipeline_mode = #tpu.pipeline_mode<synchronous>, transform_indices = @transform_6, window_bounds = array<i64: 3, 1, 8>}, {pipeline_mode = #tpu.pipeline_mode<synchronous>, transform_indices = @transform_7, window_bounds = array<i64: 3, 1, 8>}, {pipeline_mode = #tpu.pipeline_mode<synchronous>, transform_indices = @transform_8, window_bounds = array<i64: 3, 1, 8>}, {pipeline_mode = #tpu.pipeline_mode<synchronous>, transform_indices = @transform_9, window_bounds = array<i64: 4, 8, 32>}, {pipeline_mode = #tpu.pipeline_mode<synchronous>, transform_indices = @transform_10, window_bounds = array<i64: 1, 32>}, {pipeline_mode = #tpu.pipeline_mode<synchronous>, transform_indices = @transform_11, window_bounds = array<i64: 1, 32>}, {pipeline_mode = #tpu.pipeline_mode<synchronous>, transform_indices = @transform_12, window_bounds = array<i64: 1, 32>}, {pipeline_mode = #tpu.pipeline_mode<synchronous>, transform_indices = @transform_13, window_bounds = array<i64: 32, 16>}, {pipeline_mode = #tpu.pipeline_mode<synchronous>, transform_indices = @transform_14, window_bounds = array<i64: 1, 16>}, {pipeline_mode = #tpu.pipeline_mode<synchronous>, transform_indices = @transform_15, window_bounds = array<i64: 16, 32>}, {pipeline_mode = #tpu.pipeline_mode<synchronous>, transform_indices = @transform_16, window_bounds = array<i64: 1, 32>}, {transform_indices = @transform_17, window_bounds = array<i64: 48, 32>}]} {
    %c0 = arith.constant 0 : index
    %c0_0 = arith.constant 0 : index
    %0 = vector.load %arg1[%c0, %c0_0] : memref<48x32xbf16, #tpu.memory_space<vmem>>, vector<48x32xbf16>
    %1 = tpu.iota {dimensions = array<i32: 0>} : vector<48x1xi32>
    %c24_i32 = arith.constant 24 : i32
    %c0_i32 = arith.constant 0 : i32
    %2 = arith.cmpi eq, %c24_i32, %c0_i32 : i32
    %c1_i32 = arith.constant 1 : i32
    %3 = arith.select %2, %c1_i32, %c24_i32 : i32
    %4 = vector.broadcast %3 : i32 to vector<48x1xi32>
    %5 = arith.remsi %1, %4 : vector<48x1xi32>
    %c0_i32_1 = arith.constant 0 : i32
    %6 = vector.broadcast %c0_i32_1 : i32 to vector<48x1xi32>
    %7 = arith.cmpi ne, %5, %6 : vector<48x1xi32>
    %c0_i32_2 = arith.constant 0 : i32
    %8 = vector.broadcast %c0_i32_2 : i32 to vector<48x1xi32>
    %9 = arith.cmpi slt, %5, %8 : vector<48x1xi32>
    %c0_i32_3 = arith.constant 0 : i32
    %10 = arith.cmpi slt, %3, %c0_i32_3 : i32
    %11 = vector.broadcast %10 : i1 to vector<48x1xi1>
    %12 = vector.broadcast %11 : vector<48x1xi1> to vector<48x1xi1>
    %13 = arith.xori %9, %12 : vector<48x1xi1>
    %14 = arith.andi %13, %7 : vector<48x1xi1>
    %15 = vector.broadcast %3 : i32 to vector<48x1xi32>
    %16 = arith.addi %5, %15 : vector<48x1xi32>
    %17 = arith.select %14, %16, %5 : vector<48x1xi1>, vector<48x1xi32>
    %c1_i32_4 = arith.constant 1 : i32
    %18 = vector.broadcast %c1_i32_4 : i32 to vector<48x1xi32>
    %19 = arith.cmpi sge, %17, %18 : vector<48x1xi32>
    %c23_i32 = arith.constant 23 : i32
    %20 = vector.broadcast %c23_i32 : i32 to vector<48x1xi32>
    %21 = arith.cmpi slt, %17, %20 : vector<48x1xi32>
    %c0_5 = arith.constant 0 : index
    %c0_6 = arith.constant 0 : index
    %c0_7 = arith.constant 0 : index
    %22 = vector.load %arg2[%c0_5, %c0_6, %c0_7] : memref<4x32x8xbf16, #tpu.memory_space<vmem>>, vector<1x32x8xbf16>
    %23 = vector.shape_cast %22 : vector<1x32x8xbf16> to vector<32x8xbf16>
    %cst = arith.constant dense<0.000000e+00> : vector<48x8xf32>
    %24 = tpu.matmul %0, %23, %cst {dimension_numbers = #tpu.dot_dimension_numbers<[1], [0], [0], [1], [0, 0, 1, 1], [], []>} : vector<48x32xbf16>, vector<32x8xbf16>, vector<48x8xf32> -> vector<48x8xf32>
    %c0_8 = arith.constant 0 : index
    %c0_9 = arith.constant 0 : index
    %c0_10 = arith.constant 0 : index
    %25 = vector.load %arg3[%c0_8, %c0_9, %c0_10] : memref<4x1x8xf32, #tpu.memory_space<vmem>>, vector<1x1x8xf32>
    %26 = vector.shape_cast %25 : vector<1x1x8xf32> to vector<1x8xf32>
    %27 = vector.broadcast %26 : vector<1x8xf32> to vector<48x8xf32>
    %28 = arith.addf %24, %27 : vector<48x8xf32>
    %cst_11 = arith.constant 0.000000e+00 : f32
    %29 = vector.broadcast %cst_11 : f32 to vector<48x8xf32>
    %30 = arith.maximumf %28, %29 : vector<48x8xf32>
    %c0_12 = arith.constant 0 : index
    %c0_13 = arith.constant 0 : index
    %c0_14 = arith.constant 0 : index
    %31 = vector.load %arg4[%c0_12, %c0_13, %c0_14] : memref<4x1x8xf32, #tpu.memory_space<vmem>>, vector<1x1x8xf32>
    %32 = vector.shape_cast %31 : vector<1x1x8xf32> to vector<1x8xf32>
    %33 = vector.broadcast %32 : vector<1x8xf32> to vector<48x8xf32>
    %34 = arith.mulf %30, %33 : vector<48x8xf32>
    %c0_15 = arith.constant 0 : index
    %c0_16 = arith.constant 0 : index
    %c0_17 = arith.constant 0 : index
    %35 = vector.load %arg5[%c0_15, %c0_16, %c0_17] : memref<4x1x8xf32, #tpu.memory_space<vmem>>, vector<1x1x8xf32>
    %36 = vector.shape_cast %35 : vector<1x1x8xf32> to vector<1x8xf32>
    %37 = vector.broadcast %36 : vector<1x8xf32> to vector<48x8xf32>
    %38 = arith.addf %34, %37 : vector<48x8xf32>
    %39 = arith.truncf %38 : vector<48x8xf32> to vector<48x8xbf16>
    %c0_18 = arith.constant 0 : index
    %c0_19 = arith.constant 0 : index
    %c0_20 = arith.constant 0 : index
    %40 = vector.load %arg10[%c0_18, %c0_19, %c0_20] : memref<4x8x32xbf16, #tpu.memory_space<vmem>>, vector<1x8x32xbf16>
    %41 = vector.shape_cast %40 : vector<1x8x32xbf16> to vector<8x32xbf16>
    %cst_21 = arith.constant dense<0.000000e+00> : vector<48x32xf32>
    %42 = tpu.matmul %39, %41, %cst_21 {dimension_numbers = #tpu.dot_dimension_numbers<[1], [0], [0], [1], [0, 0, 1, 1], [], []>} : vector<48x8xbf16>, vector<8x32xbf16>, vector<48x32xf32> -> vector<48x32xf32>
    %c1 = arith.constant 1 : index
    %c0_22 = arith.constant 0 : index
    %c0_23 = arith.constant 0 : index
    %43 = vector.load %arg2[%c1, %c0_22, %c0_23] : memref<4x32x8xbf16, #tpu.memory_space<vmem>>, vector<1x32x8xbf16>
    %44 = vector.shape_cast %43 : vector<1x32x8xbf16> to vector<32x8xbf16>
    %cst_24 = arith.constant dense<0.000000e+00> : vector<48x8xf32>
    %45 = tpu.matmul %0, %44, %cst_24 {dimension_numbers = #tpu.dot_dimension_numbers<[1], [0], [0], [1], [0, 0, 1, 1], [], []>} : vector<48x32xbf16>, vector<32x8xbf16>, vector<48x8xf32> -> vector<48x8xf32>
    %c1_25 = arith.constant 1 : index
    %c0_26 = arith.constant 0 : index
    %c0_27 = arith.constant 0 : index
    %46 = vector.load %arg3[%c1_25, %c0_26, %c0_27] : memref<4x1x8xf32, #tpu.memory_space<vmem>>, vector<1x1x8xf32>
    %47 = vector.shape_cast %46 : vector<1x1x8xf32> to vector<1x8xf32>
    %48 = vector.broadcast %47 : vector<1x8xf32> to vector<48x8xf32>
    %49 = arith.addf %45, %48 : vector<48x8xf32>
    %cst_28 = arith.constant 0.000000e+00 : f32
    %50 = vector.broadcast %cst_28 : f32 to vector<48x8xf32>
    %51 = arith.maximumf %49, %50 : vector<48x8xf32>
    %c1_29 = arith.constant 1 : index
    %c0_30 = arith.constant 0 : index
    %c0_31 = arith.constant 0 : index
    %52 = vector.load %arg4[%c1_29, %c0_30, %c0_31] : memref<4x1x8xf32, #tpu.memory_space<vmem>>, vector<1x1x8xf32>
    %53 = vector.shape_cast %52 : vector<1x1x8xf32> to vector<1x8xf32>
    %54 = vector.broadcast %53 : vector<1x8xf32> to vector<48x8xf32>
    %55 = arith.mulf %51, %54 : vector<48x8xf32>
    %c1_32 = arith.constant 1 : index
    %c0_33 = arith.constant 0 : index
    %c0_34 = arith.constant 0 : index
    %56 = vector.load %arg5[%c1_32, %c0_33, %c0_34] : memref<4x1x8xf32, #tpu.memory_space<vmem>>, vector<1x1x8xf32>
    %57 = vector.shape_cast %56 : vector<1x1x8xf32> to vector<1x8xf32>
    %58 = vector.broadcast %57 : vector<1x8xf32> to vector<48x8xf32>
    %59 = arith.addf %55, %58 : vector<48x8xf32>
    %c1_i32_35 = arith.constant 1 : i32
    %60 = tpu.dynamic_rotate %59 by %c1_i32_35 dim 0 : vector<48x8xf32>, i32 -> vector<48x8xf32>
    %cst_36 = arith.constant 0.000000e+00 : f32
    %61 = vector.shape_cast %19 : vector<48x1xi1> to vector<48x1xi1>
    %62 = vector.broadcast %61 : vector<48x1xi1> to vector<48x8xi1>
    %63 = vector.broadcast %cst_36 : f32 to vector<48x8xf32>
    %64 = arith.select %62, %60, %63 : vector<48x8xi1>, vector<48x8xf32>
    %65 = arith.truncf %64 : vector<48x8xf32> to vector<48x8xbf16>
    %66 = arith.truncf %59 : vector<48x8xf32> to vector<48x8xbf16>
    %c47_i32 = arith.constant 47 : i32
    %67 = tpu.dynamic_rotate %59 by %c47_i32 dim 0 : vector<48x8xf32>, i32 -> vector<48x8xf32>
    %cst_37 = arith.constant 0.000000e+00 : f32
    %68 = vector.shape_cast %21 : vector<48x1xi1> to vector<48x1xi1>
    %69 = vector.broadcast %68 : vector<48x1xi1> to vector<48x8xi1>
    %70 = vector.broadcast %cst_37 : f32 to vector<48x8xf32>
    %71 = arith.select %69, %67, %70 : vector<48x8xi1>, vector<48x8xf32>
    %72 = arith.truncf %71 : vector<48x8xf32> to vector<48x8xbf16>
    %73 = tpu.concatenate %65, %66, %72 in 1 : vector<48x8xbf16>, vector<48x8xbf16>, vector<48x8xbf16> -> vector<48x24xbf16>
    %c0_38 = arith.constant 0 : index
    %c0_39 = arith.constant 0 : index
    %c0_40 = arith.constant 0 : index
    %74 = vector.load %arg6[%c0_38, %c0_39, %c0_40] : memref<3x24x8xbf16, #tpu.memory_space<vmem>>, vector<1x24x8xbf16>
    %75 = vector.shape_cast %74 : vector<1x24x8xbf16> to vector<24x8xbf16>
    %cst_41 = arith.constant dense<0.000000e+00> : vector<48x8xf32>
    %76 = tpu.matmul %73, %75, %cst_41 {dimension_numbers = #tpu.dot_dimension_numbers<[1], [0], [0], [1], [0, 0, 1, 1], [], []>} : vector<48x24xbf16>, vector<24x8xbf16>, vector<48x8xf32> -> vector<48x8xf32>
    %c0_42 = arith.constant 0 : index
    %c0_43 = arith.constant 0 : index
    %c0_44 = arith.constant 0 : index
    %77 = vector.load %arg7[%c0_42, %c0_43, %c0_44] : memref<3x1x8xf32, #tpu.memory_space<vmem>>, vector<1x1x8xf32>
    %78 = vector.shape_cast %77 : vector<1x1x8xf32> to vector<1x8xf32>
    %79 = vector.broadcast %78 : vector<1x8xf32> to vector<48x8xf32>
    %80 = arith.addf %76, %79 : vector<48x8xf32>
    %cst_45 = arith.constant 0.000000e+00 : f32
    %81 = vector.broadcast %cst_45 : f32 to vector<48x8xf32>
    %82 = arith.maximumf %80, %81 : vector<48x8xf32>
    %c0_46 = arith.constant 0 : index
    %c0_47 = arith.constant 0 : index
    %c0_48 = arith.constant 0 : index
    %83 = vector.load %arg8[%c0_46, %c0_47, %c0_48] : memref<3x1x8xf32, #tpu.memory_space<vmem>>, vector<1x1x8xf32>
    %84 = vector.shape_cast %83 : vector<1x1x8xf32> to vector<1x8xf32>
    %85 = vector.broadcast %84 : vector<1x8xf32> to vector<48x8xf32>
    %86 = arith.mulf %82, %85 : vector<48x8xf32>
    %c0_49 = arith.constant 0 : index
    %c0_50 = arith.constant 0 : index
    %c0_51 = arith.constant 0 : index
    %87 = vector.load %arg9[%c0_49, %c0_50, %c0_51] : memref<3x1x8xf32, #tpu.memory_space<vmem>>, vector<1x1x8xf32>
    %88 = vector.shape_cast %87 : vector<1x1x8xf32> to vector<1x8xf32>
    %89 = vector.broadcast %88 : vector<1x8xf32> to vector<48x8xf32>
    %90 = arith.addf %86, %89 : vector<48x8xf32>
    %91 = arith.truncf %90 : vector<48x8xf32> to vector<48x8xbf16>
    %c1_52 = arith.constant 1 : index
    %c0_53 = arith.constant 0 : index
    %c0_54 = arith.constant 0 : index
    %92 = vector.load %arg10[%c1_52, %c0_53, %c0_54] : memref<4x8x32xbf16, #tpu.memory_space<vmem>>, vector<1x8x32xbf16>
    %93 = vector.shape_cast %92 : vector<1x8x32xbf16> to vector<8x32xbf16>
    %cst_55 = arith.constant dense<0.000000e+00> : vector<48x32xf32>
    %94 = tpu.matmul %91, %93, %cst_55 {dimension_numbers = #tpu.dot_dimension_numbers<[1], [0], [0], [1], [0, 0, 1, 1], [], []>} : vector<48x8xbf16>, vector<8x32xbf16>, vector<48x32xf32> -> vector<48x32xf32>
    %95 = arith.addf %42, %94 : vector<48x32xf32>
    %c2 = arith.constant 2 : index
    %c0_56 = arith.constant 0 : index
    %c0_57 = arith.constant 0 : index
    %96 = vector.load %arg2[%c2, %c0_56, %c0_57] : memref<4x32x8xbf16, #tpu.memory_space<vmem>>, vector<1x32x8xbf16>
    %97 = vector.shape_cast %96 : vector<1x32x8xbf16> to vector<32x8xbf16>
    %cst_58 = arith.constant dense<0.000000e+00> : vector<48x8xf32>
    %98 = tpu.matmul %0, %97, %cst_58 {dimension_numbers = #tpu.dot_dimension_numbers<[1], [0], [0], [1], [0, 0, 1, 1], [], []>} : vector<48x32xbf16>, vector<32x8xbf16>, vector<48x8xf32> -> vector<48x8xf32>
    %c2_59 = arith.constant 2 : index
    %c0_60 = arith.constant 0 : index
    %c0_61 = arith.constant 0 : index
    %99 = vector.load %arg3[%c2_59, %c0_60, %c0_61] : memref<4x1x8xf32, #tpu.memory_space<vmem>>, vector<1x1x8xf32>
    %100 = vector.shape_cast %99 : vector<1x1x8xf32> to vector<1x8xf32>
    %101 = vector.broadcast %100 : vector<1x8xf32> to vector<48x8xf32>
    %102 = arith.addf %98, %101 : vector<48x8xf32>
    %cst_62 = arith.constant 0.000000e+00 : f32
    %103 = vector.broadcast %cst_62 : f32 to vector<48x8xf32>
    %104 = arith.maximumf %102, %103 : vector<48x8xf32>
    %c2_63 = arith.constant 2 : index
    %c0_64 = arith.constant 0 : index
    %c0_65 = arith.constant 0 : index
    %105 = vector.load %arg4[%c2_63, %c0_64, %c0_65] : memref<4x1x8xf32, #tpu.memory_space<vmem>>, vector<1x1x8xf32>
    %106 = vector.shape_cast %105 : vector<1x1x8xf32> to vector<1x8xf32>
    %107 = vector.broadcast %106 : vector<1x8xf32> to vector<48x8xf32>
    %108 = arith.mulf %104, %107 : vector<48x8xf32>
    %c2_66 = arith.constant 2 : index
    %c0_67 = arith.constant 0 : index
    %c0_68 = arith.constant 0 : index
    %109 = vector.load %arg5[%c2_66, %c0_67, %c0_68] : memref<4x1x8xf32, #tpu.memory_space<vmem>>, vector<1x1x8xf32>
    %110 = vector.shape_cast %109 : vector<1x1x8xf32> to vector<1x8xf32>
    %111 = vector.broadcast %110 : vector<1x8xf32> to vector<48x8xf32>
    %112 = arith.addf %108, %111 : vector<48x8xf32>
    %113 = arith.addf %112, %90 : vector<48x8xf32>
    %c1_i32_69 = arith.constant 1 : i32
    %114 = tpu.dynamic_rotate %113 by %c1_i32_69 dim 0 : vector<48x8xf32>, i32 -> vector<48x8xf32>
    %cst_70 = arith.constant 0.000000e+00 : f32
    %115 = vector.shape_cast %19 : vector<48x1xi1> to vector<48x1xi1>
    %116 = vector.broadcast %115 : vector<48x1xi1> to vector<48x8xi1>
    %117 = vector.broadcast %cst_70 : f32 to vector<48x8xf32>
    %118 = arith.select %116, %114, %117 : vector<48x8xi1>, vector<48x8xf32>
    %119 = arith.truncf %118 : vector<48x8xf32> to vector<48x8xbf16>
    %120 = arith.truncf %113 : vector<48x8xf32> to vector<48x8xbf16>
    %c47_i32_71 = arith.constant 47 : i32
    %121 = tpu.dynamic_rotate %113 by %c47_i32_71 dim 0 : vector<48x8xf32>, i32 -> vector<48x8xf32>
    %cst_72 = arith.constant 0.000000e+00 : f32
    %122 = vector.shape_cast %21 : vector<48x1xi1> to vector<48x1xi1>
    %123 = vector.broadcast %122 : vector<48x1xi1> to vector<48x8xi1>
    %124 = vector.broadcast %cst_72 : f32 to vector<48x8xf32>
    %125 = arith.select %123, %121, %124 : vector<48x8xi1>, vector<48x8xf32>
    %126 = arith.truncf %125 : vector<48x8xf32> to vector<48x8xbf16>
    %127 = tpu.concatenate %119, %120, %126 in 1 : vector<48x8xbf16>, vector<48x8xbf16>, vector<48x8xbf16> -> vector<48x24xbf16>
    %c1_73 = arith.constant 1 : index
    %c0_74 = arith.constant 0 : index
    %c0_75 = arith.constant 0 : index
    %128 = vector.load %arg6[%c1_73, %c0_74, %c0_75] : memref<3x24x8xbf16, #tpu.memory_space<vmem>>, vector<1x24x8xbf16>
    %129 = vector.shape_cast %128 : vector<1x24x8xbf16> to vector<24x8xbf16>
    %cst_76 = arith.constant dense<0.000000e+00> : vector<48x8xf32>
    %130 = tpu.matmul %127, %129, %cst_76 {dimension_numbers = #tpu.dot_dimension_numbers<[1], [0], [0], [1], [0, 0, 1, 1], [], []>} : vector<48x24xbf16>, vector<24x8xbf16>, vector<48x8xf32> -> vector<48x8xf32>
    %c1_77 = arith.constant 1 : index
    %c0_78 = arith.constant 0 : index
    %c0_79 = arith.constant 0 : index
    %131 = vector.load %arg7[%c1_77, %c0_78, %c0_79] : memref<3x1x8xf32, #tpu.memory_space<vmem>>, vector<1x1x8xf32>
    %132 = vector.shape_cast %131 : vector<1x1x8xf32> to vector<1x8xf32>
    %133 = vector.broadcast %132 : vector<1x8xf32> to vector<48x8xf32>
    %134 = arith.addf %130, %133 : vector<48x8xf32>
    %cst_80 = arith.constant 0.000000e+00 : f32
    %135 = vector.broadcast %cst_80 : f32 to vector<48x8xf32>
    %136 = arith.maximumf %134, %135 : vector<48x8xf32>
    %c1_81 = arith.constant 1 : index
    %c0_82 = arith.constant 0 : index
    %c0_83 = arith.constant 0 : index
    %137 = vector.load %arg8[%c1_81, %c0_82, %c0_83] : memref<3x1x8xf32, #tpu.memory_space<vmem>>, vector<1x1x8xf32>
    %138 = vector.shape_cast %137 : vector<1x1x8xf32> to vector<1x8xf32>
    %139 = vector.broadcast %138 : vector<1x8xf32> to vector<48x8xf32>
    %140 = arith.mulf %136, %139 : vector<48x8xf32>
    %c1_84 = arith.constant 1 : index
    %c0_85 = arith.constant 0 : index
    %c0_86 = arith.constant 0 : index
    %141 = vector.load %arg9[%c1_84, %c0_85, %c0_86] : memref<3x1x8xf32, #tpu.memory_space<vmem>>, vector<1x1x8xf32>
    %142 = vector.shape_cast %141 : vector<1x1x8xf32> to vector<1x8xf32>
    %143 = vector.broadcast %142 : vector<1x8xf32> to vector<48x8xf32>
    %144 = arith.addf %140, %143 : vector<48x8xf32>
    %145 = arith.truncf %144 : vector<48x8xf32> to vector<48x8xbf16>
    %c2_87 = arith.constant 2 : index
    %c0_88 = arith.constant 0 : index
    %c0_89 = arith.constant 0 : index
    %146 = vector.load %arg10[%c2_87, %c0_88, %c0_89] : memref<4x8x32xbf16, #tpu.memory_space<vmem>>, vector<1x8x32xbf16>
    %147 = vector.shape_cast %146 : vector<1x8x32xbf16> to vector<8x32xbf16>
    %cst_90 = arith.constant dense<0.000000e+00> : vector<48x32xf32>
    %148 = tpu.matmul %145, %147, %cst_90 {dimension_numbers = #tpu.dot_dimension_numbers<[1], [0], [0], [1], [0, 0, 1, 1], [], []>} : vector<48x8xbf16>, vector<8x32xbf16>, vector<48x32xf32> -> vector<48x32xf32>
    %149 = arith.addf %95, %148 : vector<48x32xf32>
    %c3 = arith.constant 3 : index
    %c0_91 = arith.constant 0 : index
    %c0_92 = arith.constant 0 : index
    %150 = vector.load %arg2[%c3, %c0_91, %c0_92] : memref<4x32x8xbf16, #tpu.memory_space<vmem>>, vector<1x32x8xbf16>
    %151 = vector.shape_cast %150 : vector<1x32x8xbf16> to vector<32x8xbf16>
    %cst_93 = arith.constant dense<0.000000e+00> : vector<48x8xf32>
    %152 = tpu.matmul %0, %151, %cst_93 {dimension_numbers = #tpu.dot_dimension_numbers<[1], [0], [0], [1], [0, 0, 1, 1], [], []>} : vector<48x32xbf16>, vector<32x8xbf16>, vector<48x8xf32> -> vector<48x8xf32>
    %c3_94 = arith.constant 3 : index
    %c0_95 = arith.constant 0 : index
    %c0_96 = arith.constant 0 : index
    %153 = vector.load %arg3[%c3_94, %c0_95, %c0_96] : memref<4x1x8xf32, #tpu.memory_space<vmem>>, vector<1x1x8xf32>
    %154 = vector.shape_cast %153 : vector<1x1x8xf32> to vector<1x8xf32>
    %155 = vector.broadcast %154 : vector<1x8xf32> to vector<48x8xf32>
    %156 = arith.addf %152, %155 : vector<48x8xf32>
    %cst_97 = arith.constant 0.000000e+00 : f32
    %157 = vector.broadcast %cst_97 : f32 to vector<48x8xf32>
    %158 = arith.maximumf %156, %157 : vector<48x8xf32>
    %c3_98 = arith.constant 3 : index
    %c0_99 = arith.constant 0 : index
    %c0_100 = arith.constant 0 : index
    %159 = vector.load %arg4[%c3_98, %c0_99, %c0_100] : memref<4x1x8xf32, #tpu.memory_space<vmem>>, vector<1x1x8xf32>
    %160 = vector.shape_cast %159 : vector<1x1x8xf32> to vector<1x8xf32>
    %161 = vector.broadcast %160 : vector<1x8xf32> to vector<48x8xf32>
    %162 = arith.mulf %158, %161 : vector<48x8xf32>
    %c3_101 = arith.constant 3 : index
    %c0_102 = arith.constant 0 : index
    %c0_103 = arith.constant 0 : index
    %163 = vector.load %arg5[%c3_101, %c0_102, %c0_103] : memref<4x1x8xf32, #tpu.memory_space<vmem>>, vector<1x1x8xf32>
    %164 = vector.shape_cast %163 : vector<1x1x8xf32> to vector<1x8xf32>
    %165 = vector.broadcast %164 : vector<1x8xf32> to vector<48x8xf32>
    %166 = arith.addf %162, %165 : vector<48x8xf32>
    %167 = arith.addf %166, %144 : vector<48x8xf32>
    %c1_i32_104 = arith.constant 1 : i32
    %168 = tpu.dynamic_rotate %167 by %c1_i32_104 dim 0 : vector<48x8xf32>, i32 -> vector<48x8xf32>
    %cst_105 = arith.constant 0.000000e+00 : f32
    %169 = vector.shape_cast %19 : vector<48x1xi1> to vector<48x1xi1>
    %170 = vector.broadcast %169 : vector<48x1xi1> to vector<48x8xi1>
    %171 = vector.broadcast %cst_105 : f32 to vector<48x8xf32>
    %172 = arith.select %170, %168, %171 : vector<48x8xi1>, vector<48x8xf32>
    %173 = arith.truncf %172 : vector<48x8xf32> to vector<48x8xbf16>
    %174 = arith.truncf %167 : vector<48x8xf32> to vector<48x8xbf16>
    %c47_i32_106 = arith.constant 47 : i32
    %175 = tpu.dynamic_rotate %167 by %c47_i32_106 dim 0 : vector<48x8xf32>, i32 -> vector<48x8xf32>
    %cst_107 = arith.constant 0.000000e+00 : f32
    %176 = vector.shape_cast %21 : vector<48x1xi1> to vector<48x1xi1>
    %177 = vector.broadcast %176 : vector<48x1xi1> to vector<48x8xi1>
    %178 = vector.broadcast %cst_107 : f32 to vector<48x8xf32>
    %179 = arith.select %177, %175, %178 : vector<48x8xi1>, vector<48x8xf32>
    %180 = arith.truncf %179 : vector<48x8xf32> to vector<48x8xbf16>
    %181 = tpu.concatenate %173, %174, %180 in 1 : vector<48x8xbf16>, vector<48x8xbf16>, vector<48x8xbf16> -> vector<48x24xbf16>
    %c2_108 = arith.constant 2 : index
    %c0_109 = arith.constant 0 : index
    %c0_110 = arith.constant 0 : index
    %182 = vector.load %arg6[%c2_108, %c0_109, %c0_110] : memref<3x24x8xbf16, #tpu.memory_space<vmem>>, vector<1x24x8xbf16>
    %183 = vector.shape_cast %182 : vector<1x24x8xbf16> to vector<24x8xbf16>
    %cst_111 = arith.constant dense<0.000000e+00> : vector<48x8xf32>
    %184 = tpu.matmul %181, %183, %cst_111 {dimension_numbers = #tpu.dot_dimension_numbers<[1], [0], [0], [1], [0, 0, 1, 1], [], []>} : vector<48x24xbf16>, vector<24x8xbf16>, vector<48x8xf32> -> vector<48x8xf32>
    %c2_112 = arith.constant 2 : index
    %c0_113 = arith.constant 0 : index
    %c0_114 = arith.constant 0 : index
    %185 = vector.load %arg7[%c2_112, %c0_113, %c0_114] : memref<3x1x8xf32, #tpu.memory_space<vmem>>, vector<1x1x8xf32>
    %186 = vector.shape_cast %185 : vector<1x1x8xf32> to vector<1x8xf32>
    %187 = vector.broadcast %186 : vector<1x8xf32> to vector<48x8xf32>
    %188 = arith.addf %184, %187 : vector<48x8xf32>
    %cst_115 = arith.constant 0.000000e+00 : f32
    %189 = vector.broadcast %cst_115 : f32 to vector<48x8xf32>
    %190 = arith.maximumf %188, %189 : vector<48x8xf32>
    %c2_116 = arith.constant 2 : index
    %c0_117 = arith.constant 0 : index
    %c0_118 = arith.constant 0 : index
    %191 = vector.load %arg8[%c2_116, %c0_117, %c0_118] : memref<3x1x8xf32, #tpu.memory_space<vmem>>, vector<1x1x8xf32>
    %192 = vector.shape_cast %191 : vector<1x1x8xf32> to vector<1x8xf32>
    %193 = vector.broadcast %192 : vector<1x8xf32> to vector<48x8xf32>
    %194 = arith.mulf %190, %193 : vector<48x8xf32>
    %c2_119 = arith.constant 2 : index
    %c0_120 = arith.constant 0 : index
    %c0_121 = arith.constant 0 : index
    %195 = vector.load %arg9[%c2_119, %c0_120, %c0_121] : memref<3x1x8xf32, #tpu.memory_space<vmem>>, vector<1x1x8xf32>
    %196 = vector.shape_cast %195 : vector<1x1x8xf32> to vector<1x8xf32>
    %197 = vector.broadcast %196 : vector<1x8xf32> to vector<48x8xf32>
    %198 = arith.addf %194, %197 : vector<48x8xf32>
    %199 = arith.truncf %198 : vector<48x8xf32> to vector<48x8xbf16>
    %c3_122 = arith.constant 3 : index
    %c0_123 = arith.constant 0 : index
    %c0_124 = arith.constant 0 : index
    %200 = vector.load %arg10[%c3_122, %c0_123, %c0_124] : memref<4x8x32xbf16, #tpu.memory_space<vmem>>, vector<1x8x32xbf16>
    %201 = vector.shape_cast %200 : vector<1x8x32xbf16> to vector<8x32xbf16>
    %cst_125 = arith.constant dense<0.000000e+00> : vector<48x32xf32>
    %202 = tpu.matmul %199, %201, %cst_125 {dimension_numbers = #tpu.dot_dimension_numbers<[1], [0], [0], [1], [0, 0, 1, 1], [], []>} : vector<48x8xbf16>, vector<8x32xbf16>, vector<48x32xf32> -> vector<48x32xf32>
    %203 = arith.addf %149, %202 : vector<48x32xf32>
    %c0_126 = arith.constant 0 : index
    %c0_127 = arith.constant 0 : index
    %204 = vector.load %arg11[%c0_126, %c0_127] : memref<1x32xf32, #tpu.memory_space<vmem>>, vector<1x32xf32>
    %205 = vector.broadcast %204 : vector<1x32xf32> to vector<48x32xf32>
    %206 = arith.addf %203, %205 : vector<48x32xf32>
    %cst_128 = arith.constant 0.000000e+00 : f32
    %207 = vector.broadcast %cst_128 : f32 to vector<48x32xf32>
    %208 = arith.maximumf %206, %207 : vector<48x32xf32>
    %c0_129 = arith.constant 0 : index
    %c0_130 = arith.constant 0 : index
    %209 = vector.load %arg12[%c0_129, %c0_130] : memref<1x32xf32, #tpu.memory_space<vmem>>, vector<1x32xf32>
    %210 = vector.broadcast %209 : vector<1x32xf32> to vector<48x32xf32>
    %211 = arith.mulf %208, %210 : vector<48x32xf32>
    %c0_131 = arith.constant 0 : index
    %c0_132 = arith.constant 0 : index
    %212 = vector.load %arg13[%c0_131, %c0_132] : memref<1x32xf32, #tpu.memory_space<vmem>>, vector<1x32xf32>
    %213 = vector.broadcast %212 : vector<1x32xf32> to vector<48x32xf32>
    %214 = arith.addf %211, %213 : vector<48x32xf32>
    %215 = vector.shape_cast %214 : vector<48x32xf32> to vector<2x24x32xf32>
    %cst_133 = arith.constant dense<0.000000e+00> : vector<2x32xf32>
    %216 = vector.multi_reduction <add>, %215, %cst_133 [1] : vector<2x24x32xf32> to vector<2x32xf32>
    %cst_134 = arith.constant 2.400000e+01 : f32
    %217 = vector.broadcast %cst_134 : f32 to vector<2x32xf32>
    %218 = arith.divf %216, %217 : vector<2x32xf32>
    %219 = arith.truncf %218 : vector<2x32xf32> to vector<2x32xbf16>
    %c0_135 = arith.constant 0 : index
    %c0_136 = arith.constant 0 : index
    %220 = vector.load %arg14[%c0_135, %c0_136] : memref<32x16xbf16, #tpu.memory_space<vmem>>, vector<32x16xbf16>
    %cst_137 = arith.constant dense<0.000000e+00> : vector<2x16xf32>
    %221 = tpu.matmul %219, %220, %cst_137 {dimension_numbers = #tpu.dot_dimension_numbers<[1], [0], [0], [1], [0, 0, 1, 1], [], []>} : vector<2x32xbf16>, vector<32x16xbf16>, vector<2x16xf32> -> vector<2x16xf32>
    %c0_138 = arith.constant 0 : index
    %c0_139 = arith.constant 0 : index
    %222 = vector.load %arg15[%c0_138, %c0_139] : memref<1x16xf32, #tpu.memory_space<vmem>>, vector<1x16xf32>
    %223 = vector.broadcast %222 : vector<1x16xf32> to vector<2x16xf32>
    %224 = arith.addf %221, %223 : vector<2x16xf32>
    %cst_140 = arith.constant 0.000000e+00 : f32
    %225 = vector.broadcast %cst_140 : f32 to vector<2x16xf32>
    %226 = arith.maximumf %224, %225 : vector<2x16xf32>
    %227 = arith.truncf %226 : vector<2x16xf32> to vector<2x16xbf16>
    %c0_141 = arith.constant 0 : index
    %c0_142 = arith.constant 0 : index
    %228 = vector.load %arg16[%c0_141, %c0_142] : memref<16x32xbf16, #tpu.memory_space<vmem>>, vector<16x32xbf16>
    %cst_143 = arith.constant dense<0.000000e+00> : vector<2x32xf32>
    %229 = tpu.matmul %227, %228, %cst_143 {dimension_numbers = #tpu.dot_dimension_numbers<[1], [0], [0], [1], [0, 0, 1, 1], [], []>} : vector<2x16xbf16>, vector<16x32xbf16>, vector<2x32xf32> -> vector<2x32xf32>
    %c0_144 = arith.constant 0 : index
    %c0_145 = arith.constant 0 : index
    %230 = vector.load %arg17[%c0_144, %c0_145] : memref<1x32xf32, #tpu.memory_space<vmem>>, vector<1x32xf32>
    %231 = vector.broadcast %230 : vector<1x32xf32> to vector<2x32xf32>
    %232 = arith.addf %229, %231 : vector<2x32xf32>
    %233 = arith.negf %232 : vector<2x32xf32>
    %234 = math.exp %233 : vector<2x32xf32>
    %cst_146 = arith.constant 1.000000e+00 : f32
    %235 = vector.broadcast %cst_146 : f32 to vector<2x32xf32>
    %236 = arith.addf %235, %234 : vector<2x32xf32>
    %237 = arith.divf %235, %236 : vector<2x32xf32>
    %238 = vector.shape_cast %237 : vector<2x32xf32> to vector<2x1x32xf32>
    %239 = vector.broadcast %238 : vector<2x1x32xf32> to vector<2x24x32xf32>
    %240 = arith.mulf %215, %239 : vector<2x24x32xf32>
    %241 = vector.shape_cast %240 : vector<2x24x32xf32> to vector<48x32xf32>
    %242 = arith.extf %0 : vector<48x32xbf16> to vector<48x32xf32>
    %243 = arith.addf %241, %242 : vector<48x32xf32>
    %244 = arith.truncf %243 : vector<48x32xf32> to vector<48x32xbf16>
    %c0_147 = arith.constant 0 : index
    %c0_148 = arith.constant 0 : index
    %245 = vector.load %arg18[%c0_147, %c0_148] : memref<48x32xbf16, #tpu.memory_space<vmem>>, vector<48x32xbf16>
    tpu.vector_store %arg18[%c0_147, %c0_148], %244 {strides = array<i32>} : memref<48x32xbf16, #tpu.memory_space<vmem>>, vector<48x32xbf16>,
    return
  }
  func.func @transform_0(%arg0: i32) -> (i32, i32) {
    %c0_i32 = arith.constant 0 : i32
    %c0_i32_0 = arith.constant 0 : i32
    return %arg0, %c0_i32 : i32, i32
  }
  func.func @transform_1(%arg0: i32) -> (i32, i32, i32) {
    %c0_i32 = arith.constant 0 : i32
    %c0_i32_0 = arith.constant 0 : i32
    %c0_i32_1 = arith.constant 0 : i32
    %c0_i32_2 = arith.constant 0 : i32
    return %c0_i32, %c0_i32_0, %c0_i32_1 : i32, i32, i32
  }
  func.func @transform_2(%arg0: i32) -> (i32, i32, i32) {
    %c0_i32 = arith.constant 0 : i32
    %c0_i32_0 = arith.constant 0 : i32
    %c0_i32_1 = arith.constant 0 : i32
    %c0_i32_2 = arith.constant 0 : i32
    return %c0_i32, %c0_i32_0, %c0_i32_1 : i32, i32, i32
  }
  func.func @transform_3(%arg0: i32) -> (i32, i32, i32) {
    %c0_i32 = arith.constant 0 : i32
    %c0_i32_0 = arith.constant 0 : i32
    %c0_i32_1 = arith.constant 0 : i32
    %c0_i32_2 = arith.constant 0 : i32
    return %c0_i32, %c0_i32_0, %c0_i32_1 : i32, i32, i32
  }
  func.func @transform_4(%arg0: i32) -> (i32, i32, i32) {
    %c0_i32 = arith.constant 0 : i32
    %c0_i32_0 = arith.constant 0 : i32
    %c0_i32_1 = arith.constant 0 : i32
    %c0_i32_2 = arith.constant 0 : i32
    return %c0_i32, %c0_i32_0, %c0_i32_1 : i32, i32, i32
  }
  func.func @transform_5(%arg0: i32) -> (i32, i32, i32) {
    %c0_i32 = arith.constant 0 : i32
    %c0_i32_0 = arith.constant 0 : i32
    %c0_i32_1 = arith.constant 0 : i32
    %c0_i32_2 = arith.constant 0 : i32
    return %c0_i32, %c0_i32_0, %c0_i32_1 : i32, i32, i32
  }
  func.func @transform_6(%arg0: i32) -> (i32, i32, i32) {
    %c0_i32 = arith.constant 0 : i32
    %c0_i32_0 = arith.constant 0 : i32
    %c0_i32_1 = arith.constant 0 : i32
    %c0_i32_2 = arith.constant 0 : i32
    return %c0_i32, %c0_i32_0, %c0_i32_1 : i32, i32, i32
  }
  func.func @transform_7(%arg0: i32) -> (i32, i32, i32) {
    %c0_i32 = arith.constant 0 : i32
    %c0_i32_0 = arith.constant 0 : i32
    %c0_i32_1 = arith.constant 0 : i32
    %c0_i32_2 = arith.constant 0 : i32
    return %c0_i32, %c0_i32_0, %c0_i32_1 : i32, i32, i32
  }
  func.func @transform_8(%arg0: i32) -> (i32, i32, i32) {
    %c0_i32 = arith.constant 0 : i32
    %c0_i32_0 = arith.constant 0 : i32
    %c0_i32_1 = arith.constant 0 : i32
    %c0_i32_2 = arith.constant 0 : i32
    return %c0_i32, %c0_i32_0, %c0_i32_1 : i32, i32, i32
  }
  func.func @transform_9(%arg0: i32) -> (i32, i32, i32) {
    %c0_i32 = arith.constant 0 : i32
    %c0_i32_0 = arith.constant 0 : i32
    %c0_i32_1 = arith.constant 0 : i32
    %c0_i32_2 = arith.constant 0 : i32
    return %c0_i32, %c0_i32_0, %c0_i32_1 : i32, i32, i32
  }
  func.func @transform_10(%arg0: i32) -> (i32, i32) {
    %c0_i32 = arith.constant 0 : i32
    %c0_i32_0 = arith.constant 0 : i32
    %c0_i32_1 = arith.constant 0 : i32
    return %c0_i32, %c0_i32_0 : i32, i32
  }
  func.func @transform_11(%arg0: i32) -> (i32, i32) {
    %c0_i32 = arith.constant 0 : i32
    %c0_i32_0 = arith.constant 0 : i32
    %c0_i32_1 = arith.constant 0 : i32
    return %c0_i32, %c0_i32_0 : i32, i32
  }
  func.func @transform_12(%arg0: i32) -> (i32, i32) {
    %c0_i32 = arith.constant 0 : i32
    %c0_i32_0 = arith.constant 0 : i32
    %c0_i32_1 = arith.constant 0 : i32
    return %c0_i32, %c0_i32_0 : i32, i32
  }
  func.func @transform_13(%arg0: i32) -> (i32, i32) {
    %c0_i32 = arith.constant 0 : i32
    %c0_i32_0 = arith.constant 0 : i32
    %c0_i32_1 = arith.constant 0 : i32
    return %c0_i32, %c0_i32_0 : i32, i32
  }
  func.func @transform_14(%arg0: i32) -> (i32, i32) {
    %c0_i32 = arith.constant 0 : i32
    %c0_i32_0 = arith.constant 0 : i32
    %c0_i32_1 = arith.constant 0 : i32
    return %c0_i32, %c0_i32_0 : i32, i32
  }
  func.func @transform_15(%arg0: i32) -> (i32, i32) {
    %c0_i32 = arith.constant 0 : i32
    %c0_i32_0 = arith.constant 0 : i32
    %c0_i32_1 = arith.constant 0 : i32
    return %c0_i32, %c0_i32_0 : i32, i32
  }
  func.func @transform_16(%arg0: i32) -> (i32, i32) {
    %c0_i32 = arith.constant 0 : i32
    %c0_i32_0 = arith.constant 0 : i32
    %c0_i32_1 = arith.constant 0 : i32
    return %c0_i32, %c0_i32_0 : i32, i32
  }
  func.func @transform_17(%arg0: i32) -> (i32, i32) {
    %c0_i32 = arith.constant 0 : i32
    %c0_i32_0 = arith.constant 0 : i32
    return %arg0, %c0_i32 : i32, i32
  }
}

module attributes {stable_mosaic.version = 11 : i64} {
  func.func @kernel(%arg0: i32, %arg1: memref<48x32xbf16, #tpu.memory_space<vmem>>, %arg2: memref<4x32x8xbf16, #tpu.memory_space<vmem>>, %arg3: memref<4x1x8xf32, #tpu.memory_space<vmem>>, %arg4: memref<4x1x8xf32, #tpu.memory_space<vmem>>, %arg5: memref<4x1x8xf32, #tpu.memory_space<vmem>>, %arg6: memref<3x24x8xbf16, #tpu.memory_space<vmem>>, %arg7: memref<3x1x8xf32, #tpu.memory_space<vmem>>, %arg8: memref<3x1x8xf32, #tpu.memory_space<vmem>>, %arg9: memref<3x1x8xf32, #tpu.memory_space<vmem>>, %arg10: memref<4x8x32xbf16, #tpu.memory_space<vmem>>, %arg11: memref<1x32xf32, #tpu.memory_space<vmem>>, %arg12: memref<1x32xf32, #tpu.memory_space<vmem>>, %arg13: memref<1x32xf32, #tpu.memory_space<vmem>>, %arg14: memref<32x16xbf16, #tpu.memory_space<vmem>>, %arg15: memref<1x16xf32, #tpu.memory_space<vmem>>, %arg16: memref<16x32xbf16, #tpu.memory_space<vmem>>, %arg17: memref<1x32xf32, #tpu.memory_space<vmem>>, %arg18: memref<48x32xbf16, #tpu.memory_space<vmem>>) attributes {dimension_semantics = [#tpu.dimension_semantics<parallel>], iteration_bounds = array<i64: 2>, scalar_prefetch = 0 : i64, scratch_operands = 0 : i64, tpu.core_type = #tpu.core_type<tc>, window_params = [{transform_indices = @transform_0, window_bounds = array<i64: 48, 32>}, {pipeline_mode = #tpu.pipeline_mode<synchronous>, transform_indices = @transform_1, window_bounds = array<i64: 4, 32, 8>}, {pipeline_mode = #tpu.pipeline_mode<synchronous>, transform_indices = @transform_2, window_bounds = array<i64: 4, 1, 8>}, {pipeline_mode = #tpu.pipeline_mode<synchronous>, transform_indices = @transform_3, window_bounds = array<i64: 4, 1, 8>}, {pipeline_mode = #tpu.pipeline_mode<synchronous>, transform_indices = @transform_4, window_bounds = array<i64: 4, 1, 8>}, {pipeline_mode = #tpu.pipeline_mode<synchronous>, transform_indices = @transform_5, window_bounds = array<i64: 3, 24, 8>}, {pipeline_mode = #tpu.pipeline_mode<synchronous>, transform_indices = @transform_6, window_bounds = array<i64: 3, 1, 8>}, {pipeline_mode = #tpu.pipeline_mode<synchronous>, transform_indices = @transform_7, window_bounds = array<i64: 3, 1, 8>}, {pipeline_mode = #tpu.pipeline_mode<synchronous>, transform_indices = @transform_8, window_bounds = array<i64: 3, 1, 8>}, {pipeline_mode = #tpu.pipeline_mode<synchronous>, transform_indices = @transform_9, window_bounds = array<i64: 4, 8, 32>}, {pipeline_mode = #tpu.pipeline_mode<synchronous>, transform_indices = @transform_10, window_bounds = array<i64: 1, 32>}, {pipeline_mode = #tpu.pipeline_mode<synchronous>, transform_indices = @transform_11, window_bounds = array<i64: 1, 32>}, {pipeline_mode = #tpu.pipeline_mode<synchronous>, transform_indices = @transform_12, window_bounds = array<i64: 1, 32>}, {pipeline_mode = #tpu.pipeline_mode<synchronous>, transform_indices = @transform_13, window_bounds = array<i64: 32, 16>}, {pipeline_mode = #tpu.pipeline_mode<synchronous>, transform_indices = @transform_14, window_bounds = array<i64: 1, 16>}, {pipeline_mode = #tpu.pipeline_mode<synchronous>, transform_indices = @transform_15, window_bounds = array<i64: 16, 32>}, {pipeline_mode = #tpu.pipeline_mode<synchronous>, transform_indices = @transform_16, window_bounds = array<i64: 1, 32>}, {transform_indices = @transform_17, window_bounds = array<i64: 48, 32>}]} {
    %c0 = arith.constant 0 : index
    %c0_0 = arith.constant 0 : index
    %0 = vector.load %arg1[%c0, %c0_0] : memref<48x32xbf16, #tpu.memory_space<vmem>>, vector<48x32xbf16>
    %1 = tpu.iota {dimensions = array<i32: 0>} : vector<48x1xi32>
    %c24_i32 = arith.constant 24 : i32
    %c0_i32 = arith.constant 0 : i32
    %2 = arith.cmpi eq, %c24_i32, %c0_i32 : i32
    %c1_i32 = arith.constant 1 : i32
    %3 = arith.select %2, %c1_i32, %c24_i32 : i32
    %4 = vector.broadcast %3 : i32 to vector<48x1xi32>
    %5 = arith.remsi %1, %4 : vector<48x1xi32>
    %c0_i32_1 = arith.constant 0 : i32
    %6 = vector.broadcast %c0_i32_1 : i32 to vector<48x1xi32>
    %7 = arith.cmpi ne, %5, %6 : vector<48x1xi32>
    %c0_i32_2 = arith.constant 0 : i32
    %8 = vector.broadcast %c0_i32_2 : i32 to vector<48x1xi32>
    %9 = arith.cmpi slt, %5, %8 : vector<48x1xi32>
    %c0_i32_3 = arith.constant 0 : i32
    %10 = arith.cmpi slt, %3, %c0_i32_3 : i32
    %11 = vector.broadcast %10 : i1 to vector<48x1xi1>
    %12 = vector.broadcast %11 : vector<48x1xi1> to vector<48x1xi1>
    %13 = arith.xori %9, %12 : vector<48x1xi1>
    %14 = arith.andi %13, %7 : vector<48x1xi1>
    %15 = vector.broadcast %3 : i32 to vector<48x1xi32>
    %16 = arith.addi %5, %15 : vector<48x1xi32>
    %17 = arith.select %14, %16, %5 : vector<48x1xi1>, vector<48x1xi32>
    %c1_i32_4 = arith.constant 1 : i32
    %18 = vector.broadcast %c1_i32_4 : i32 to vector<48x1xi32>
    %19 = arith.cmpi sge, %17, %18 : vector<48x1xi32>
    %c23_i32 = arith.constant 23 : i32
    %20 = vector.broadcast %c23_i32 : i32 to vector<48x1xi32>
    %21 = arith.cmpi slt, %17, %20 : vector<48x1xi32>
    %c0_5 = arith.constant 0 : index
    %c0_6 = arith.constant 0 : index
    %c0_7 = arith.constant 0 : index
    %22 = vector.load %arg2[%c0_5, %c0_6, %c0_7] : memref<4x32x8xbf16, #tpu.memory_space<vmem>>, vector<1x32x8xbf16>
    %23 = vector.shape_cast %22 : vector<1x32x8xbf16> to vector<32x8xbf16>
    %cst = arith.constant dense<0.000000e+00> : vector<48x8xf32>
    %24 = tpu.matmul %0, %23, %cst {dimension_numbers = #tpu.dot_dimension_numbers<[1], [0], [0], [1], [0, 0, 1, 1], [], []>} : vector<48x32xbf16>, vector<32x8xbf16>, vector<48x8xf32> -> vector<48x8xf32>
    %c0_8 = arith.constant 0 : index
    %c0_9 = arith.constant 0 : index
    %c0_10 = arith.constant 0 : index
    %25 = vector.load %arg3[%c0_8, %c0_9, %c0_10] : memref<4x1x8xf32, #tpu.memory_space<vmem>>, vector<1x1x8xf32>
    %26 = vector.shape_cast %25 : vector<1x1x8xf32> to vector<1x8xf32>
    %27 = vector.broadcast %26 : vector<1x8xf32> to vector<48x8xf32>
    %28 = arith.addf %24, %27 : vector<48x8xf32>
    %cst_11 = arith.constant 0.000000e+00 : f32
    %29 = vector.broadcast %cst_11 : f32 to vector<48x8xf32>
    %30 = arith.maximumf %28, %29 : vector<48x8xf32>
    %c0_12 = arith.constant 0 : index
    %c0_13 = arith.constant 0 : index
    %c0_14 = arith.constant 0 : index
    %31 = vector.load %arg4[%c0_12, %c0_13, %c0_14] : memref<4x1x8xf32, #tpu.memory_space<vmem>>, vector<1x1x8xf32>
    %32 = vector.shape_cast %31 : vector<1x1x8xf32> to vector<1x8xf32>
    %33 = vector.broadcast %32 : vector<1x8xf32> to vector<48x8xf32>
    %34 = arith.mulf %30, %33 : vector<48x8xf32>
    %c0_15 = arith.constant 0 : index
    %c0_16 = arith.constant 0 : index
    %c0_17 = arith.constant 0 : index
    %35 = vector.load %arg5[%c0_15, %c0_16, %c0_17] : memref<4x1x8xf32, #tpu.memory_space<vmem>>, vector<1x1x8xf32>
    %36 = vector.shape_cast %35 : vector<1x1x8xf32> to vector<1x8xf32>
    %37 = vector.broadcast %36 : vector<1x8xf32> to vector<48x8xf32>
    %38 = arith.addf %34, %37 : vector<48x8xf32>
    %39 = arith.truncf %38 : vector<48x8xf32> to vector<48x8xbf16>
    %c0_18 = arith.constant 0 : index
    %c0_19 = arith.constant 0 : index
    %c0_20 = arith.constant 0 : index
    %40 = vector.load %arg10[%c0_18, %c0_19, %c0_20] : memref<4x8x32xbf16, #tpu.memory_space<vmem>>, vector<1x8x32xbf16>
    %41 = vector.shape_cast %40 : vector<1x8x32xbf16> to vector<8x32xbf16>
    %cst_21 = arith.constant dense<0.000000e+00> : vector<48x32xf32>
    %42 = tpu.matmul %39, %41, %cst_21 {dimension_numbers = #tpu.dot_dimension_numbers<[1], [0], [0], [1], [0, 0, 1, 1], [], []>} : vector<48x8xbf16>, vector<8x32xbf16>, vector<48x32xf32> -> vector<48x32xf32>
    %c1 = arith.constant 1 : index
    %c0_22 = arith.constant 0 : index
    %c0_23 = arith.constant 0 : index
    %43 = vector.load %arg2[%c1, %c0_22, %c0_23] : memref<4x32x8xbf16, #tpu.memory_space<vmem>>, vector<1x32x8xbf16>
    %44 = vector.shape_cast %43 : vector<1x32x8xbf16> to vector<32x8xbf16>
    %cst_24 = arith.constant dense<0.000000e+00> : vector<48x8xf32>
    %45 = tpu.matmul %0, %44, %cst_24 {dimension_numbers = #tpu.dot_dimension_numbers<[1], [0], [0], [1], [0, 0, 1, 1], [], []>} : vector<48x32xbf16>, vector<32x8xbf16>, vector<48x8xf32> -> vector<48x8xf32>
    %c1_25 = arith.constant 1 : index
    %c0_26 = arith.constant 0 : index
    %c0_27 = arith.constant 0 : index
    %46 = vector.load %arg3[%c1_25, %c0_26, %c0_27] : memref<4x1x8xf32, #tpu.memory_space<vmem>>, vector<1x1x8xf32>
    %47 = vector.shape_cast %46 : vector<1x1x8xf32> to vector<1x8xf32>
    %48 = vector.broadcast %47 : vector<1x8xf32> to vector<48x8xf32>
    %49 = arith.addf %45, %48 : vector<48x8xf32>
    %cst_28 = arith.constant 0.000000e+00 : f32
    %50 = vector.broadcast %cst_28 : f32 to vector<48x8xf32>
    %51 = arith.maximumf %49, %50 : vector<48x8xf32>
    %c1_29 = arith.constant 1 : index
    %c0_30 = arith.constant 0 : index
    %c0_31 = arith.constant 0 : index
    %52 = vector.load %arg4[%c1_29, %c0_30, %c0_31] : memref<4x1x8xf32, #tpu.memory_space<vmem>>, vector<1x1x8xf32>
    %53 = vector.shape_cast %52 : vector<1x1x8xf32> to vector<1x8xf32>
    %54 = vector.broadcast %53 : vector<1x8xf32> to vector<48x8xf32>
    %55 = arith.mulf %51, %54 : vector<48x8xf32>
    %c1_32 = arith.constant 1 : index
    %c0_33 = arith.constant 0 : index
    %c0_34 = arith.constant 0 : index
    %56 = vector.load %arg5[%c1_32, %c0_33, %c0_34] : memref<4x1x8xf32, #tpu.memory_space<vmem>>, vector<1x1x8xf32>
    %57 = vector.shape_cast %56 : vector<1x1x8xf32> to vector<1x8xf32>
    %58 = vector.broadcast %57 : vector<1x8xf32> to vector<48x8xf32>
    %59 = arith.addf %55, %58 : vector<48x8xf32>
    %c1_i32_35 = arith.constant 1 : i32
    %60 = tpu.dynamic_rotate %59 by %c1_i32_35 dim 0 : vector<48x8xf32>, i32 -> vector<48x8xf32>
    %cst_36 = arith.constant 0.000000e+00 : f32
    %61 = vector.shape_cast %19 : vector<48x1xi1> to vector<48x1xi1>
    %62 = vector.broadcast %61 : vector<48x1xi1> to vector<48x8xi1>
    %63 = vector.broadcast %cst_36 : f32 to vector<48x8xf32>
    %64 = arith.select %62, %60, %63 : vector<48x8xi1>, vector<48x8xf32>
    %65 = arith.truncf %64 : vector<48x8xf32> to vector<48x8xbf16>
    %66 = arith.truncf %59 : vector<48x8xf32> to vector<48x8xbf16>
    %c47_i32 = arith.constant 47 : i32
    %67 = tpu.dynamic_rotate %59 by %c47_i32 dim 0 : vector<48x8xf32>, i32 -> vector<48x8xf32>
    %cst_37 = arith.constant 0.000000e+00 : f32
    %68 = vector.shape_cast %21 : vector<48x1xi1> to vector<48x1xi1>
    %69 = vector.broadcast %68 : vector<48x1xi1> to vector<48x8xi1>
    %70 = vector.broadcast %cst_37 : f32 to vector<48x8xf32>
    %71 = arith.select %69, %67, %70 : vector<48x8xi1>, vector<48x8xf32>
    %72 = arith.truncf %71 : vector<48x8xf32> to vector<48x8xbf16>
    %73 = tpu.concatenate %65, %66, %72 in 1 : vector<48x8xbf16>, vector<48x8xbf16>, vector<48x8xbf16> -> vector<48x24xbf16>
    %c0_38 = arith.constant 0 : index
    %c0_39 = arith.constant 0 : index
    %c0_40 = arith.constant 0 : index
    %74 = vector.load %arg6[%c0_38, %c0_39, %c0_40] : memref<3x24x8xbf16, #tpu.memory_space<vmem>>, vector<1x24x8xbf16>
    %75 = vector.shape_cast %74 : vector<1x24x8xbf16> to vector<24x8xbf16>
    %cst_41 = arith.constant dense<0.000000e+00> : vector<48x8xf32>
    %76 = tpu.matmul %73, %75, %cst_41 {dimension_numbers = #tpu.dot_dimension_numbers<[1], [0], [0], [1], [0, 0, 1, 1], [], []>} : vector<48x24xbf16>, vector<24x8xbf16>, vector<48x8xf32> -> vector<48x8xf32>
    %c0_42 = arith.constant 0 : index
    %c0_43 = arith.constant 0 : index
    %c0_44 = arith.constant 0 : index
    %77 = vector.load %arg7[%c0_42, %c0_43, %c0_44] : memref<3x1x8xf32, #tpu.memory_space<vmem>>, vector<1x1x8xf32>
    %78 = vector.shape_cast %77 : vector<1x1x8xf32> to vector<1x8xf32>
    %79 = vector.broadcast %78 : vector<1x8xf32> to vector<48x8xf32>
    %80 = arith.addf %76, %79 : vector<48x8xf32>
    %cst_45 = arith.constant 0.000000e+00 : f32
    %81 = vector.broadcast %cst_45 : f32 to vector<48x8xf32>
    %82 = arith.maximumf %80, %81 : vector<48x8xf32>
    %c0_46 = arith.constant 0 : index
    %c0_47 = arith.constant 0 : index
    %c0_48 = arith.constant 0 : index
    %83 = vector.load %arg8[%c0_46, %c0_47, %c0_48] : memref<3x1x8xf32, #tpu.memory_space<vmem>>, vector<1x1x8xf32>
    %84 = vector.shape_cast %83 : vector<1x1x8xf32> to vector<1x8xf32>
    %85 = vector.broadcast %84 : vector<1x8xf32> to vector<48x8xf32>
    %86 = arith.mulf %82, %85 : vector<48x8xf32>
    %c0_49 = arith.constant 0 : index
    %c0_50 = arith.constant 0 : index
    %c0_51 = arith.constant 0 : index
    %87 = vector.load %arg9[%c0_49, %c0_50, %c0_51] : memref<3x1x8xf32, #tpu.memory_space<vmem>>, vector<1x1x8xf32>
    %88 = vector.shape_cast %87 : vector<1x1x8xf32> to vector<1x8xf32>
    %89 = vector.broadcast %88 : vector<1x8xf32> to vector<48x8xf32>
    %90 = arith.addf %86, %89 : vector<48x8xf32>
    %91 = arith.truncf %90 : vector<48x8xf32> to vector<48x8xbf16>
    %c1_52 = arith.constant 1 : index
    %c0_53 = arith.constant 0 : index
    %c0_54 = arith.constant 0 : index
    %92 = vector.load %arg10[%c1_52, %c0_53, %c0_54] : memref<4x8x32xbf16, #tpu.memory_space<vmem>>, vector<1x8x32xbf16>
    %93 = vector.shape_cast %92 : vector<1x8x32xbf16> to vector<8x32xbf16>
    %cst_55 = arith.constant dense<0.000000e+00> : vector<48x32xf32>
    %94 = tpu.matmul %91, %93, %cst_55 {dimension_numbers = #tpu.dot_dimension_numbers<[1], [0], [0], [1], [0, 0, 1, 1], [], []>} : vector<48x8xbf16>, vector<8x32xbf16>, vector<48x32xf32> -> vector<48x32xf32>
    %95 = arith.addf %42, %94 : vector<48x32xf32>
    %c2 = arith.constant 2 : index
    %c0_56 = arith.constant 0 : index
    %c0_57 = arith.constant 0 : index
    %96 = vector.load %arg2[%c2, %c0_56, %c0_57] : memref<4x32x8xbf16, #tpu.memory_space<vmem>>, vector<1x32x8xbf16>
    %97 = vector.shape_cast %96 : vector<1x32x8xbf16> to vector<32x8xbf16>
    %cst_58 = arith.constant dense<0.000000e+00> : vector<48x8xf32>
    %98 = tpu.matmul %0, %97, %cst_58 {dimension_numbers = #tpu.dot_dimension_numbers<[1], [0], [0], [1], [0, 0, 1, 1], [], []>} : vector<48x32xbf16>, vector<32x8xbf16>, vector<48x8xf32> -> vector<48x8xf32>
    %c2_59 = arith.constant 2 : index
    %c0_60 = arith.constant 0 : index
    %c0_61 = arith.constant 0 : index
    %99 = vector.load %arg3[%c2_59, %c0_60, %c0_61] : memref<4x1x8xf32, #tpu.memory_space<vmem>>, vector<1x1x8xf32>
    %100 = vector.shape_cast %99 : vector<1x1x8xf32> to vector<1x8xf32>
    %101 = vector.broadcast %100 : vector<1x8xf32> to vector<48x8xf32>
    %102 = arith.addf %98, %101 : vector<48x8xf32>
    %cst_62 = arith.constant 0.000000e+00 : f32
    %103 = vector.broadcast %cst_62 : f32 to vector<48x8xf32>
    %104 = arith.maximumf %102, %103 : vector<48x8xf32>
    %c2_63 = arith.constant 2 : index
    %c0_64 = arith.constant 0 : index
    %c0_65 = arith.constant 0 : index
    %105 = vector.load %arg4[%c2_63, %c0_64, %c0_65] : memref<4x1x8xf32, #tpu.memory_space<vmem>>, vector<1x1x8xf32>
    %106 = vector.shape_cast %105 : vector<1x1x8xf32> to vector<1x8xf32>
    %107 = vector.broadcast %106 : vector<1x8xf32> to vector<48x8xf32>
    %108 = arith.mulf %104, %107 : vector<48x8xf32>
    %c2_66 = arith.constant 2 : index
    %c0_67 = arith.constant 0 : index
    %c0_68 = arith.constant 0 : index
    %109 = vector.load %arg5[%c2_66, %c0_67, %c0_68] : memref<4x1x8xf32, #tpu.memory_space<vmem>>, vector<1x1x8xf32>
    %110 = vector.shape_cast %109 : vector<1x1x8xf32> to vector<1x8xf32>
    %111 = vector.broadcast %110 : vector<1x8xf32> to vector<48x8xf32>
    %112 = arith.addf %108, %111 : vector<48x8xf32>
    %113 = arith.addf %112, %90 : vector<48x8xf32>
    %c1_i32_69 = arith.constant 1 : i32
    %114 = tpu.dynamic_rotate %113 by %c1_i32_69 dim 0 : vector<48x8xf32>, i32 -> vector<48x8xf32>
    %cst_70 = arith.constant 0.000000e+00 : f32
    %115 = vector.shape_cast %19 : vector<48x1xi1> to vector<48x1xi1>
    %116 = vector.broadcast %115 : vector<48x1xi1> to vector<48x8xi1>
    %117 = vector.broadcast %cst_70 : f32 to vector<48x8xf32>
    %118 = arith.select %116, %114, %117 : vector<48x8xi1>, vector<48x8xf32>
    %119 = arith.truncf %118 : vector<48x8xf32> to vector<48x8xbf16>
    %120 = arith.truncf %113 : vector<48x8xf32> to vector<48x8xbf16>
    %c47_i32_71 = arith.constant 47 : i32
    %121 = tpu.dynamic_rotate %113 by %c47_i32_71 dim 0 : vector<48x8xf32>, i32 -> vector<48x8xf32>
    %cst_72 = arith.constant 0.000000e+00 : f32
    %122 = vector.shape_cast %21 : vector<48x1xi1> to vector<48x1xi1>
    %123 = vector.broadcast %122 : vector<48x1xi1> to vector<48x8xi1>
    %124 = vector.broadcast %cst_72 : f32 to vector<48x8xf32>
    %125 = arith.select %123, %121, %124 : vector<48x8xi1>, vector<48x8xf32>
    %126 = arith.truncf %125 : vector<48x8xf32> to vector<48x8xbf16>
    %127 = tpu.concatenate %119, %120, %126 in 1 : vector<48x8xbf16>, vector<48x8xbf16>, vector<48x8xbf16> -> vector<48x24xbf16>
    %c1_73 = arith.constant 1 : index
    %c0_74 = arith.constant 0 : index
    %c0_75 = arith.constant 0 : index
    %128 = vector.load %arg6[%c1_73, %c0_74, %c0_75] : memref<3x24x8xbf16, #tpu.memory_space<vmem>>, vector<1x24x8xbf16>
    %129 = vector.shape_cast %128 : vector<1x24x8xbf16> to vector<24x8xbf16>
    %cst_76 = arith.constant dense<0.000000e+00> : vector<48x8xf32>
    %130 = tpu.matmul %127, %129, %cst_76 {dimension_numbers = #tpu.dot_dimension_numbers<[1], [0], [0], [1], [0, 0, 1, 1], [], []>} : vector<48x24xbf16>, vector<24x8xbf16>, vector<48x8xf32> -> vector<48x8xf32>
    %c1_77 = arith.constant 1 : index
    %c0_78 = arith.constant 0 : index
    %c0_79 = arith.constant 0 : index
    %131 = vector.load %arg7[%c1_77, %c0_78, %c0_79] : memref<3x1x8xf32, #tpu.memory_space<vmem>>, vector<1x1x8xf32>
    %132 = vector.shape_cast %131 : vector<1x1x8xf32> to vector<1x8xf32>
    %133 = vector.broadcast %132 : vector<1x8xf32> to vector<48x8xf32>
    %134 = arith.addf %130, %133 : vector<48x8xf32>
    %cst_80 = arith.constant 0.000000e+00 : f32
    %135 = vector.broadcast %cst_80 : f32 to vector<48x8xf32>
    %136 = arith.maximumf %134, %135 : vector<48x8xf32>
    %c1_81 = arith.constant 1 : index
    %c0_82 = arith.constant 0 : index
    %c0_83 = arith.constant 0 : index
    %137 = vector.load %arg8[%c1_81, %c0_82, %c0_83] : memref<3x1x8xf32, #tpu.memory_space<vmem>>, vector<1x1x8xf32>
    %138 = vector.shape_cast %137 : vector<1x1x8xf32> to vector<1x8xf32>
    %139 = vector.broadcast %138 : vector<1x8xf32> to vector<48x8xf32>
    %140 = arith.mulf %136, %139 : vector<48x8xf32>
    %c1_84 = arith.constant 1 : index
    %c0_85 = arith.constant 0 : index
    %c0_86 = arith.constant 0 : index
    %141 = vector.load %arg9[%c1_84, %c0_85, %c0_86] : memref<3x1x8xf32, #tpu.memory_space<vmem>>, vector<1x1x8xf32>
    %142 = vector.shape_cast %141 : vector<1x1x8xf32> to vector<1x8xf32>
    %143 = vector.broadcast %142 : vector<1x8xf32> to vector<48x8xf32>
    %144 = arith.addf %140, %143 : vector<48x8xf32>
    %145 = arith.truncf %144 : vector<48x8xf32> to vector<48x8xbf16>
    %c2_87 = arith.constant 2 : index
    %c0_88 = arith.constant 0 : index
    %c0_89 = arith.constant 0 : index
    %146 = vector.load %arg10[%c2_87, %c0_88, %c0_89] : memref<4x8x32xbf16, #tpu.memory_space<vmem>>, vector<1x8x32xbf16>
    %147 = vector.shape_cast %146 : vector<1x8x32xbf16> to vector<8x32xbf16>
    %cst_90 = arith.constant dense<0.000000e+00> : vector<48x32xf32>
    %148 = tpu.matmul %145, %147, %cst_90 {dimension_numbers = #tpu.dot_dimension_numbers<[1], [0], [0], [1], [0, 0, 1, 1], [], []>} : vector<48x8xbf16>, vector<8x32xbf16>, vector<48x32xf32> -> vector<48x32xf32>
    %149 = arith.addf %95, %148 : vector<48x32xf32>
    %c3 = arith.constant 3 : index
    %c0_91 = arith.constant 0 : index
    %c0_92 = arith.constant 0 : index
    %150 = vector.load %arg2[%c3, %c0_91, %c0_92] : memref<4x32x8xbf16, #tpu.memory_space<vmem>>, vector<1x32x8xbf16>
    %151 = vector.shape_cast %150 : vector<1x32x8xbf16> to vector<32x8xbf16>
    %cst_93 = arith.constant dense<0.000000e+00> : vector<48x8xf32>
    %152 = tpu.matmul %0, %151, %cst_93 {dimension_numbers = #tpu.dot_dimension_numbers<[1], [0], [0], [1], [0, 0, 1, 1], [], []>} : vector<48x32xbf16>, vector<32x8xbf16>, vector<48x8xf32> -> vector<48x8xf32>
    %c3_94 = arith.constant 3 : index
    %c0_95 = arith.constant 0 : index
    %c0_96 = arith.constant 0 : index
    %153 = vector.load %arg3[%c3_94, %c0_95, %c0_96] : memref<4x1x8xf32, #tpu.memory_space<vmem>>, vector<1x1x8xf32>
    %154 = vector.shape_cast %153 : vector<1x1x8xf32> to vector<1x8xf32>
    %155 = vector.broadcast %154 : vector<1x8xf32> to vector<48x8xf32>
    %156 = arith.addf %152, %155 : vector<48x8xf32>
    %cst_97 = arith.constant 0.000000e+00 : f32
    %157 = vector.broadcast %cst_97 : f32 to vector<48x8xf32>
    %158 = arith.maximumf %156, %157 : vector<48x8xf32>
    %c3_98 = arith.constant 3 : index
    %c0_99 = arith.constant 0 : index
    %c0_100 = arith.constant 0 : index
    %159 = vector.load %arg4[%c3_98, %c0_99, %c0_100] : memref<4x1x8xf32, #tpu.memory_space<vmem>>, vector<1x1x8xf32>
    %160 = vector.shape_cast %159 : vector<1x1x8xf32> to vector<1x8xf32>
    %161 = vector.broadcast %160 : vector<1x8xf32> to vector<48x8xf32>
    %162 = arith.mulf %158, %161 : vector<48x8xf32>
    %c3_101 = arith.constant 3 : index
    %c0_102 = arith.constant 0 : index
    %c0_103 = arith.constant 0 : index
    %163 = vector.load %arg5[%c3_101, %c0_102, %c0_103] : memref<4x1x8xf32, #tpu.memory_space<vmem>>, vector<1x1x8xf32>
    %164 = vector.shape_cast %163 : vector<1x1x8xf32> to vector<1x8xf32>
    %165 = vector.broadcast %164 : vector<1x8xf32> to vector<48x8xf32>
    %166 = arith.addf %162, %165 : vector<48x8xf32>
    %167 = arith.addf %166, %144 : vector<48x8xf32>
    %c1_i32_104 = arith.constant 1 : i32
    %168 = tpu.dynamic_rotate %167 by %c1_i32_104 dim 0 : vector<48x8xf32>, i32 -> vector<48x8xf32>
    %cst_105 = arith.constant 0.000000e+00 : f32
    %169 = vector.shape_cast %19 : vector<48x1xi1> to vector<48x1xi1>
    %170 = vector.broadcast %169 : vector<48x1xi1> to vector<48x8xi1>
    %171 = vector.broadcast %cst_105 : f32 to vector<48x8xf32>
    %172 = arith.select %170, %168, %171 : vector<48x8xi1>, vector<48x8xf32>
    %173 = arith.truncf %172 : vector<48x8xf32> to vector<48x8xbf16>
    %174 = arith.truncf %167 : vector<48x8xf32> to vector<48x8xbf16>
    %c47_i32_106 = arith.constant 47 : i32
    %175 = tpu.dynamic_rotate %167 by %c47_i32_106 dim 0 : vector<48x8xf32>, i32 -> vector<48x8xf32>
    %cst_107 = arith.constant 0.000000e+00 : f32
    %176 = vector.shape_cast %21 : vector<48x1xi1> to vector<48x1xi1>
    %177 = vector.broadcast %176 : vector<48x1xi1> to vector<48x8xi1>
    %178 = vector.broadcast %cst_107 : f32 to vector<48x8xf32>
    %179 = arith.select %177, %175, %178 : vector<48x8xi1>, vector<48x8xf32>
    %180 = arith.truncf %179 : vector<48x8xf32> to vector<48x8xbf16>
    %181 = tpu.concatenate %173, %174, %180 in 1 : vector<48x8xbf16>, vector<48x8xbf16>, vector<48x8xbf16> -> vector<48x24xbf16>
    %c2_108 = arith.constant 2 : index
    %c0_109 = arith.constant 0 : index
    %c0_110 = arith.constant 0 : index
    %182 = vector.load %arg6[%c2_108, %c0_109, %c0_110] : memref<3x24x8xbf16, #tpu.memory_space<vmem>>, vector<1x24x8xbf16>
    %183 = vector.shape_cast %182 : vector<1x24x8xbf16> to vector<24x8xbf16>
    %cst_111 = arith.constant dense<0.000000e+00> : vector<48x8xf32>
    %184 = tpu.matmul %181, %183, %cst_111 {dimension_numbers = #tpu.dot_dimension_numbers<[1], [0], [0], [1], [0, 0, 1, 1], [], []>} : vector<48x24xbf16>, vector<24x8xbf16>, vector<48x8xf32> -> vector<48x8xf32>
    %c2_112 = arith.constant 2 : index
    %c0_113 = arith.constant 0 : index
    %c0_114 = arith.constant 0 : index
    %185 = vector.load %arg7[%c2_112, %c0_113, %c0_114] : memref<3x1x8xf32, #tpu.memory_space<vmem>>, vector<1x1x8xf32>
    %186 = vector.shape_cast %185 : vector<1x1x8xf32> to vector<1x8xf32>
    %187 = vector.broadcast %186 : vector<1x8xf32> to vector<48x8xf32>
    %188 = arith.addf %184, %187 : vector<48x8xf32>
    %cst_115 = arith.constant 0.000000e+00 : f32
    %189 = vector.broadcast %cst_115 : f32 to vector<48x8xf32>
    %190 = arith.maximumf %188, %189 : vector<48x8xf32>
    %c2_116 = arith.constant 2 : index
    %c0_117 = arith.constant 0 : index
    %c0_118 = arith.constant 0 : index
    %191 = vector.load %arg8[%c2_116, %c0_117, %c0_118] : memref<3x1x8xf32, #tpu.memory_space<vmem>>, vector<1x1x8xf32>
    %192 = vector.shape_cast %191 : vector<1x1x8xf32> to vector<1x8xf32>
    %193 = vector.broadcast %192 : vector<1x8xf32> to vector<48x8xf32>
    %194 = arith.mulf %190, %193 : vector<48x8xf32>
    %c2_119 = arith.constant 2 : index
    %c0_120 = arith.constant 0 : index
    %c0_121 = arith.constant 0 : index
    %195 = vector.load %arg9[%c2_119, %c0_120, %c0_121] : memref<3x1x8xf32, #tpu.memory_space<vmem>>, vector<1x1x8xf32>
    %196 = vector.shape_cast %195 : vector<1x1x8xf32> to vector<1x8xf32>
    %197 = vector.broadcast %196 : vector<1x8xf32> to vector<48x8xf32>
    %198 = arith.addf %194, %197 : vector<48x8xf32>
    %199 = arith.truncf %198 : vector<48x8xf32> to vector<48x8xbf16>
    %c3_122 = arith.constant 3 : index
    %c0_123 = arith.constant 0 : index
    %c0_124 = arith.constant 0 : index
    %200 = vector.load %arg10[%c3_122, %c0_123, %c0_124] : memref<4x8x32xbf16, #tpu.memory_space<vmem>>, vector<1x8x32xbf16>
    %201 = vector.shape_cast %200 : vector<1x8x32xbf16> to vector<8x32xbf16>
    %cst_125 = arith.constant dense<0.000000e+00> : vector<48x32xf32>
    %202 = tpu.matmul %199, %201, %cst_125 {dimension_numbers = #tpu.dot_dimension_numbers<[1], [0], [0], [1], [0, 0, 1, 1], [], []>} : vector<48x8xbf16>, vector<8x32xbf16>, vector<48x32xf32> -> vector<48x32xf32>
    %203 = arith.addf %149, %202 : vector<48x32xf32>
    %c0_126 = arith.constant 0 : index
    %c0_127 = arith.constant 0 : index
    %204 = vector.load %arg11[%c0_126, %c0_127] : memref<1x32xf32, #tpu.memory_space<vmem>>, vector<1x32xf32>
    %205 = vector.broadcast %204 : vector<1x32xf32> to vector<48x32xf32>
    %206 = arith.addf %203, %205 : vector<48x32xf32>
    %cst_128 = arith.constant 0.000000e+00 : f32
    %207 = vector.broadcast %cst_128 : f32 to vector<48x32xf32>
    %208 = arith.maximumf %206, %207 : vector<48x32xf32>
    %c0_129 = arith.constant 0 : index
    %c0_130 = arith.constant 0 : index
    %209 = vector.load %arg12[%c0_129, %c0_130] : memref<1x32xf32, #tpu.memory_space<vmem>>, vector<1x32xf32>
    %210 = vector.broadcast %209 : vector<1x32xf32> to vector<48x32xf32>
    %211 = arith.mulf %208, %210 : vector<48x32xf32>
    %c0_131 = arith.constant 0 : index
    %c0_132 = arith.constant 0 : index
    %212 = vector.load %arg13[%c0_131, %c0_132] : memref<1x32xf32, #tpu.memory_space<vmem>>, vector<1x32xf32>
    %213 = vector.broadcast %212 : vector<1x32xf32> to vector<48x32xf32>
    %214 = arith.addf %211, %213 : vector<48x32xf32>
    %215 = vector.shape_cast %214 : vector<48x32xf32> to vector<2x24x32xf32>
    %cst_133 = arith.constant dense<0.000000e+00> : vector<2x32xf32>
    %216 = vector.multi_reduction <add>, %215, %cst_133 [1] : vector<2x24x32xf32> to vector<2x32xf32>
    %cst_134 = arith.constant 2.400000e+01 : f32
    %217 = vector.broadcast %cst_134 : f32 to vector<2x32xf32>
    %218 = arith.divf %216, %217 : vector<2x32xf32>
    %219 = arith.truncf %218 : vector<2x32xf32> to vector<2x32xbf16>
    %c0_135 = arith.constant 0 : index
    %c0_136 = arith.constant 0 : index
    %220 = vector.load %arg14[%c0_135, %c0_136] : memref<32x16xbf16, #tpu.memory_space<vmem>>, vector<32x16xbf16>
    %cst_137 = arith.constant dense<0.000000e+00> : vector<2x16xf32>
    %221 = tpu.matmul %219, %220, %cst_137 {dimension_numbers = #tpu.dot_dimension_numbers<[1], [0], [0], [1], [0, 0, 1, 1], [], []>} : vector<2x32xbf16>, vector<32x16xbf16>, vector<2x16xf32> -> vector<2x16xf32>
    %c0_138 = arith.constant 0 : index
    %c0_139 = arith.constant 0 : index
    %222 = vector.load %arg15[%c0_138, %c0_139] : memref<1x16xf32, #tpu.memory_space<vmem>>, vector<1x16xf32>
    %223 = vector.broadcast %222 : vector<1x16xf32> to vector<2x16xf32>
    %224 = arith.addf %221, %223 : vector<2x16xf32>
    %cst_140 = arith.constant 0.000000e+00 : f32
    %225 = vector.broadcast %cst_140 : f32 to vector<2x16xf32>
    %226 = arith.maximumf %224, %225 : vector<2x16xf32>
    %227 = arith.truncf %226 : vector<2x16xf32> to vector<2x16xbf16>
    %c0_141 = arith.constant 0 : index
    %c0_142 = arith.constant 0 : index
    %228 = vector.load %arg16[%c0_141, %c0_142] : memref<16x32xbf16, #tpu.memory_space<vmem>>, vector<16x32xbf16>
    %cst_143 = arith.constant dense<0.000000e+00> : vector<2x32xf32>
    %229 = tpu.matmul %227, %228, %cst_143 {dimension_numbers = #tpu.dot_dimension_numbers<[1], [0], [0], [1], [0, 0, 1, 1], [], []>} : vector<2x16xbf16>, vector<16x32xbf16>, vector<2x32xf32> -> vector<2x32xf32>
    %c0_144 = arith.constant 0 : index
    %c0_145 = arith.constant 0 : index
    %230 = vector.load %arg17[%c0_144, %c0_145] : memref<1x32xf32, #tpu.memory_space<vmem>>, vector<1x32xf32>
    %231 = vector.broadcast %230 : vector<1x32xf32> to vector<2x32xf32>
    %232 = arith.addf %229, %231 : vector<2x32xf32>
    %233 = arith.negf %232 : vector<2x32xf32>
    %234 = math.exp %233 : vector<2x32xf32>
    %cst_146 = arith.constant 1.000000e+00 : f32
    %235 = vector.broadcast %cst_146 : f32 to vector<2x32xf32>
    %236 = arith.addf %235, %234 : vector<2x32xf32>
    %237 = arith.divf %235, %236 : vector<2x32xf32>
    %238 = vector.shape_cast %237 : vector<2x32xf32> to vector<2x1x32xf32>
    %239 = vector.broadcast %238 : vector<2x1x32xf32> to vector<2x24x32xf32>
    %240 = arith.mulf %215, %239 : vector<2x24x32xf32>
    %241 = vector.shape_cast %240 : vector<2x24x32xf32> to vector<48x32xf32>
    %242 = arith.extf %0 : vector<48x32xbf16> to vector<48x32xf32>
    %243 = arith.addf %241, %242 : vector<48x32xf32>
    %244 = arith.truncf %243 : vector<48x32xf32> to vector<48x32xbf16>
    %c0_147 = arith.constant 0 : index
    %c0_148 = arith.constant 0 : index
    %245 = vector.load %arg18[%c0_147, %c0_148] : memref<48x32xbf16, #tpu.memory_space<vmem>>, vector<48x32xbf16>
    tpu.vector_store %arg18[%c0_147, %c0_148], %244 {strides = array<i32>} : memref<48x32xbf16, #tpu.memory_space<vmem>>, vector<48x32xbf16>,
    return
  }
  func.func @transform_0(%arg0: i32) -> (i32, i32) {
    %c0_i32 = arith.constant 0 : i32
    %c0_i32_0 = arith.constant 0 : i32
    return %arg0, %c0_i32 : i32, i32
  }
  func.func @transform_1(%arg0: i32) -> (i32, i32, i32) {
    %c0_i32 = arith.constant 0 : i32
    %c0_i32_0 = arith.constant 0 : i32
    %c0_i32_1 = arith.constant 0 : i32
    %c0_i32_2 = arith.constant 0 : i32
    return %c0_i32, %c0_i32_0, %c0_i32_1 : i32, i32, i32
  }
  func.func @transform_2(%arg0: i32) -> (i32, i32, i32) {
    %c0_i32 = arith.constant 0 : i32
    %c0_i32_0 = arith.constant 0 : i32
    %c0_i32_1 = arith.constant 0 : i32
    %c0_i32_2 = arith.constant 0 : i32
    return %c0_i32, %c0_i32_0, %c0_i32_1 : i32, i32, i32
  }
  func.func @transform_3(%arg0: i32) -> (i32, i32, i32) {
    %c0_i32 = arith.constant 0 : i32
    %c0_i32_0 = arith.constant 0 : i32
    %c0_i32_1 = arith.constant 0 : i32
    %c0_i32_2 = arith.constant 0 : i32
    return %c0_i32, %c0_i32_0, %c0_i32_1 : i32, i32, i32
  }
  func.func @transform_4(%arg0: i32) -> (i32, i32, i32) {
    %c0_i32 = arith.constant 0 : i32
    %c0_i32_0 = arith.constant 0 : i32
    %c0_i32_1 = arith.constant 0 : i32
    %c0_i32_2 = arith.constant 0 : i32
    return %c0_i32, %c0_i32_0, %c0_i32_1 : i32, i32, i32
  }
  func.func @transform_5(%arg0: i32) -> (i32, i32, i32) {
    %c0_i32 = arith.constant 0 : i32
    %c0_i32_0 = arith.constant 0 : i32
    %c0_i32_1 = arith.constant 0 : i32
    %c0_i32_2 = arith.constant 0 : i32
    return %c0_i32, %c0_i32_0, %c0_i32_1 : i32, i32, i32
  }
  func.func @transform_6(%arg0: i32) -> (i32, i32, i32) {
    %c0_i32 = arith.constant 0 : i32
    %c0_i32_0 = arith.constant 0 : i32
    %c0_i32_1 = arith.constant 0 : i32
    %c0_i32_2 = arith.constant 0 : i32
    return %c0_i32, %c0_i32_0, %c0_i32_1 : i32, i32, i32
  }
  func.func @transform_7(%arg0: i32) -> (i32, i32, i32) {
    %c0_i32 = arith.constant 0 : i32
    %c0_i32_0 = arith.constant 0 : i32
    %c0_i32_1 = arith.constant 0 : i32
    %c0_i32_2 = arith.constant 0 : i32
    return %c0_i32, %c0_i32_0, %c0_i32_1 : i32, i32, i32
  }
  func.func @transform_8(%arg0: i32) -> (i32, i32, i32) {
    %c0_i32 = arith.constant 0 : i32
    %c0_i32_0 = arith.constant 0 : i32
    %c0_i32_1 = arith.constant 0 : i32
    %c0_i32_2 = arith.constant 0 : i32
    return %c0_i32, %c0_i32_0, %c0_i32_1 : i32, i32, i32
  }
  func.func @transform_9(%arg0: i32) -> (i32, i32, i32) {
    %c0_i32 = arith.constant 0 : i32
    %c0_i32_0 = arith.constant 0 : i32
    %c0_i32_1 = arith.constant 0 : i32
    %c0_i32_2 = arith.constant 0 : i32
    return %c0_i32, %c0_i32_0, %c0_i32_1 : i32, i32, i32
  }
  func.func @transform_10(%arg0: i32) -> (i32, i32) {
    %c0_i32 = arith.constant 0 : i32
    %c0_i32_0 = arith.constant 0 : i32
    %c0_i32_1 = arith.constant 0 : i32
    return %c0_i32, %c0_i32_0 : i32, i32
  }
  func.func @transform_11(%arg0: i32) -> (i32, i32) {
    %c0_i32 = arith.constant 0 : i32
    %c0_i32_0 = arith.constant 0 : i32
    %c0_i32_1 = arith.constant 0 : i32
    return %c0_i32, %c0_i32_0 : i32, i32
  }
  func.func @transform_12(%arg0: i32) -> (i32, i32) {
    %c0_i32 = arith.constant 0 : i32
    %c0_i32_0 = arith.constant 0 : i32
    %c0_i32_1 = arith.constant 0 : i32
    return %c0_i32, %c0_i32_0 : i32, i32
  }
  func.func @transform_13(%arg0: i32) -> (i32, i32) {
    %c0_i32 = arith.constant 0 : i32
    %c0_i32_0 = arith.constant 0 : i32
    %c0_i32_1 = arith.constant 0 : i32
    return %c0_i32, %c0_i32_0 : i32, i32
  }
  func.func @transform_14(%arg0: i32) -> (i32, i32) {
    %c0_i32 = arith.constant 0 : i32
    %c0_i32_0 = arith.constant 0 : i32
    %c0_i32_1 = arith.constant 0 : i32
    return %c0_i32, %c0_i32_0 : i32, i32
  }
  func.func @transform_15(%arg0: i32) -> (i32, i32) {
    %c0_i32 = arith.constant 0 : i32
    %c0_i32_0 = arith.constant 0 : i32
    %c0_i32_1 = arith.constant 0 : i32
    return %c0_i32, %c0_i32_0 : i32, i32
  }
  func.func @transform_16(%arg0: i32) -> (i32, i32) {
    %c0_i32 = arith.constant 0 : i32
    %c0_i32_0 = arith.constant 0 : i32
    %c0_i32_1 = arith.constant 0 : i32
    return %c0_i32, %c0_i32_0 : i32, i32
  }
  func.func @transform_17(%arg0: i32) -> (i32, i32) {
    %c0_i32 = arith.constant 0 : i32
    %c0_i32_0 = arith.constant 0 : i32
    return %arg0, %c0_i32 : i32, i32
  }
}

</mosaic_0001>

<llo_original>
// kernel: tpu_custom_call.1
$region0: #{tpu_custom_call.1}
  #allocation0 [shape = 'u32[]', space=smem, size = 0x4, offset = 0x4, fixed_abs, tag = 'smem constant byte address 0x4 - core index']
  #allocation1 [shape = 'u32[144,128]{1,0:T(1,128)}', space=vmem, size = 0x12000, scoped, tag = 'internal scratch']
  %s0 = inlined_call_operand.vmem [shape: bf16[96,32], index: 0, kind: input, shape index: {}]
  %s1 = inlined_call_operand.vmem [shape: bf16[4,32,8], index: 1, kind: input, shape index: {}]
  %s2 = inlined_call_operand.vmem [shape: f32[4,1,8], index: 2, kind: input, shape index: {}]
  %s3 = inlined_call_operand.vmem [shape: f32[4,1,8], index: 3, kind: input, shape index: {}]
  %s4 = inlined_call_operand.vmem [shape: f32[4,1,8], index: 4, kind: input, shape index: {}]
  %s5 = inlined_call_operand.vmem [shape: bf16[3,24,8], index: 5, kind: input, shape index: {}]
  %s6 = inlined_call_operand.vmem [shape: f32[3,1,8], index: 6, kind: input, shape index: {}]
  %s7 = inlined_call_operand.vmem [shape: f32[3,1,8], index: 7, kind: input, shape index: {}]
  %s8 = inlined_call_operand.vmem [shape: f32[3,1,8], index: 8, kind: input, shape index: {}]
  %s9 = inlined_call_operand.vmem [shape: bf16[4,8,32], index: 9, kind: input, shape index: {}]
  %s10 = inlined_call_operand.vmem [shape: f32[1,32], index: 10, kind: input, shape index: {}]
  %s11 = inlined_call_operand.vmem [shape: f32[1,32], index: 11, kind: input, shape index: {}]
  %s12 = inlined_call_operand.vmem [shape: f32[1,32], index: 12, kind: input, shape index: {}]
  %s13 = inlined_call_operand.vmem [shape: bf16[32,16], index: 13, kind: input, shape index: {}]
  %s14 = inlined_call_operand.vmem [shape: f32[1,16], index: 14, kind: input, shape index: {}]
  %s15 = inlined_call_operand.vmem [shape: bf16[16,32], index: 15, kind: input, shape index: {}]
  %s16 = inlined_call_operand.vmem [shape: f32[1,32], index: 16, kind: input, shape index: {}]
  %s17 = inlined_call_operand.vmem [shape: bf16[96,32], index: 17, kind: output, shape index: {}]
  %s18 = sld [smem:[#allocation0]]
  $region101: #{tpu_custom_call.1} parent=0
    _
  %s20 = ssub.s32 1, %s18
  %s21 = scalar_select 0, %s20, %s18
  loop: start=0, step=1, limit=4
  $region2: #{tpu_custom_call.1} parent=0 // loop_pre_header
    _
  $region3: #{tpu_custom_call.1} parent=0 // loop_header
    %s23 = sphi 0, %s27
    %p24 = scmp.ge.s32.totalorder %s23, 4
    %s33 = sphi 0, %s35
    %s36 = sphi 0, %s33
    %s37 = sphi 0, %s36
    %s53 = sphi 0, %s37
    %s57 = sphi 0, %s57
    %s59 = sphi 0, %s57
    %s60 = sphi 0, %s59
    %s74 = sphi 0, %s60
    %s78 = sphi 0, %s78
    %s80 = sphi 0, %s78
    %s81 = sphi 0, %s80
    %s95 = sphi 0, %s81
    %s99 = sphi 0, %s99
    %s101 = sphi 0, %s99
    %s102 = sphi 0, %s101
    %s116 = sphi 0, %s102
    %s120 = sphi 0, %s120
    %s122 = sphi 0, %s120
    %s123 = sphi 0, %s122
    %s137 = sphi 0, %s123
    %s141 = sphi 0, %s141
    %s143 = sphi 0, %s141
    %s144 = sphi 0, %s143
    %s158 = sphi 0, %s144
    %s162 = sphi 0, %s162
    %s164 = sphi 0, %s162
    %s165 = sphi 0, %s164
    %s179 = sphi 0, %s165
    %s183 = sphi 0, %s183
    %s185 = sphi 0, %s183
    %s186 = sphi 0, %s185
    %s200 = sphi 0, %s186
    %s204 = sphi 0, %s204
    %s206 = sphi 0, %s204
    %s207 = sphi 0, %s206
    %s221 = sphi 0, %s207
    %s225 = sphi 0, %s225
    %s227 = sphi 0, %s225
    %s228 = sphi 0, %s227
    %s242 = sphi 0, %s228
    %s246 = sphi 0, %s246
    %s248 = sphi 0, %s246
    %s249 = sphi 0, %s248
    %s263 = sphi 0, %s249
    %s267 = sphi 0, %s267
    %s269 = sphi 0, %s267
    %s270 = sphi 0, %s269
    %s284 = sphi 0, %s270
    %s288 = sphi 0, %s288
    %s290 = sphi 0, %s288
    %s291 = sphi 0, %s290
    %s305 = sphi 0, %s291
    %s309 = sphi 0, %s309
    %s311 = sphi 0, %s309
    %s312 = sphi 0, %s311
    %s326 = sphi 0, %s312
    %s330 = sphi 0, %s330
    %s332 = sphi 0, %s330
    %s333 = sphi 0, %s332
    %s347 = sphi 0, %s333
    %s351 = sphi 0, %s351
    %s353 = sphi 0, %s351
    %s354 = sphi 0, %s353
    %s368 = sphi 0, %s354
    %s372 = sphi 0, %s372
    %s374 = sphi 0, %s372
    %s375 = sphi 0, %s374
    %s389 = sphi 0, %s375
    %s395 = sphi 0, %s397
    %s398 = sphi 0, %s395
    %s399 = sphi 0, %s398
    %s415 = sphi 0, %s399
  $region4: #{tpu_custom_call.1} parent=0 // loop_header_branch
    %26 = sbr.rel (%p24) target = $region8
  $region5: #{tpu_custom_call.1} parent=0 // loop_body
    %s28 = ssub.s32 %s23, 1
    %s29 = ssub.s32 %s23, 2
    %s30 = sadd.s32 %s23, 1
    %s31 = ssub.s32 %s23, %s30
    %p32 = scmp.eq.s32.totalorder %s31, 0
    %s34 = sadd.s32 %s33, 1
    %s35 = scalar_select %p32, %s33, %s34
    %p38 = pneg %p32
    %p39 = scmp.eq.s32.totalorder %s23, 1
    %p40 = por %p38, %p39
    %p41 = scmp.ne.s32.totalorder %s33, %s36
    %p42 = scmp.eq.s32.totalorder %s23, 0
    %p43 = por %p41, %p42
    %p44 = scmp.ne.s32.totalorder %s33, %s36
    %p45 = scmp.eq.s32.totalorder %s28, 1
    %p46 = por %p44, %p45
    %p47 = scmp.ne.s32.totalorder %s36, %s37
    %p48 = scmp.eq.s32.totalorder %s28, 0
    %p49 = por %p47, %p48
    %p50 = scmp.ne.s32.totalorder %s36, %s37
    %p51 = scmp.eq.s32.totalorder %s29, 1
    %p52 = por %p50, %p51
    %p54 = scmp.ne.s32.totalorder %s37, %s53
    %p55 = scmp.eq.s32.totalorder %s29, 0
    %p56 = por %p54, %p55
    %s58 = sadd.s32 %s57, 1
    %p61 = scmp.eq.s32.totalorder %s23, 1
    %p62 = scmp.ne.s32.totalorder %s57, %s59
    %p63 = scmp.eq.s32.totalorder %s23, 0
    %p64 = por %p62, %p63
    %p65 = scmp.ne.s32.totalorder %s57, %s59
    %p66 = scmp.eq.s32.totalorder %s28, 1
    %p67 = por %p65, %p66
    %p68 = scmp.ne.s32.totalorder %s59, %s60
    %p69 = scmp.eq.s32.totalorder %s28, 0
    %p70 = por %p68, %p69
    %p71 = scmp.ne.s32.totalorder %s59, %s60
    %p72 = scmp.eq.s32.totalorder %s29, 1
    %p73 = por %p71, %p72
    %p75 = scmp.ne.s32.totalorder %s60, %s74
    %p76 = scmp.eq.s32.totalorder %s29, 0
    %p77 = por %p75, %p76
    %s79 = sadd.s32 %s78, 1
    %p82 = scmp.eq.s32.totalorder %s23, 1
    %p83 = scmp.ne.s32.totalorder %s78, %s80
    %p84 = scmp.eq.s32.totalorder %s23, 0
    %p85 = por %p83, %p84
    %p86 = scmp.ne.s32.totalorder %s78, %s80
    %p87 = scmp.eq.s32.totalorder %s28, 1
    %p88 = por %p86, %p87
    %p89 = scmp.ne.s32.totalorder %s80, %s81
    %p90 = scmp.eq.s32.totalorder %s28, 0
    %p91 = por %p89, %p90
    %p92 = scmp.ne.s32.totalorder %s80, %s81
    %p93 = scmp.eq.s32.totalorder %s29, 1
    %p94 = por %p92, %p93
    %p96 = scmp.ne.s32.totalorder %s81, %s95
    %p97 = scmp.eq.s32.totalorder %s29, 0
    %p98 = por %p96, %p97
    %s100 = sadd.s32 %s99, 1
    %p103 = scmp.eq.s32.totalorder %s23, 1
    %p104 = scmp.ne.s32.totalorder %s99, %s101
    %p105 = scmp.eq.s32.totalorder %s23, 0
    %p106 = por %p104, %p105
    %p107 = scmp.ne.s32.totalorder %s99, %s101
    %p108 = scmp.eq.s32.totalorder %s28, 1
    %p109 = por %p107, %p108
    %p110 = scmp.ne.s32.totalorder %s101, %s102
    %p111 = scmp.eq.s32.totalorder %s28, 0
    %p112 = por %p110, %p111
    %p113 = scmp.ne.s32.totalorder %s101, %s102
    %p114 = scmp.eq.s32.totalorder %s29, 1
    %p115 = por %p113, %p114
    %p117 = scmp.ne.s32.totalorder %s102, %s116
    %p118 = scmp.eq.s32.totalorder %s29, 0
    %p119 = por %p117, %p118
    %s121 = sadd.s32 %s120, 1
    %p124 = scmp.eq.s32.totalorder %s23, 1
    %p125 = scmp.ne.s32.totalorder %s120, %s122
    %p126 = scmp.eq.s32.totalorder %s23, 0
    %p127 = por %p125, %p126
    %p128 = scmp.ne.s32.totalorder %s120, %s122
    %p129 = scmp.eq.s32.totalorder %s28, 1
    %p130 = por %p128, %p129
    %p131 = scmp.ne.s32.totalorder %s122, %s123
    %p132 = scmp.eq.s32.totalorder %s28, 0
    %p133 = por %p131, %p132
    %p134 = scmp.ne.s32.totalorder %s122, %s123
    %p135 = scmp.eq.s32.totalorder %s29, 1
    %p136 = por %p134, %p135
    %p138 = scmp.ne.s32.totalorder %s123, %s137
    %p139 = scmp.eq.s32.totalorder %s29, 0
    %p140 = por %p138, %p139
    %s142 = sadd.s32 %s141, 1
    %p145 = scmp.eq.s32.totalorder %s23, 1
    %p146 = scmp.ne.s32.totalorder %s141, %s143
    %p147 = scmp.eq.s32.totalorder %s23, 0
    %p148 = por %p146, %p147
    %p149 = scmp.ne.s32.totalorder %s141, %s143
    %p150 = scmp.eq.s32.totalorder %s28, 1
    %p151 = por %p149, %p150
    %p152 = scmp.ne.s32.totalorder %s143, %s144
    %p153 = scmp.eq.s32.totalorder %s28, 0
    %p154 = por %p152, %p153
    %p155 = scmp.ne.s32.totalorder %s143, %s144
    %p156 = scmp.eq.s32.totalorder %s29, 1
    %p157 = por %p155, %p156
    %p159 = scmp.ne.s32.totalorder %s144, %s158
    %p160 = scmp.eq.s32.totalorder %s29, 0
    %p161 = por %p159, %p160
    %s163 = sadd.s32 %s162, 1
    %p166 = scmp.eq.s32.totalorder %s23, 1
    %p167 = scmp.ne.s32.totalorder %s162, %s164
    %p168 = scmp.eq.s32.totalorder %s23, 0
    %p169 = por %p167, %p168
    %p170 = scmp.ne.s32.totalorder %s162, %s164
    %p171 = scmp.eq.s32.totalorder %s28, 1
    %p172 = por %p170, %p171
    %p173 = scmp.ne.s32.totalorder %s164, %s165
    %p174 = scmp.eq.s32.totalorder %s28, 0
    %p175 = por %p173, %p174
    %p176 = scmp.ne.s32.totalorder %s164, %s165
    %p177 = scmp.eq.s32.totalorder %s29, 1
    %p178 = por %p176, %p177
    %p180 = scmp.ne.s32.totalorder %s165, %s179
    %p181 = scmp.eq.s32.totalorder %s29, 0
    %p182 = por %p180, %p181
    %s184 = sadd.s32 %s183, 1
    %p187 = scmp.eq.s32.totalorder %s23, 1
    %p188 = scmp.ne.s32.totalorder %s183, %s185
    %p189 = scmp.eq.s32.totalorder %s23, 0
    %p190 = por %p188, %p189
    %p191 = scmp.ne.s32.totalorder %s183, %s185
    %p192 = scmp.eq.s32.totalorder %s28, 1
    %p193 = por %p191, %p192
    %p194 = scmp.ne.s32.totalorder %s185, %s186
    %p195 = scmp.eq.s32.totalorder %s28, 0
    %p196 = por %p194, %p195
    %p197 = scmp.ne.s32.totalorder %s185, %s186
    %p198 = scmp.eq.s32.totalorder %s29, 1
    %p199 = por %p197, %p198
    %p201 = scmp.ne.s32.totalorder %s186, %s200
    %p202 = scmp.eq.s32.totalorder %s29, 0
    %p203 = por %p201, %p202
    %s205 = sadd.s32 %s204, 1
    %p208 = scmp.eq.s32.totalorder %s23, 1
    %p209 = scmp.ne.s32.totalorder %s204, %s206
    %p210 = scmp.eq.s32.totalorder %s23, 0
    %p211 = por %p209, %p210
    %p212 = scmp.ne.s32.totalorder %s204, %s206
    %p213 = scmp.eq.s32.totalorder %s28, 1
    %p214 = por %p212, %p213
    %p215 = scmp.ne.s32.totalorder %s206, %s207
    %p216 = scmp.eq.s32.totalorder %s28, 0
    %p217 = por %p215, %p216
    %p218 = scmp.ne.s32.totalorder %s206, %s207
    %p219 = scmp.eq.s32.totalorder %s29, 1
    %p220 = por %p218, %p219
    %p222 = scmp.ne.s32.totalorder %s207, %s221
    %p223 = scmp.eq.s32.totalorder %s29, 0
    %p224 = por %p222, %p223
    %s226 = sadd.s32 %s225, 1
    %p229 = scmp.eq.s32.totalorder %s23, 1
    %p230 = scmp.ne.s32.totalorder %s225, %s227
    %p231 = scmp.eq.s32.totalorder %s23, 0
    %p232 = por %p230, %p231
    %p233 = scmp.ne.s32.totalorder %s225, %s227
    %p234 = scmp.eq.s32.totalorder %s28, 1
    %p235 = por %p233, %p234
    %p236 = scmp.ne.s32.totalorder %s227, %s228
    %p237 = scmp.eq.s32.totalorder %s28, 0
    %p238 = por %p236, %p237
    %p239 = scmp.ne.s32.totalorder %s227, %s228
    %p240 = scmp.eq.s32.totalorder %s29, 1
    %p241 = por %p239, %p240
    %p243 = scmp.ne.s32.totalorder %s228, %s242
    %p244 = scmp.eq.s32.totalorder %s29, 0
    %p245 = por %p243, %p244
    %s247 = sadd.s32 %s246, 1
    %p250 = scmp.eq.s32.totalorder %s23, 1
    %p251 = scmp.ne.s32.totalorder %s246, %s248
    %p252 = scmp.eq.s32.totalorder %s23, 0
    %p253 = por %p251, %p252
    %p254 = scmp.ne.s32.totalorder %s246, %s248
    %p255 = scmp.eq.s32.totalorder %s28, 1
    %p256 = por %p254, %p255
    %p257 = scmp.ne.s32.totalorder %s248, %s249
    %p258 = scmp.eq.s32.totalorder %s28, 0
    %p259 = por %p257, %p258
    %p260 = scmp.ne.s32.totalorder %s248, %s249
    %p261 = scmp.eq.s32.totalorder %s29, 1
    %p262 = por %p260, %p261
    %p264 = scmp.ne.s32.totalorder %s249, %s263
    %p265 = scmp.eq.s32.totalorder %s29, 0
    %p266 = por %p264, %p265
    %s268 = sadd.s32 %s267, 1
    %p271 = scmp.eq.s32.totalorder %s23, 1
    %p272 = scmp.ne.s32.totalorder %s267, %s269
    %p273 = scmp.eq.s32.totalorder %s23, 0
    %p274 = por %p272, %p273
    %p275 = scmp.ne.s32.totalorder %s267, %s269
    %p276 = scmp.eq.s32.totalorder %s28, 1
    %p277 = por %p275, %p276
    %p278 = scmp.ne.s32.totalorder %s269, %s270
    %p279 = scmp.eq.s32.totalorder %s28, 0
    %p280 = por %p278, %p279
    %p281 = scmp.ne.s32.totalorder %s269, %s270
    %p282 = scmp.eq.s32.totalorder %s29, 1
    %p283 = por %p281, %p282
    %p285 = scmp.ne.s32.totalorder %s270, %s284
    %p286 = scmp.eq.s32.totalorder %s29, 0
    %p287 = por %p285, %p286
    %s289 = sadd.s32 %s288, 1
    %p292 = scmp.eq.s32.totalorder %s23, 1
    %p293 = scmp.ne.s32.totalorder %s288, %s290
    %p294 = scmp.eq.s32.totalorder %s23, 0
    %p295 = por %p293, %p294
    %p296 = scmp.ne.s32.totalorder %s288, %s290
    %p297 = scmp.eq.s32.totalorder %s28, 1
    %p298 = por %p296, %p297
    %p299 = scmp.ne.s32.totalorder %s290, %s291
    %p300 = scmp.eq.s32.totalorder %s28, 0
    %p301 = por %p299, %p300
    %p302 = scmp.ne.s32.totalorder %s290, %s291
    %p303 = scmp.eq.s32.totalorder %s29, 1
    %p304 = por %p302, %p303
    %p306 = scmp.ne.s32.totalorder %s291, %s305
    %p307 = scmp.eq.s32.totalorder %s29, 0
    %p308 = por %p306, %p307
    %s310 = sadd.s32 %s309, 1
    %p313 = scmp.eq.s32.totalorder %s23, 1
    %p314 = scmp.ne.s32.totalorder %s309, %s311
    %p315 = scmp.eq.s32.totalorder %s23, 0
    %p316 = por %p314, %p315
    %p317 = scmp.ne.s32.totalorder %s309, %s311
    %p318 = scmp.eq.s32.totalorder %s28, 1
    %p319 = por %p317, %p318
    %p320 = scmp.ne.s32.totalorder %s311, %s312
    %p321 = scmp.eq.s32.totalorder %s28, 0
    %p322 = por %p320, %p321
    %p323 = scmp.ne.s32.totalorder %s311, %s312
    %p324 = scmp.eq.s32.totalorder %s29, 1
    %p325 = por %p323, %p324
    %p327 = scmp.ne.s32.totalorder %s312, %s326
    %p328 = scmp.eq.s32.totalorder %s29, 0
    %p329 = por %p327, %p328
    %s331 = sadd.s32 %s330, 1
    %p334 = scmp.eq.s32.totalorder %s23, 1
    %p335 = scmp.ne.s32.totalorder %s330, %s332
    %p336 = scmp.eq.s32.totalorder %s23, 0
    %p337 = por %p335, %p336
    %p338 = scmp.ne.s32.totalorder %s330, %s332
    %p339 = scmp.eq.s32.totalorder %s28, 1
    %p340 = por %p338, %p339
    %p341 = scmp.ne.s32.totalorder %s332, %s333
    %p342 = scmp.eq.s32.totalorder %s28, 0
    %p343 = por %p341, %p342
    %p344 = scmp.ne.s32.totalorder %s332, %s333
    %p345 = scmp.eq.s32.totalorder %s29, 1
    %p346 = por %p344, %p345
    %p348 = scmp.ne.s32.totalorder %s333, %s347
    %p349 = scmp.eq.s32.totalorder %s29, 0
    %p350 = por %p348, %p349
    %s352 = sadd.s32 %s351, 1
    %p355 = scmp.eq.s32.totalorder %s23, 1
    %p356 = scmp.ne.s32.totalorder %s351, %s353
    %p357 = scmp.eq.s32.totalorder %s23, 0
    %p358 = por %p356, %p357
    %p359 = scmp.ne.s32.totalorder %s351, %s353
    %p360 = scmp.eq.s32.totalorder %s28, 1
    %p361 = por %p359, %p360
    %p362 = scmp.ne.s32.totalorder %s353, %s354
    %p363 = scmp.eq.s32.totalorder %s28, 0
    %p364 = por %p362, %p363
    %p365 = scmp.ne.s32.totalorder %s353, %s354
    %p366 = scmp.eq.s32.totalorder %s29, 1
    %p367 = por %p365, %p366
    %p369 = scmp.ne.s32.totalorder %s354, %s368
    %p370 = scmp.eq.s32.totalorder %s29, 0
    %p371 = por %p369, %p370
    %s373 = sadd.s32 %s372, 1
    %p376 = scmp.eq.s32.totalorder %s23, 1
    %p377 = scmp.ne.s32.totalorder %s372, %s374
    %p378 = scmp.eq.s32.totalorder %s23, 0
    %p379 = por %p377, %p378
    %p380 = scmp.ne.s32.totalorder %s372, %s374
    %p381 = scmp.eq.s32.totalorder %s28, 1
    %p382 = por %p380, %p381
    %p383 = scmp.ne.s32.totalorder %s374, %s375
    %p384 = scmp.eq.s32.totalorder %s28, 0
    %p385 = por %p383, %p384
    %p386 = scmp.ne.s32.totalorder %s374, %s375
    %p387 = scmp.eq.s32.totalorder %s29, 1
    %p388 = por %p386, %p387
    %p390 = scmp.ne.s32.totalorder %s375, %s389
    %p391 = scmp.eq.s32.totalorder %s29, 0
    %p392 = por %p390, %p391
    %s393 = ssub.s32 %s23, %s30
    %p394 = scmp.eq.s32.totalorder %s393, 0
    %s396 = sadd.s32 %s395, 1
    %s397 = scalar_select %p394, %s395, %s396
    %p400 = pneg %p394
    %p401 = scmp.eq.s32.totalorder %s23, 1
    %p402 = por %p400, %p401
    %p403 = scmp.ne.s32.totalorder %s395, %s398
    %p404 = scmp.eq.s32.totalorder %s23, 0
    %p405 = por %p403, %p404
    %p406 = scmp.ne.s32.totalorder %s395, %s398
    %p407 = scmp.eq.s32.totalorder %s28, 1
    %p408 = por %p406, %p407
    %p409 = scmp.ne.s32.totalorder %s398, %s399
    %p410 = scmp.eq.s32.totalorder %s28, 0
    %p411 = por %p409, %p410
    %p412 = scmp.ne.s32.totalorder %s398, %s399
    %p413 = scmp.eq.s32.totalorder %s29, 1
    %p414 = por %p412, %p413
    %p416 = scmp.ne.s32.totalorder %s399, %s415
    %p417 = scmp.eq.s32.totalorder %s29, 0
    %p418 = por %p416, %p417
    %p419 = scmp.le.s32.totalorder 1, %s23
    %p420 = scmp.lt.s32.totalorder %s23, 3
    %p421 = pnand %p419, %p420
    %p422 = pneg %p421
    // Predicated region
    $region9: #{tpu_custom_call.1} parent=5 // pred_check
      _
    $region10: #{tpu_custom_call.1} parent=5 // pred_check_branch
      %424 = sbr.rel (%p421) target = $region12
    $region11: #{tpu_custom_call.1} parent=5 // pred_region
      %s425 = ssub.s32 %s23, 1
      // Predicated region
      $region13: #{tpu_custom_call.1} parent=11 // pred_check
        %p426 = pneg %p70
      $region14: #{tpu_custom_call.1} parent=11 // pred_check_branch
        %428 = sbr.rel (%p426) target = $region16
      $region15: #{tpu_custom_call.1} parent=11 // pred_region
        _
      $region16: #{tpu_custom_call.1} parent=11 // pred_fallthru
        _
      // Predicated region
      $region17: #{tpu_custom_call.1} parent=11 // pred_check
        %p429 = pneg %p91
      $region18: #{tpu_custom_call.1} parent=11 // pred_check_branch
        %431 = sbr.rel (%p429) target = $region20
      $region19: #{tpu_custom_call.1} parent=11 // pred_region
        _
      $region20: #{tpu_custom_call.1} parent=11 // pred_fallthru
        _
      // Predicated region
      $region21: #{tpu_custom_call.1} parent=11 // pred_check
        %p432 = pneg %p112
      $region22: #{tpu_custom_call.1} parent=11 // pred_check_branch
        %434 = sbr.rel (%p432) target = $region24
      $region23: #{tpu_custom_call.1} parent=11 // pred_region
        _
      $region24: #{tpu_custom_call.1} parent=11 // pred_fallthru
        _
      // Predicated region
      $region25: #{tpu_custom_call.1} parent=11 // pred_check
        %p435 = pneg %p133
      $region26: #{tpu_custom_call.1} parent=11 // pred_check_branch
        %437 = sbr.rel (%p435) target = $region28
      $region27: #{tpu_custom_call.1} parent=11 // pred_region
        _
      $region28: #{tpu_custom_call.1} parent=11 // pred_fallthru
        _
      // Predicated region
      $region29: #{tpu_custom_call.1} parent=11 // pred_check
        %p438 = pneg %p154
      $region30: #{tpu_custom_call.1} parent=11 // pred_check_branch
        %440 = sbr.rel (%p438) target = $region32
      $region31: #{tpu_custom_call.1} parent=11 // pred_region
        _
      $region32: #{tpu_custom_call.1} parent=11 // pred_fallthru
        _
      // Predicated region
      $region33: #{tpu_custom_call.1} parent=11 // pred_check
        %p441 = pneg %p175
      $region34: #{tpu_custom_call.1} parent=11 // pred_check_branch
        %443 = sbr.rel (%p441) target = $region36
      $region35: #{tpu_custom_call.1} parent=11 // pred_region
        _
      $region36: #{tpu_custom_call.1} parent=11 // pred_fallthru
        _
      // Predicated region
      $region37: #{tpu_custom_call.1} parent=11 // pred_check
        %p444 = pneg %p196
      $region38: #{tpu_custom_call.1} parent=11 // pred_check_branch
        %446 = sbr.rel (%p444) target = $region40
      $region39: #{tpu_custom_call.1} parent=11 // pred_region
        _
      $region40: #{tpu_custom_call.1} parent=11 // pred_fallthru
        _
      // Predicated region
      $region41: #{tpu_custom_call.1} parent=11 // pred_check
        %p447 = pneg %p217
      $region42: #{tpu_custom_call.1} parent=11 // pred_check_branch
        %449 = sbr.rel (%p447) target = $region44
      $region43: #{tpu_custom_call.1} parent=11 // pred_region
        _
      $region44: #{tpu_custom_call.1} parent=11 // pred_fallthru
        _
      // Predicated region
      $region45: #{tpu_custom_call.1} parent=11 // pred_check
        %p450 = pneg %p238
      $region46: #{tpu_custom_call.1} parent=11 // pred_check_branch
        %452 = sbr.rel (%p450) target = $region48
      $region47: #{tpu_custom_call.1} parent=11 // pred_region
        _
      $region48: #{tpu_custom_call.1} parent=11 // pred_fallthru
        _
      // Predicated region
      $region49: #{tpu_custom_call.1} parent=11 // pred_check
        %p453 = pneg %p259
      $region50: #{tpu_custom_call.1} parent=11 // pred_check_branch
        %455 = sbr.rel (%p453) target = $region52
      $region51: #{tpu_custom_call.1} parent=11 // pred_region
        _
      $region52: #{tpu_custom_call.1} parent=11 // pred_fallthru
        _
      // Predicated region
      $region53: #{tpu_custom_call.1} parent=11 // pred_check
        %p456 = pneg %p280
      $region54: #{tpu_custom_call.1} parent=11 // pred_check_branch
        %458 = sbr.rel (%p456) target = $region56
      $region55: #{tpu_custom_call.1} parent=11 // pred_region
        _
      $region56: #{tpu_custom_call.1} parent=11 // pred_fallthru
        _
      // Predicated region
      $region57: #{tpu_custom_call.1} parent=11 // pred_check
        %p459 = pneg %p301
      $region58: #{tpu_custom_call.1} parent=11 // pred_check_branch
        %461 = sbr.rel (%p459) target = $region60
      $region59: #{tpu_custom_call.1} parent=11 // pred_region
        _
      $region60: #{tpu_custom_call.1} parent=11 // pred_fallthru
        _
      // Predicated region
      $region61: #{tpu_custom_call.1} parent=11 // pred_check
        %p462 = pneg %p322
      $region62: #{tpu_custom_call.1} parent=11 // pred_check_branch
        %464 = sbr.rel (%p462) target = $region64
      $region63: #{tpu_custom_call.1} parent=11 // pred_region
        _
      $region64: #{tpu_custom_call.1} parent=11 // pred_fallthru
        _
      // Predicated region
      $region65: #{tpu_custom_call.1} parent=11 // pred_check
        %p465 = pneg %p343
      $region66: #{tpu_custom_call.1} parent=11 // pred_check_branch
        %467 = sbr.rel (%p465) target = $region68
      $region67: #{tpu_custom_call.1} parent=11 // pred_region
        _
      $region68: #{tpu_custom_call.1} parent=11 // pred_fallthru
        _
      // Predicated region
      $region69: #{tpu_custom_call.1} parent=11 // pred_check
        %p468 = pneg %p364
      $region70: #{tpu_custom_call.1} parent=11 // pred_check_branch
        %470 = sbr.rel (%p468) target = $region72
      $region71: #{tpu_custom_call.1} parent=11 // pred_region
        _
      $region72: #{tpu_custom_call.1} parent=11 // pred_fallthru
        _
      // Predicated region
      $region73: #{tpu_custom_call.1} parent=11 // pred_check
        %p471 = pneg %p385
      $region74: #{tpu_custom_call.1} parent=11 // pred_check_branch
        %473 = sbr.rel (%p471) target = $region76
      $region75: #{tpu_custom_call.1} parent=11 // pred_region
        _
      $region76: #{tpu_custom_call.1} parent=11 // pred_fallthru
        _
    $region12: #{tpu_custom_call.1} parent=5 // pred_fallthru
      _
    %p474 = scmp.lt.s32.totalorder %s23, 2
    // Predicated region
    $region77: #{tpu_custom_call.1} parent=5 // pred_check
      %p475 = pneg %p474
    $region78: #{tpu_custom_call.1} parent=5 // pred_check_branch
      %477 = sbr.rel (%p475) target = $region80
    $region79: #{tpu_custom_call.1} parent=5 // pred_region
      // Predicated region
      $region81: #{tpu_custom_call.1} parent=79 // pred_check
        %p478 = pneg %p43
      $region82: #{tpu_custom_call.1} parent=79 // pred_check_branch
        %480 = sbr.rel (%p478) target = $region84
      $region83: #{tpu_custom_call.1} parent=79 // pred_region
        %s481 = smul.u32 6, %s23
        %p482 = scmp.lt.s32.totalorder %s481, 11
        %s483 = scalar_select %p482, %s481, 11
        %s484 = smul.addr %s483, 4
        %s485 = scalar_lea.vmem %s0, %s484
        %s486 = smul.u32 6, %s23
      $region84: #{tpu_custom_call.1} parent=79 // pred_fallthru
        _
    $region80: #{tpu_custom_call.1} parent=5 // pred_fallthru
      _
    %p487 = scmp.le.s32.totalorder 1, %s23
    %p488 = scmp.lt.s32.totalorder %s23, 3
    %p489 = pnand %p487, %p488
    %p490 = pneg %p489
    // Predicated region
    $region85: #{tpu_custom_call.1} parent=5 // pred_check
      _
    $region86: #{tpu_custom_call.1} parent=5 // pred_check_branch
      %492 = sbr.rel (%p489) target = $region88
    $region87: #{tpu_custom_call.1} parent=5 // pred_region
      %s493 = ssub.s32 %s23, 1
      %s494 = smul.u32 6, %s28
      %p495 = scmp.lt.s32.totalorder %s494, 11
      %s496 = scalar_select %p495, %s494, 11
      %s497 = smul.addr %s496, 4
      %s498 = scalar_lea.vmem %s0, %s497
      %p499 = pneg %p49
      %p500 = pneg %p46
      %p501 = pneg %p70
      %p502 = pneg %p67
      %p503 = pneg %p91
      %p504 = pneg %p88
      %p505 = pneg %p112
      %p506 = pneg %p109
      %p507 = pneg %p133
      %p508 = pneg %p130
      %p509 = pneg %p154
      %p510 = pneg %p151
      %p511 = pneg %p175
      %p512 = pneg %p172
      %p513 = pneg %p196
      %p514 = pneg %p193
      %p515 = pneg %p217
      %p516 = pneg %p214
      %p517 = pneg %p238
      %p518 = pneg %p235
      %p519 = pneg %p259
      %p520 = pneg %p256
      %p521 = pneg %p280
      %p522 = pneg %p277
      %p523 = pneg %p301
      %p524 = pneg %p298
      %p525 = pneg %p322
      %p526 = pneg %p319
      %p527 = pneg %p343
      %p528 = pneg %p340
      %p529 = pneg %p364
      %p530 = pneg %p361
      %p531 = pneg %p385
      %p532 = pneg %p382
      %p533 = pneg %p411
      %p534 = pneg %p408
      %s535 = smul.u32 6, %s28
      %p536 = scmp.lt.s32.totalorder %s535, 11
      %s537 = scalar_select %p536, %s535, 11
      %s538 = smul.addr %s537, 4
      %s539 = scalar_lea.vmem %s17, %s538
      %s540 = smul.u32 6, %s28
      %p541 = scmp.lt.s32.totalorder %s540, 11
      %s542 = scalar_select %p541, %s540, 11
      %s543 = smul.addr %s542, 4
      %s544 = scalar_lea.vmem %s0, %s543
      %s545 = smul.u32 6, %s28
      %s546 = smul.u32 6, %s28
      %p547 = scmp.lt.s32.totalorder %s546, 11
      %s548 = scalar_select %p547, %s546, 11
      %s549 = smul.addr %s548, 4
      %s550 = scalar_lea.vmem %s17, %s549
      %s551 = smul.u32 6, %s28
      %v553 = vld [vmem:[%s544] sm:$0xf]
      %v554 = vld [vmem:[%s544 + $0x4] sm:$0xf]
      %v555 = vld [vmem:[%s544 + $0x8] sm:$0xf]
      %v556 = vld [vmem:[%s544 + $0xc] sm:$0xf]
      %v557 = vld [vmem:[%s544 + $0x10] sm:$0xf]
      %v558 = vld [vmem:[%s544 + $0x14] sm:$0xf]
      %v559 = vlaneseq
      %v560 = vshrl.u32 %v559, 7
      %v561 = vadd.s32 %v560, 8
      %v562 = vadd.s32 %v560, 16
      %v563 = vadd.s32 %v560, 24
      %v564 = vadd.s32 %v560, 32
      %v565 = vadd.s32 %v560, 40
      %vm566 = vcmp.lt.s32.totalorder %v560, 0
      %v567 = vsub.s32 0, %v560
      %v568 = vsel %vm566, %v567, %v560
      %v569 = vmul.u32.u64.compose %v568, 2863311531
      %v570 = vextract.low.u32 %v569
      %v571 = vextract.high.u32 %v569
      %v572 = vshrl.u32 %v571, 4
      %v573 = vmul.u32 %v572, 24
      %v574 = vsub.s32 %v568, %v573
      %v575 = vsub.s32 0, %v574
      %v576 = vsel %vm566, %v575, %v574
      %vm577 = vcmp.lt.s32.totalorder %v561, 0
      %v578 = vsub.s32 0, %v561
      %v579 = vsel %vm577, %v578, %v561
      %v580 = vmul.u32.u64.compose %v579, 2863311531
      %v581 = vextract.low.u32 %v580
      %v582 = vextract.high.u32 %v580
      %v583 = vshrl.u32 %v582, 4
      %v584 = vmul.u32 %v583, 24
      %v585 = vsub.s32 %v579, %v584
      %v586 = vsub.s32 0, %v585
      %v587 = vsel %vm577, %v586, %v585
      %vm588 = vcmp.lt.s32.totalorder %v562, 0
      %v589 = vsub.s32 0, %v562
      %v590 = vsel %vm588, %v589, %v562
      %v591 = vmul.u32.u64.compose %v590, 2863311531
      %v592 = vextract.low.u32 %v591
      %v593 = vextract.high.u32 %v591
      %v594 = vshrl.u32 %v593, 4
      %v595 = vmul.u32 %v594, 24
      %v596 = vsub.s32 %v590, %v595
      %v597 = vsub.s32 0, %v596
      %v598 = vsel %vm588, %v597, %v596
      %vm599 = vcmp.lt.s32.totalorder %v563, 0
      %v600 = vsub.s32 0, %v563
      %v601 = vsel %vm599, %v600, %v563
      %v602 = vmul.u32.u64.compose %v601, 2863311531
      %v603 = vextract.low.u32 %v602
      %v604 = vextract.high.u32 %v602
      %v605 = vshrl.u32 %v604, 4
      %v606 = vmul.u32 %v605, 24
      %v607 = vsub.s32 %v601, %v606
      %v608 = vsub.s32 0, %v607
      %v609 = vsel %vm599, %v608, %v607
      %vm610 = vcmp.lt.s32.totalorder %v564, 0
      %v611 = vsub.s32 0, %v564
      %v612 = vsel %vm610, %v611, %v564
      %v613 = vmul.u32.u64.compose %v612, 2863311531
      %v614 = vextract.low.u32 %v613
      %v615 = vextract.high.u32 %v613
      %v616 = vshrl.u32 %v615, 4
      %v617 = vmul.u32 %v616, 24
      %v618 = vsub.s32 %v612, %v617
      %v619 = vsub.s32 0, %v618
      %v620 = vsel %vm610, %v619, %v618
      %vm621 = vcmp.lt.s32.totalorder %v565, 0
      %v622 = vsub.s32 0, %v565
      %v623 = vsel %vm621, %v622, %v565
      %v624 = vmul.u32.u64.compose %v623, 2863311531
      %v625 = vextract.low.u32 %v624
      %v626 = vextract.high.u32 %v624
      %v627 = vshrl.u32 %v626, 4
      %v628 = vmul.u32 %v627, 24
      %v629 = vsub.s32 %v623, %v628
      %v630 = vsub.s32 0, %v629
      %v631 = vsel %vm621, %v630, %v629
      %vm632 = vcmp.ne.s32.totalorder %v576, 0
      %vm633 = vcmp.ne.s32.totalorder %v587, 0
      %vm634 = vcmp.ne.s32.totalorder %v598, 0
      %vm635 = vcmp.ne.s32.totalorder %v609, 0
      %vm636 = vcmp.ne.s32.totalorder %v620, 0
      %vm637 = vcmp.ne.s32.totalorder %v631, 0
      %vm638 = vcmp.lt.s32.totalorder %v576, 0
      %vm639 = vcmp.lt.s32.totalorder %v587, 0
      %vm640 = vcmp.lt.s32.totalorder %v598, 0
      %vm641 = vcmp.lt.s32.totalorder %v609, 0
      %vm642 = vcmp.lt.s32.totalorder %v620, 0
      %vm643 = vcmp.lt.s32.totalorder %v631, 0
      %vm644 = vmand %vm638, %vm632
      %vm645 = vmand %vm639, %vm633
      %vm646 = vmand %vm640, %vm634
      %vm647 = vmand %vm641, %vm635
      %vm648 = vmand %vm642, %vm636
      %vm649 = vmand %vm643, %vm637
      %v650 = vadd.s32 %v576, 24
      %v651 = vadd.s32 %v587, 24
      %v652 = vadd.s32 %v598, 24
      %v653 = vadd.s32 %v609, 24
      %v654 = vadd.s32 %v620, 24
      %v655 = vadd.s32 %v631, 24
      %v656 = vsel %vm644, %v650, %v576
      %v657 = vsel %vm645, %v651, %v587
      %v658 = vsel %vm646, %v652, %v598
      %v659 = vsel %vm647, %v653, %v609
      %v660 = vsel %vm648, %v654, %v620
      %v661 = vsel %vm649, %v655, %v631
      %vm662 = vcmp.ge.s32.totalorder %v656, 1
      %vm663 = vcmp.ge.s32.totalorder %v657, 1
      %vm664 = vcmp.ge.s32.totalorder %v658, 1
      %vm665 = vcmp.ge.s32.totalorder %v659, 1
      %vm666 = vcmp.ge.s32.totalorder %v660, 1
      %vm667 = vcmp.ge.s32.totalorder %v661, 1
      %vm668 = vcmp.lt.s32.totalorder %v656, 23
      %vm669 = vcmp.lt.s32.totalorder %v657, 23
      %vm670 = vcmp.lt.s32.totalorder %v658, 23
      %vm671 = vcmp.lt.s32.totalorder %v659, 23
      %vm672 = vcmp.lt.s32.totalorder %v660, 23
      %vm673 = vcmp.lt.s32.totalorder %v661, 23
      %v674 = vld [vmem:[%s1] sm:$0xf]
      %v675 = vld [vmem:[%s1 + $0x4] sm:$0xf]
      %v676 = vld [vmem:[%s1 + $0x8] sm:$0xf]
      %v677 = vld [vmem:[%s1 + $0xc] sm:$0xf]
      %v678 = vld [vmem:[%s2] sm:$0x1]
      %v680 = vlaneseq
      %v681 = vshrl.u32 %v680, 7
      %v682 = vsub.s32 0, %v681
      %v683 = vrot.slane %v678, %v682
      %v691 = vunpack.c.l.b16 %v553
      %v692 = vunpack.c.l.b16 %v554
      %v693 = vunpack.c.l.b16 %v555
      %v694 = vunpack.c.l.b16 %v556
      %v695 = vunpack.c.l.b16 %v557
      %v696 = vunpack.c.l.b16 %v558
      %v697 = vpack.c.b16 %v692, %v691
      %v698 = vpack.c.b16 %v694, %v693
      %v699 = vpack.c.b16 %v696, %v695
      %v704 = vunpack.c.l.b16 %v674
      %v705 = vunpack.c.l.b16 %v675
      %v706 = vunpack.c.l.b16 %v676
      %v707 = vunpack.c.l.b16 %v677
      %v708 = vpack.c.b16 %v705, %v704
      %v709 = vpack.c.b16 %v707, %v706
      %vm712 = vcmask 261120
      %v714 = vsel %vm712, %v697, 0
      %v717 = vsel %vm712, %v698, 0
      %v720 = vsel %vm712, %v699, 0
      %722 = vmatprep.subr.bf16.mxu0 0
      %723 = vmatpush1.bf16.msra.mxu0 %v708
      %724 = vmatprep.subr.bf16.mxu0 0
      %725 = vmatpush1.bf16.msra.mxu0 %v709
      %726 = vmatprep.subr.bf16.mxu0 0
      %727 = vmatpush1.bf16.msra.mxu0 0
      %728 = vmatprep.subr.bf16.mxu0 0
      %729 = vmatpush1.bf16.msra.mxu0 0
      %730 = vmatprep.subr.bf16.mxu0 0
      %731 = vmatpush1.bf16.msra.mxu0 0
      %732 = vmatprep.subr.bf16.mxu0 0
      %733 = vmatpush1.bf16.msra.mxu0 0
      %734 = vmatprep.subr.bf16.mxu0 0
      %735 = vmatpush1.bf16.msra.mxu0 0
      %736 = vmatprep.subr.bf16.mxu0 0
      %737 = vmatpush1.bf16.msra.mxu0 0
      %738 = vmatprep.subr.bf16.mxu0 0
      %739 = vmatpush1.bf16.msra.mxu0 0
      %740 = vmatprep.subr.bf16.mxu0 0
      %741 = vmatpush1.bf16.msra.mxu0 0
      %742 = vmatprep.subr.bf16.mxu0 0
      %743 = vmatpush1.bf16.msra.mxu0 0
      %744 = vmatprep.subr.bf16.mxu0 0
      %745 = vmatpush1.bf16.msra.mxu0 0
      %746 = vmatprep.subr.bf16.mxu0 0
      %747 = vmatpush1.bf16.msra.mxu0 0
      %748 = vmatprep.subr.bf16.mxu0 0
      %749 = vmatpush1.bf16.msra.mxu0 0
      %750 = vmatprep.subr.bf16.mxu0 0
      %751 = vmatpush1.bf16.msra.mxu0 0
      %752 = vmatprep.subr.bf16.mxu0 0
      %753 = vmatpush1.bf16.msra.mxu0 0
      %754 = vmatprep.mubr.bf16.mxu0 0
      %755 = vmatmul.mubr.bf16.gmra.mrb[0].mxu0 %v714
      %v756 = vpop.f32.mrb[0].mxu0
      %v757 = vadd.f32 %v683, %v756
      %v758 = vpop.f32.mrb[0].mxu0
      %v759 = vpop.f32.mrb[0].mxu0
      %v760 = vadd.f32 %v683, %v759
      %v761 = vpop.f32.mrb[0].mxu0
      %762 = vmatprep.mubr.bf16.mxu0 0
      %763 = vmatmul.mubr.bf16.gmra.mrb[0].mxu0 %v717
      %v764 = vpop.f32.mrb[0].mxu0
      %v765 = vadd.f32 %v683, %v764
      %v766 = vpop.f32.mrb[0].mxu0
      %v767 = vpop.f32.mrb[0].mxu0
      %v768 = vadd.f32 %v683, %v767
      %v769 = vpop.f32.mrb[0].mxu0
      %770 = vmatprep.mubr.bf16.mxu0 0
      %771 = vmatmul.mubr.bf16.gmra.mrb[0].mxu0 %v720
      %v772 = vpop.f32.mrb[0].mxu0
      %v773 = vadd.f32 %v683, %v772
      %v774 = vpop.f32.mrb[0].mxu0
      %v775 = vpop.f32.mrb[0].mxu0
      %v776 = vadd.f32 %v683, %v775
      %v777 = vpop.f32.mrb[0].mxu0
      %778 = vdwg.mxu0
      %v779 = vmax.f32 %v757, 0.0
      %v780 = vmax.f32 %v760, 0.0
      %v781 = vmax.f32 %v765, 0.0
      %v782 = vmax.f32 %v768, 0.0
      %v783 = vmax.f32 %v773, 0.0
      %v784 = vmax.f32 %v776, 0.0
      %v785 = vld [vmem:[%s3] sm:$0x1]
      %v787 = vlaneseq
      %v788 = vshrl.u32 %v787, 7
      %v789 = vsub.s32 0, %v788
      %v790 = vrot.slane %v785, %v789
      %v792 = vmul.f32 %v779, %v790
      %v793 = vmul.f32 %v780, %v790
      %v794 = vmul.f32 %v781, %v790
      %v795 = vmul.f32 %v782, %v790
      %v796 = vmul.f32 %v783, %v790
      %v797 = vmul.f32 %v784, %v790
      %v798 = vld [vmem:[%s4] sm:$0x1]
      %v800 = vlaneseq
      %v801 = vshrl.u32 %v800, 7
      %v802 = vsub.s32 0, %v801
      %v803 = vrot.slane %v798, %v802
      %v805 = vadd.f32 %v792, %v803
      %v806 = vadd.f32 %v793, %v803
      %v807 = vadd.f32 %v794, %v803
      %v808 = vadd.f32 %v795, %v803
      %v809 = vadd.f32 %v796, %v803
      %v810 = vadd.f32 %v797, %v803
      %v811 = vpack.c.bf16 %v806, %v805
      %v812 = vpack.c.bf16 %v808, %v807
      %v813 = vpack.c.bf16 %v810, %v809
      %v814 = vld [vmem:[%s9] sm:$0xf]
      %s815 = scalar_lea.vmem %s1, 16
      %v816 = vld [vmem:[%s815] sm:$0xf]
      %v817 = vld [vmem:[%s815 + $0x4] sm:$0xf]
      %v818 = vld [vmem:[%s815 + $0x8] sm:$0xf]
      %v819 = vld [vmem:[%s815 + $0xc] sm:$0xf]
      %s820 = scalar_lea.vmem %s2, 1
      %v821 = vld [vmem:[%s820] sm:$0x1]
      %v823 = vlaneseq
      %v824 = vshrl.u32 %v823, 7
      %v825 = vsub.s32 0, %v824
      %v826 = vrot.slane %v821, %v825
      %v832 = vunpack.c.l.b16 %v816
      %v833 = vunpack.c.l.b16 %v817
      %v834 = vunpack.c.l.b16 %v818
      %v835 = vunpack.c.l.b16 %v819
      %v836 = vpack.c.b16 %v833, %v832
      %v837 = vpack.c.b16 %v835, %v834
      %840 = vmatprep.subr.bf16.mxu0 0
      %841 = vmatpush1.bf16.msra.mxu0 %v836
      %842 = vmatprep.subr.bf16.mxu0 0
      %843 = vmatpush1.bf16.msra.mxu0 %v837
      %844 = vmatprep.subr.bf16.mxu0 0
      %845 = vmatpush1.bf16.msra.mxu0 0
      %846 = vmatprep.subr.bf16.mxu0 0
      %847 = vmatpush1.bf16.msra.mxu0 0
      %848 = vmatprep.subr.bf16.mxu0 0
      %849 = vmatpush1.bf16.msra.mxu0 0
      %850 = vmatprep.subr.bf16.mxu0 0
      %851 = vmatpush1.bf16.msra.mxu0 0
      %852 = vmatprep.subr.bf16.mxu0 0
      %853 = vmatpush1.bf16.msra.mxu0 0
      %854 = vmatprep.subr.bf16.mxu0 0
      %855 = vmatpush1.bf16.msra.mxu0 0
      %856 = vmatprep.subr.bf16.mxu0 0
      %857 = vmatpush1.bf16.msra.mxu0 0
      %858 = vmatprep.subr.bf16.mxu0 0
      %859 = vmatpush1.bf16.msra.mxu0 0
      %860 = vmatprep.subr.bf16.mxu0 0
      %861 = vmatpush1.bf16.msra.mxu0 0
      %862 = vmatprep.subr.bf16.mxu0 0
      %863 = vmatpush1.bf16.msra.mxu0 0
      %864 = vmatprep.subr.bf16.mxu0 0
      %865 = vmatpush1.bf16.msra.mxu0 0
      %866 = vmatprep.subr.bf16.mxu0 0
      %867 = vmatpush1.bf16.msra.mxu0 0
      %868 = vmatprep.subr.bf16.mxu0 0
      %869 = vmatpush1.bf16.msra.mxu0 0
      %870 = vmatprep.subr.bf16.mxu0 0
      %871 = vmatpush1.bf16.msra.mxu0 0
      %872 = vmatprep.mubr.bf16.mxu0 0
      %873 = vmatmul.mubr.bf16.gmra.mrb[0].mxu0 %v714
      %v874 = vpop.f32.mrb[0].mxu0
      %v875 = vadd.f32 %v826, %v874
      %v876 = vpop.f32.mrb[0].mxu0
      %v877 = vpop.f32.mrb[0].mxu0
      %v878 = vadd.f32 %v826, %v877
      %v879 = vpop.f32.mrb[0].mxu0
      %880 = vmatprep.mubr.bf16.mxu0 0
      %881 = vmatmul.mubr.bf16.gmra.mrb[0].mxu0 %v717
      %v882 = vpop.f32.mrb[0].mxu0
      %v883 = vadd.f32 %v826, %v882
      %v884 = vpop.f32.mrb[0].mxu0
      %v885 = vpop.f32.mrb[0].mxu0
      %v886 = vadd.f32 %v826, %v885
      %v887 = vpop.f32.mrb[0].mxu0
      %888 = vmatprep.mubr.bf16.mxu0 0
      %889 = vmatmul.mubr.bf16.gmra.mrb[0].mxu0 %v720
      %v890 = vpop.f32.mrb[0].mxu0
      %v891 = vadd.f32 %v826, %v890
      %v892 = vpop.f32.mrb[0].mxu0
      %v893 = vpop.f32.mrb[0].mxu0
      %v894 = vadd.f32 %v826, %v893
      %v895 = vpop.f32.mrb[0].mxu0
      %896 = vdwg.mxu0
      %v897 = vmax.f32 %v875, 0.0
      %v898 = vmax.f32 %v878, 0.0
      %v899 = vmax.f32 %v883, 0.0
      %v900 = vmax.f32 %v886, 0.0
      %v901 = vmax.f32 %v891, 0.0
      %v902 = vmax.f32 %v894, 0.0
      %s903 = scalar_lea.vmem %s3, 1
      %v904 = vld [vmem:[%s903] sm:$0x1]
      %v906 = vlaneseq
      %v907 = vshrl.u32 %v906, 7
      %v908 = vsub.s32 0, %v907
      %v909 = vrot.slane %v904, %v908
      %v911 = vmul.f32 %v897, %v909
      %v912 = vmul.f32 %v898, %v909
      %v913 = vmul.f32 %v899, %v909
      %v914 = vmul.f32 %v900, %v909
      %v915 = vmul.f32 %v901, %v909
      %v916 = vmul.f32 %v902, %v909
      %s917 = scalar_lea.vmem %s4, 1
      %v918 = vld [vmem:[%s917] sm:$0x1]
      %v920 = vlaneseq
      %v921 = vshrl.u32 %v920, 7
      %v922 = vsub.s32 0, %v921
      %v923 = vrot.slane %v918, %v922
      %v925 = vadd.f32 %v911, %v923
      %v926 = vadd.f32 %v912, %v923
      %v927 = vadd.f32 %v913, %v923
      %v928 = vadd.f32 %v914, %v923
      %v929 = vadd.f32 %v915, %v923
      %v930 = vadd.f32 %v916, %v923
      %v931 = vrot.slane %v925, 7
      %v932 = vrot.slane %v926, 7
      %v933 = vrot.slane %v927, 7
      %v934 = vrot.slane %v928, 7
      %v935 = vrot.slane %v929, 7
      %v936 = vrot.slane %v930, 7
      %vm937 = vcmp.lt.s32.totalorder %v560, 1
      %v938 = vsel %vm937, %v935, %v936
      %v939 = vsel %vm937, %v934, %v935
      %v940 = vsel %vm937, %v933, %v934
      %v941 = vsel %vm937, %v932, %v933
      %v942 = vsel %vm937, %v931, %v932
      %v943 = vsel %vm937, %v936, %v931
      %v944 = vsel %vm662, 1, 0
      %v945 = vsel %vm663, 1, 0
      %v946 = vsel %vm664, 1, 0
      %v947 = vsel %vm665, 1, 0
      %v948 = vsel %vm666, 1, 0
      %v949 = vsel %vm667, 1, 0
      %vm950 = vcmp.eq.s32.totalorder %v944, 1
      %vm951 = vcmp.eq.s32.totalorder %v945, 1
      %vm952 = vcmp.eq.s32.totalorder %v946, 1
      %vm953 = vcmp.eq.s32.totalorder %v947, 1
      %vm954 = vcmp.eq.s32.totalorder %v948, 1
      %vm955 = vcmp.eq.s32.totalorder %v949, 1
      %v956 = vsel %vm950, %v943, 0.0
      %v957 = vsel %vm951, %v942, 0.0
      %v958 = vsel %vm952, %v941, 0.0
      %v959 = vsel %vm953, %v940, 0.0
      %v960 = vsel %vm954, %v939, 0.0
      %v961 = vsel %vm955, %v938, 0.0
      %v962 = vpack.c.bf16 %v957, %v956
      %v963 = vpack.c.bf16 %v959, %v958
      %v964 = vpack.c.bf16 %v961, %v960
      %v965 = vpack.c.bf16 %v926, %v925
      %v966 = vpack.c.bf16 %v928, %v927
      %v967 = vpack.c.bf16 %v930, %v929
      %v968 = vrot.slane %v925, 1
      %v969 = vrot.slane %v926, 1
      %v970 = vrot.slane %v927, 1
      %v971 = vrot.slane %v928, 1
      %v972 = vrot.slane %v929, 1
      %v973 = vrot.slane %v930, 1
      %vm974 = vcmp.lt.s32.totalorder %v560, 7
      %v975 = vsel %vm974, %v972, %v973
      %v976 = vsel %vm974, %v971, %v972
      %v977 = vsel %vm974, %v970, %v971
      %v978 = vsel %vm974, %v969, %v970
      %v979 = vsel %vm974, %v968, %v969
      %v980 = vsel %vm974, %v973, %v968
      %v981 = vsel %vm668, 1, 0
      %v982 = vsel %vm669, 1, 0
      %v983 = vsel %vm670, 1, 0
      %v984 = vsel %vm671, 1, 0
      %v985 = vsel %vm672, 1, 0
      %v986 = vsel %vm673, 1, 0
      %vm987 = vcmp.eq.s32.totalorder %v981, 1
      %vm988 = vcmp.eq.s32.totalorder %v982, 1
      %vm989 = vcmp.eq.s32.totalorder %v983, 1
      %vm990 = vcmp.eq.s32.totalorder %v984, 1
      %vm991 = vcmp.eq.s32.totalorder %v985, 1
      %vm992 = vcmp.eq.s32.totalorder %v986, 1
      %v993 = vsel %vm987, %v979, 0.0
      %v994 = vsel %vm988, %v978, 0.0
      %v995 = vsel %vm989, %v977, 0.0
      %v996 = vsel %vm990, %v976, 0.0
      %v997 = vsel %vm991, %v975, 0.0
      %v998 = vsel %vm992, %v980, 0.0
      %v999 = vpack.c.bf16 %v994, %v993
      %v1000 = vpack.c.bf16 %v996, %v995
      %v1001 = vpack.c.bf16 %v998, %v997
      %1005 = vrot.lane.b32.xlu0 %v965, 8
      %v1006 = vpop.permute.xlu0 %1005
      %1007 = vrot.lane.b32.xlu0 %v966, 8
      %v1008 = vpop.permute.xlu0 %1007
      %1009 = vrot.lane.b32.xlu0 %v967, 8
      %v1010 = vpop.permute.xlu0 %1009
      %1014 = vrot.lane.b32.xlu0 %v999, 16
      %v1015 = vpop.permute.xlu0 %1014
      %1016 = vrot.lane.b32.xlu0 %v1000, 16
      %v1017 = vpop.permute.xlu0 %1016
      %1018 = vrot.lane.b32.xlu0 %v1001, 16
      %v1019 = vpop.permute.xlu0 %1018
      %vm1020 = vcmask 64512
      %v1023 = vsel %vm1020, %v962, %v1006
      %v1026 = vsel %vm1020, %v963, %v1008
      %v1029 = vsel %vm1020, %v964, %v1010
      %vm1030 = vcmask 130048
      %v1032 = vsel %vm1030, %v1023, %v1015
      %v1034 = vsel %vm1030, %v1026, %v1017
      %v1036 = vsel %vm1030, %v1029, %v1019
      %v1037 = vld [vmem:[%s5] sm:$0xf]
      %v1038 = vld [vmem:[%s5 + $0x4] sm:$0xf]
      %v1039 = vld [vmem:[%s5 + $0x8] sm:$0xf]
      %v1040 = vld [vmem:[%s6] sm:$0x1]
      %v1042 = vlaneseq
      %v1043 = vshrl.u32 %v1042, 7
      %v1044 = vsub.s32 0, %v1043
      %v1045 = vrot.slane %v1040, %v1044
      %v1050 = vunpack.c.l.b16 %v1037
      %v1051 = vunpack.c.l.b16 %v1038
      %v1052 = vunpack.c.l.b16 %v1039
      %v1053 = vpack.c.b16 %v1051, %v1050
      %v1054 = vpack.c.b16 %v1052, %v1052
      %vm1056 = vcmask 195584
      %v1057 = vsel %vm1056, %v1032, 0
      %v1059 = vsel %vm1056, %v1034, 0
      %v1061 = vsel %vm1056, %v1036, 0
      %vm1063 = vcmask 1043456
      %v1065 = vsel %vm1063, %v1054, 0
      %1067 = vmatprep.subr.bf16.mxu0 0
      %1068 = vmatpush1.bf16.msra.mxu0 %v1053
      %1069 = vmatprep.subr.bf16.mxu0 0
      %1070 = vmatpush1.bf16.msra.mxu0 %v1065
      %1071 = vmatprep.subr.bf16.mxu0 0
      %1072 = vmatpush1.bf16.msra.mxu0 0
      %1073 = vmatprep.subr.bf16.mxu0 0
      %1074 = vmatpush1.bf16.msra.mxu0 0
      %1075 = vmatprep.subr.bf16.mxu0 0
      %1076 = vmatpush1.bf16.msra.mxu0 0
      %1077 = vmatprep.subr.bf16.mxu0 0
      %1078 = vmatpush1.bf16.msra.mxu0 0
      %1079 = vmatprep.subr.bf16.mxu0 0
      %1080 = vmatpush1.bf16.msra.mxu0 0
      %1081 = vmatprep.subr.bf16.mxu0 0
      %1082 = vmatpush1.bf16.msra.mxu0 0
      %1083 = vmatprep.subr.bf16.mxu0 0
      %1084 = vmatpush1.bf16.msra.mxu0 0
      %1085 = vmatprep.subr.bf16.mxu0 0
      %1086 = vmatpush1.bf16.msra.mxu0 0
      %1087 = vmatprep.subr.bf16.mxu0 0
      %1088 = vmatpush1.bf16.msra.mxu0 0
      %1089 = vmatprep.subr.bf16.mxu0 0
      %1090 = vmatpush1.bf16.msra.mxu0 0
      %1091 = vmatprep.subr.bf16.mxu0 0
      %1092 = vmatpush1.bf16.msra.mxu0 0
      %1093 = vmatprep.subr.bf16.mxu0 0
      %1094 = vmatpush1.bf16.msra.mxu0 0
      %1095 = vmatprep.subr.bf16.mxu0 0
      %1096 = vmatpush1.bf16.msra.mxu0 0
      %1097 = vmatprep.subr.bf16.mxu0 0
      %1098 = vmatpush1.bf16.msra.mxu0 0
      %1099 = vmatprep.mubr.bf16.mxu0 0
      %1100 = vmatmul.mubr.bf16.gmra.mrb[0].mxu0 %v1057
      %v1101 = vpop.f32.mrb[0].mxu0
      %v1102 = vadd.f32 %v1045, %v1101
      %v1103 = vpop.f32.mrb[0].mxu0
      %v1104 = vpop.f32.mrb[0].mxu0
      %v1105 = vadd.f32 %v1045, %v1104
      %v1106 = vpop.f32.mrb[0].mxu0
      %1107 = vmatprep.mubr.bf16.mxu0 0
      %1108 = vmatmul.mubr.bf16.gmra.mrb[0].mxu0 %v1059
      %v1109 = vpop.f32.mrb[0].mxu0
      %v1110 = vadd.f32 %v1045, %v1109
      %v1111 = vpop.f32.mrb[0].mxu0
      %v1112 = vpop.f32.mrb[0].mxu0
      %v1113 = vadd.f32 %v1045, %v1112
      %v1114 = vpop.f32.mrb[0].mxu0
      %1115 = vmatprep.mubr.bf16.mxu0 0
      %1116 = vmatmul.mubr.bf16.gmra.mrb[0].mxu0 %v1061
      %v1117 = vpop.f32.mrb[0].mxu0
      %v1118 = vadd.f32 %v1045, %v1117
      %v1119 = vpop.f32.mrb[0].mxu0
      %v1120 = vpop.f32.mrb[0].mxu0
      %v1121 = vadd.f32 %v1045, %v1120
      %v1122 = vpop.f32.mrb[0].mxu0
      %1123 = vdwg.mxu0
      %v1124 = vmax.f32 %v1102, 0.0
      %v1125 = vmax.f32 %v1105, 0.0
      %v1126 = vmax.f32 %v1110, 0.0
      %v1127 = vmax.f32 %v1113, 0.0
      %v1128 = vmax.f32 %v1118, 0.0
      %v1129 = vmax.f32 %v1121, 0.0
      %v1130 = vld [vmem:[%s7] sm:$0x1]
      %v1132 = vlaneseq
      %v1133 = vshrl.u32 %v1132, 7
      %v1134 = vsub.s32 0, %v1133
      %v1135 = vrot.slane %v1130, %v1134
      %v1137 = vmul.f32 %v1124, %v1135
      %v1138 = vmul.f32 %v1125, %v1135
      %v1139 = vmul.f32 %v1126, %v1135
      %v1140 = vmul.f32 %v1127, %v1135
      %v1141 = vmul.f32 %v1128, %v1135
      %v1142 = vmul.f32 %v1129, %v1135
      %v1143 = vld [vmem:[%s8] sm:$0x1]
      %v1145 = vlaneseq
      %v1146 = vshrl.u32 %v1145, 7
      %v1147 = vsub.s32 0, %v1146
      %v1148 = vrot.slane %v1143, %v1147
      %v1150 = vadd.f32 %v1137, %v1148
      %v1151 = vadd.f32 %v1138, %v1148
      %v1152 = vadd.f32 %v1139, %v1148
      %v1153 = vadd.f32 %v1140, %v1148
      %v1154 = vadd.f32 %v1141, %v1148
      %v1155 = vadd.f32 %v1142, %v1148
      %v1156 = vpack.c.bf16 %v1151, %v1150
      %v1157 = vpack.c.bf16 %v1153, %v1152
      %v1158 = vpack.c.bf16 %v1155, %v1154
      %s1159 = scalar_lea.vmem %s9, 4
      %v1160 = vld [vmem:[%s1159] sm:$0xf]
      %v1162 = vsel %vm1020, %v1156, 0
      %v1165 = vsel %vm1020, %v1157, 0
      %v1168 = vsel %vm1020, %v1158, 0
      %v1171 = vsel %vm1063, %v1160, 0
      %1173 = vmatprep.subr.bf16.mxu0 0
      %1174 = vmatpush1.bf16.msra.mxu0 %v1171
      %1175 = vmatprep.subr.bf16.mxu0 0
      %1176 = vmatpush1.bf16.msra.mxu0 0
      %1177 = vmatprep.subr.bf16.mxu0 0
      %1178 = vmatpush1.bf16.msra.mxu0 0
      %1179 = vmatprep.subr.bf16.mxu0 0
      %1180 = vmatpush1.bf16.msra.mxu0 0
      %1181 = vmatprep.subr.bf16.mxu0 0
      %1182 = vmatpush1.bf16.msra.mxu0 0
      %1183 = vmatprep.subr.bf16.mxu0 0
      %1184 = vmatpush1.bf16.msra.mxu0 0
      %1185 = vmatprep.subr.bf16.mxu0 0
      %1186 = vmatpush1.bf16.msra.mxu0 0
      %1187 = vmatprep.subr.bf16.mxu0 0
      %1188 = vmatpush1.bf16.msra.mxu0 0
      %1189 = vmatprep.subr.bf16.mxu0 0
      %1190 = vmatpush1.bf16.msra.mxu0 0
      %1191 = vmatprep.subr.bf16.mxu0 0
      %1192 = vmatpush1.bf16.msra.mxu0 0
      %1193 = vmatprep.subr.bf16.mxu0 0
      %1194 = vmatpush1.bf16.msra.mxu0 0
      %1195 = vmatprep.subr.bf16.mxu0 0
      %1196 = vmatpush1.bf16.msra.mxu0 0
      %1197 = vmatprep.subr.bf16.mxu0 0
      %1198 = vmatpush1.bf16.msra.mxu0 0
      %1199 = vmatprep.subr.bf16.mxu0 0
      %1200 = vmatpush1.bf16.msra.mxu0 0
      %1201 = vmatprep.subr.bf16.mxu0 0
      %1202 = vmatpush1.bf16.msra.mxu0 0
      %1203 = vmatprep.subr.bf16.mxu0 0
      %1204 = vmatpush1.bf16.msra.mxu0 0
      %1205 = vmatprep.mubr.bf16.mxu0 0
      %1206 = vmatmul.mubr.bf16.gmra.mrb[0].mxu0 %v1162
      %v1207 = vpop.f32.mrb[0].mxu0
      %v1208 = vadd.f32 0.0, %v1207
      %v1209 = vpop.f32.mrb[0].mxu0
      %v1210 = vpop.f32.mrb[0].mxu0
      %v1211 = vadd.f32 0.0, %v1210
      %v1212 = vpop.f32.mrb[0].mxu0
      %1213 = vmatprep.mubr.bf16.mxu0 0
      %1214 = vmatmul.mubr.bf16.gmra.mrb[0].mxu0 %v1165
      %v1215 = vpop.f32.mrb[0].mxu0
      %v1216 = vadd.f32 0.0, %v1215
      %v1217 = vpop.f32.mrb[0].mxu0
      %v1218 = vpop.f32.mrb[0].mxu0
      %v1219 = vadd.f32 0.0, %v1218
      %v1220 = vpop.f32.mrb[0].mxu0
      %1221 = vmatprep.mubr.bf16.mxu0 0
      %1222 = vmatmul.mubr.bf16.gmra.mrb[0].mxu0 %v1168
      %v1223 = vpop.f32.mrb[0].mxu0
      %v1224 = vadd.f32 0.0, %v1223
      %v1225 = vpop.f32.mrb[0].mxu0
      %v1226 = vpop.f32.mrb[0].mxu0
      %v1227 = vadd.f32 0.0, %v1226
      %v1228 = vpop.f32.mrb[0].mxu0
      %1229 = vdwg.mxu0
      %v1231 = vsel %vm1020, %v811, 0
      %v1234 = vsel %vm1020, %v812, 0
      %v1237 = vsel %vm1020, %v813, 0
      %v1240 = vsel %vm1063, %v814, 0
      %1242 = vmatprep.subr.bf16.mxu0 0
      %1243 = vmatpush1.bf16.msra.mxu0 %v1240
      %1244 = vmatprep.subr.bf16.mxu0 0
      %1245 = vmatpush1.bf16.msra.mxu0 0
      %1246 = vmatprep.subr.bf16.mxu0 0
      %1247 = vmatpush1.bf16.msra.mxu0 0
      %1248 = vmatprep.subr.bf16.mxu0 0
      %1249 = vmatpush1.bf16.msra.mxu0 0
      %1250 = vmatprep.subr.bf16.mxu0 0
      %1251 = vmatpush1.bf16.msra.mxu0 0
      %1252 = vmatprep.subr.bf16.mxu0 0
      %1253 = vmatpush1.bf16.msra.mxu0 0
      %1254 = vmatprep.subr.bf16.mxu0 0
      %1255 = vmatpush1.bf16.msra.mxu0 0
      %1256 = vmatprep.subr.bf16.mxu0 0
      %1257 = vmatpush1.bf16.msra.mxu0 0
      %1258 = vmatprep.subr.bf16.mxu0 0
      %1259 = vmatpush1.bf16.msra.mxu0 0
      %1260 = vmatprep.subr.bf16.mxu0 0
      %1261 = vmatpush1.bf16.msra.mxu0 0
      %1262 = vmatprep.subr.bf16.mxu0 0
      %1263 = vmatpush1.bf16.msra.mxu0 0
      %1264 = vmatprep.subr.bf16.mxu0 0
      %1265 = vmatpush1.bf16.msra.mxu0 0
      %1266 = vmatprep.subr.bf16.mxu0 0
      %1267 = vmatpush1.bf16.msra.mxu0 0
      %1268 = vmatprep.subr.bf16.mxu0 0
      %1269 = vmatpush1.bf16.msra.mxu0 0
      %1270 = vmatprep.subr.bf16.mxu0 0
      %1271 = vmatpush1.bf16.msra.mxu0 0
      %1272 = vmatprep.subr.bf16.mxu0 0
      %1273 = vmatpush1.bf16.msra.mxu0 0
      %1274 = vmatprep.mubr.bf16.mxu0 0
      %1275 = vmatmul.mubr.bf16.gmra.mrb[0].mxu0 %v1231
      %v1276 = vpop.f32.mrb[0].mxu0
      %v1277 = vadd.f32 %v1208, %v1276
      %v1278 = vpop.f32.mrb[0].mxu0
      %v1279 = vpop.f32.mrb[0].mxu0
      %v1280 = vadd.f32 %v1211, %v1279
      %v1281 = vpop.f32.mrb[0].mxu0
      %1282 = vmatprep.mubr.bf16.mxu0 0
      %1283 = vmatmul.mubr.bf16.gmra.mrb[0].mxu0 %v1234
      %v1284 = vpop.f32.mrb[0].mxu0
      %v1285 = vadd.f32 %v1216, %v1284
      %v1286 = vpop.f32.mrb[0].mxu0
      %v1287 = vpop.f32.mrb[0].mxu0
      %v1288 = vadd.f32 %v1219, %v1287
      %v1289 = vpop.f32.mrb[0].mxu0
      %1290 = vmatprep.mubr.bf16.mxu0 0
      %1291 = vmatmul.mubr.bf16.gmra.mrb[0].mxu0 %v1237
      %v1292 = vpop.f32.mrb[0].mxu0
      %v1293 = vadd.f32 %v1224, %v1292
      %v1294 = vpop.f32.mrb[0].mxu0
      %v1295 = vpop.f32.mrb[0].mxu0
      %v1296 = vadd.f32 %v1227, %v1295
      %v1297 = vpop.f32.mrb[0].mxu0
      %1298 = vdwg.mxu0
      %s1299 = scalar_lea.vmem %s1, 32
      %v1300 = vld [vmem:[%s1299] sm:$0xf]
      %v1301 = vld [vmem:[%s1299 + $0x4] sm:$0xf]
      %v1302 = vld [vmem:[%s1299 + $0x8] sm:$0xf]
      %v1303 = vld [vmem:[%s1299 + $0xc] sm:$0xf]
      %s1304 = scalar_lea.vmem %s2, 2
      %v1305 = vld [vmem:[%s1304] sm:$0x1]
      %v1307 = vlaneseq
      %v1308 = vshrl.u32 %v1307, 7
      %v1309 = vsub.s32 0, %v1308
      %v1310 = vrot.slane %v1305, %v1309
      %v1316 = vunpack.c.l.b16 %v1300
      %v1317 = vunpack.c.l.b16 %v1301
      %v1318 = vunpack.c.l.b16 %v1302
      %v1319 = vunpack.c.l.b16 %v1303
      %v1320 = vpack.c.b16 %v1317, %v1316
      %v1321 = vpack.c.b16 %v1319, %v1318
      %1324 = vmatprep.subr.bf16.mxu0 0
      %1325 = vmatpush1.bf16.msra.mxu0 %v1320
      %1326 = vmatprep.subr.bf16.mxu0 0
      %1327 = vmatpush1.bf16.msra.mxu0 %v1321
      %1328 = vmatprep.subr.bf16.mxu0 0
      %1329 = vmatpush1.bf16.msra.mxu0 0
      %1330 = vmatprep.subr.bf16.mxu0 0
      %1331 = vmatpush1.bf16.msra.mxu0 0
      %1332 = vmatprep.subr.bf16.mxu0 0
      %1333 = vmatpush1.bf16.msra.mxu0 0
      %1334 = vmatprep.subr.bf16.mxu0 0
      %1335 = vmatpush1.bf16.msra.mxu0 0
      %1336 = vmatprep.subr.bf16.mxu0 0
      %1337 = vmatpush1.bf16.msra.mxu0 0
      %1338 = vmatprep.subr.bf16.mxu0 0
      %1339 = vmatpush1.bf16.msra.mxu0 0
      %1340 = vmatprep.subr.bf16.mxu0 0
      %1341 = vmatpush1.bf16.msra.mxu0 0
      %1342 = vmatprep.subr.bf16.mxu0 0
      %1343 = vmatpush1.bf16.msra.mxu0 0
      %1344 = vmatprep.subr.bf16.mxu0 0
      %1345 = vmatpush1.bf16.msra.mxu0 0
      %1346 = vmatprep.subr.bf16.mxu0 0
      %1347 = vmatpush1.bf16.msra.mxu0 0
      %1348 = vmatprep.subr.bf16.mxu0 0
      %1349 = vmatpush1.bf16.msra.mxu0 0
      %1350 = vmatprep.subr.bf16.mxu0 0
      %1351 = vmatpush1.bf16.msra.mxu0 0
      %1352 = vmatprep.subr.bf16.mxu0 0
      %1353 = vmatpush1.bf16.msra.mxu0 0
      %1354 = vmatprep.subr.bf16.mxu0 0
      %1355 = vmatpush1.bf16.msra.mxu0 0
      %1356 = vmatprep.mubr.bf16.mxu0 0
      %1357 = vmatmul.mubr.bf16.gmra.mrb[0].mxu0 %v714
      %v1358 = vpop.f32.mrb[0].mxu0
      %v1359 = vadd.f32 %v1310, %v1358
      %v1360 = vpop.f32.mrb[0].mxu0
      %v1361 = vpop.f32.mrb[0].mxu0
      %v1362 = vadd.f32 %v1310, %v1361
      %v1363 = vpop.f32.mrb[0].mxu0
      %1364 = vmatprep.mubr.bf16.mxu0 0
      %1365 = vmatmul.mubr.bf16.gmra.mrb[0].mxu0 %v717
      %v1366 = vpop.f32.mrb[0].mxu0
      %v1367 = vadd.f32 %v1310, %v1366
      %v1368 = vpop.f32.mrb[0].mxu0
      %v1369 = vpop.f32.mrb[0].mxu0
      %v1370 = vadd.f32 %v1310, %v1369
      %v1371 = vpop.f32.mrb[0].mxu0
      %1372 = vmatprep.mubr.bf16.mxu0 0
      %1373 = vmatmul.mubr.bf16.gmra.mrb[0].mxu0 %v720
      %v1374 = vpop.f32.mrb[0].mxu0
      %v1375 = vadd.f32 %v1310, %v1374
      %v1376 = vpop.f32.mrb[0].mxu0
      %v1377 = vpop.f32.mrb[0].mxu0
      %v1378 = vadd.f32 %v1310, %v1377
      %v1379 = vpop.f32.mrb[0].mxu0
      %1380 = vdwg.mxu0
      %v1381 = vmax.f32 %v1359, 0.0
      %v1382 = vmax.f32 %v1362, 0.0
      %v1383 = vmax.f32 %v1367, 0.0
      %v1384 = vmax.f32 %v1370, 0.0
      %v1385 = vmax.f32 %v1375, 0.0
      %v1386 = vmax.f32 %v1378, 0.0
      %s1387 = scalar_lea.vmem %s3, 2
      %v1388 = vld [vmem:[%s1387] sm:$0x1]
      %v1390 = vlaneseq
      %v1391 = vshrl.u32 %v1390, 7
      %v1392 = vsub.s32 0, %v1391
      %v1393 = vrot.slane %v1388, %v1392
      %v1395 = vmul.f32 %v1381, %v1393
      %v1396 = vmul.f32 %v1382, %v1393
      %v1397 = vmul.f32 %v1383, %v1393
      %v1398 = vmul.f32 %v1384, %v1393
      %v1399 = vmul.f32 %v1385, %v1393
      %v1400 = vmul.f32 %v1386, %v1393
      %s1401 = scalar_lea.vmem %s4, 2
      %v1402 = vld [vmem:[%s1401] sm:$0x1]
      %v1404 = vlaneseq
      %v1405 = vshrl.u32 %v1404, 7
      %v1406 = vsub.s32 0, %v1405
      %v1407 = vrot.slane %v1402, %v1406
      %v1409 = vadd.f32 %v1395, %v1407
      %v1410 = vadd.f32 %v1396, %v1407
      %v1411 = vadd.f32 %v1397, %v1407
      %v1412 = vadd.f32 %v1398, %v1407
      %v1413 = vadd.f32 %v1399, %v1407
      %v1414 = vadd.f32 %v1400, %v1407
      %v1415 = vadd.f32 %v1409, %v1150
      %v1416 = vadd.f32 %v1410, %v1151
      %v1417 = vadd.f32 %v1411, %v1152
      %v1418 = vadd.f32 %v1412, %v1153
      %v1419 = vadd.f32 %v1413, %v1154
      %v1420 = vadd.f32 %v1414, %v1155
      %v1421 = vrot.slane %v1415, 7
      %v1422 = vrot.slane %v1416, 7
      %v1423 = vrot.slane %v1417, 7
      %v1424 = vrot.slane %v1418, 7
      %v1425 = vrot.slane %v1419, 7
      %v1426 = vrot.slane %v1420, 7
      %v1427 = vsel %vm937, %v1425, %v1426
      %v1428 = vsel %vm937, %v1424, %v1425
      %v1429 = vsel %vm937, %v1423, %v1424
      %v1430 = vsel %vm937, %v1422, %v1423
      %v1431 = vsel %vm937, %v1421, %v1422
      %v1432 = vsel %vm937, %v1426, %v1421
      %v1433 = vsel %vm950, %v1432, 0.0
      %v1434 = vsel %vm951, %v1431, 0.0
      %v1435 = vsel %vm952, %v1430, 0.0
      %v1436 = vsel %vm953, %v1429, 0.0
      %v1437 = vsel %vm954, %v1428, 0.0
      %v1438 = vsel %vm955, %v1427, 0.0
      %v1439 = vpack.c.bf16 %v1434, %v1433
      %v1440 = vpack.c.bf16 %v1436, %v1435
      %v1441 = vpack.c.bf16 %v1438, %v1437
      %v1442 = vpack.c.bf16 %v1416, %v1415
      %v1443 = vpack.c.bf16 %v1418, %v1417
      %v1444 = vpack.c.bf16 %v1420, %v1419
      %v1445 = vrot.slane %v1415, 1
      %v1446 = vrot.slane %v1416, 1
      %v1447 = vrot.slane %v1417, 1
      %v1448 = vrot.slane %v1418, 1
      %v1449 = vrot.slane %v1419, 1
      %v1450 = vrot.slane %v1420, 1
      %v1451 = vsel %vm974, %v1449, %v1450
      %v1452 = vsel %vm974, %v1448, %v1449
      %v1453 = vsel %vm974, %v1447, %v1448
      %v1454 = vsel %vm974, %v1446, %v1447
      %v1455 = vsel %vm974, %v1445, %v1446
      %v1456 = vsel %vm974, %v1450, %v1445
      %v1457 = vsel %vm987, %v1455, 0.0
      %v1458 = vsel %vm988, %v1454, 0.0
      %v1459 = vsel %vm989, %v1453, 0.0
      %v1460 = vsel %vm990, %v1452, 0.0
      %v1461 = vsel %vm991, %v1451, 0.0
      %v1462 = vsel %vm992, %v1456, 0.0
      %v1463 = vpack.c.bf16 %v1458, %v1457
      %v1464 = vpack.c.bf16 %v1460, %v1459
      %v1465 = vpack.c.bf16 %v1462, %v1461
      %1469 = vrot.lane.b32.xlu0 %v1442, 8
      %v1470 = vpop.permute.xlu0 %1469
      %1471 = vrot.lane.b32.xlu0 %v1443, 8
      %v1472 = vpop.permute.xlu0 %1471
      %1473 = vrot.lane.b32.xlu0 %v1444, 8
      %v1474 = vpop.permute.xlu0 %1473
      %1478 = vrot.lane.b32.xlu0 %v1463, 16
      %v1479 = vpop.permute.xlu0 %1478
      %1480 = vrot.lane.b32.xlu0 %v1464, 16
      %v1481 = vpop.permute.xlu0 %1480
      %1482 = vrot.lane.b32.xlu0 %v1465, 16
      %v1483 = vpop.permute.xlu0 %1482
      %v1486 = vsel %vm1020, %v1439, %v1470
      %v1489 = vsel %vm1020, %v1440, %v1472
      %v1492 = vsel %vm1020, %v1441, %v1474
      %v1494 = vsel %vm1030, %v1486, %v1479
      %v1496 = vsel %vm1030, %v1489, %v1481
      %v1498 = vsel %vm1030, %v1492, %v1483
      %s1499 = scalar_lea.vmem %s5, 12
      %v1500 = vld [vmem:[%s1499] sm:$0xf]
      %v1501 = vld [vmem:[%s1499 + $0x4] sm:$0xf]
      %v1502 = vld [vmem:[%s1499 + $0x8] sm:$0xf]
      %s1503 = scalar_lea.vmem %s6, 1
      %v1504 = vld [vmem:[%s1503] sm:$0x1]
      %v1506 = vlaneseq
      %v1507 = vshrl.u32 %v1506, 7
      %v1508 = vsub.s32 0, %v1507
      %v1509 = vrot.slane %v1504, %v1508
      %v1514 = vunpack.c.l.b16 %v1500
      %v1515 = vunpack.c.l.b16 %v1501
      %v1516 = vunpack.c.l.b16 %v1502
      %v1517 = vpack.c.b16 %v1515, %v1514
      %v1518 = vpack.c.b16 %v1516, %v1516
      %v1520 = vsel %vm1056, %v1494, 0
      %v1522 = vsel %vm1056, %v1496, 0
      %v1524 = vsel %vm1056, %v1498, 0
      %v1527 = vsel %vm1063, %v1518, 0
      %1529 = vmatprep.subr.bf16.mxu0 0
      %1530 = vmatpush1.bf16.msra.mxu0 %v1517
      %1531 = vmatprep.subr.bf16.mxu0 0
      %1532 = vmatpush1.bf16.msra.mxu0 %v1527
      %1533 = vmatprep.subr.bf16.mxu0 0
      %1534 = vmatpush1.bf16.msra.mxu0 0
      %1535 = vmatprep.subr.bf16.mxu0 0
      %1536 = vmatpush1.bf16.msra.mxu0 0
      %1537 = vmatprep.subr.bf16.mxu0 0
      %1538 = vmatpush1.bf16.msra.mxu0 0
      %1539 = vmatprep.subr.bf16.mxu0 0
      %1540 = vmatpush1.bf16.msra.mxu0 0
      %1541 = vmatprep.subr.bf16.mxu0 0
      %1542 = vmatpush1.bf16.msra.mxu0 0
      %1543 = vmatprep.subr.bf16.mxu0 0
      %1544 = vmatpush1.bf16.msra.mxu0 0
      %1545 = vmatprep.subr.bf16.mxu0 0
      %1546 = vmatpush1.bf16.msra.mxu0 0
      %1547 = vmatprep.subr.bf16.mxu0 0
      %1548 = vmatpush1.bf16.msra.mxu0 0
      %1549 = vmatprep.subr.bf16.mxu0 0
      %1550 = vmatpush1.bf16.msra.mxu0 0
      %1551 = vmatprep.subr.bf16.mxu0 0
      %1552 = vmatpush1.bf16.msra.mxu0 0
      %1553 = vmatprep.subr.bf16.mxu0 0
      %1554 = vmatpush1.bf16.msra.mxu0 0
      %1555 = vmatprep.subr.bf16.mxu0 0
      %1556 = vmatpush1.bf16.msra.mxu0 0
      %1557 = vmatprep.subr.bf16.mxu0 0
      %1558 = vmatpush1.bf16.msra.mxu0 0
      %1559 = vmatprep.subr.bf16.mxu0 0
      %1560 = vmatpush1.bf16.msra.mxu0 0
      %1561 = vmatprep.mubr.bf16.mxu0 0
      %1562 = vmatmul.mubr.bf16.gmra.mrb[0].mxu0 %v1520
      %v1563 = vpop.f32.mrb[0].mxu0
      %v1564 = vadd.f32 %v1509, %v1563
      %v1565 = vpop.f32.mrb[0].mxu0
      %v1566 = vpop.f32.mrb[0].mxu0
      %v1567 = vadd.f32 %v1509, %v1566
      %v1568 = vpop.f32.mrb[0].mxu0
      %1569 = vmatprep.mubr.bf16.mxu0 0
      %1570 = vmatmul.mubr.bf16.gmra.mrb[0].mxu0 %v1522
      %v1571 = vpop.f32.mrb[0].mxu0
      %v1572 = vadd.f32 %v1509, %v1571
      %v1573 = vpop.f32.mrb[0].mxu0
      %v1574 = vpop.f32.mrb[0].mxu0
      %v1575 = vadd.f32 %v1509, %v1574
      %v1576 = vpop.f32.mrb[0].mxu0
      %1577 = vmatprep.mubr.bf16.mxu0 0
      %1578 = vmatmul.mubr.bf16.gmra.mrb[0].mxu0 %v1524
      %v1579 = vpop.f32.mrb[0].mxu0
      %v1580 = vadd.f32 %v1509, %v1579
      %v1581 = vpop.f32.mrb[0].mxu0
      %v1582 = vpop.f32.mrb[0].mxu0
      %v1583 = vadd.f32 %v1509, %v1582
      %v1584 = vpop.f32.mrb[0].mxu0
      %1585 = vdwg.mxu0
      %v1586 = vmax.f32 %v1564, 0.0
      %v1587 = vmax.f32 %v1567, 0.0
      %v1588 = vmax.f32 %v1572, 0.0
      %v1589 = vmax.f32 %v1575, 0.0
      %v1590 = vmax.f32 %v1580, 0.0
      %v1591 = vmax.f32 %v1583, 0.0
      %s1592 = scalar_lea.vmem %s7, 1
      %v1593 = vld [vmem:[%s1592] sm:$0x1]
      %v1595 = vlaneseq
      %v1596 = vshrl.u32 %v1595, 7
      %v1597 = vsub.s32 0, %v1596
      %v1598 = vrot.slane %v1593, %v1597
      %v1600 = vmul.f32 %v1586, %v1598
      %v1601 = vmul.f32 %v1587, %v1598
      %v1602 = vmul.f32 %v1588, %v1598
      %v1603 = vmul.f32 %v1589, %v1598
      %v1604 = vmul.f32 %v1590, %v1598
      %v1605 = vmul.f32 %v1591, %v1598
      %s1606 = scalar_lea.vmem %s8, 1
      %v1607 = vld [vmem:[%s1606] sm:$0x1]
      %v1609 = vlaneseq
      %v1610 = vshrl.u32 %v1609, 7
      %v1611 = vsub.s32 0, %v1610
      %v1612 = vrot.slane %v1607, %v1611
      %v1614 = vadd.f32 %v1600, %v1612
      %v1615 = vadd.f32 %v1601, %v1612
      %v1616 = vadd.f32 %v1602, %v1612
      %v1617 = vadd.f32 %v1603, %v1612
      %v1618 = vadd.f32 %v1604, %v1612
      %v1619 = vadd.f32 %v1605, %v1612
      %v1620 = vpack.c.bf16 %v1615, %v1614
      %v1621 = vpack.c.bf16 %v1617, %v1616
      %v1622 = vpack.c.bf16 %v1619, %v1618
      %s1623 = scalar_lea.vmem %s9, 8
      %v1624 = vld [vmem:[%s1623] sm:$0xf]
      %v1626 = vsel %vm1020, %v1620, 0
      %v1629 = vsel %vm1020, %v1621, 0
      %v1632 = vsel %vm1020, %v1622, 0
      %v1635 = vsel %vm1063, %v1624, 0
      %1637 = vmatprep.subr.bf16.mxu0 0
      %1638 = vmatpush1.bf16.msra.mxu0 %v1635
      %1639 = vmatprep.subr.bf16.mxu0 0
      %1640 = vmatpush1.bf16.msra.mxu0 0
      %1641 = vmatprep.subr.bf16.mxu0 0
      %1642 = vmatpush1.bf16.msra.mxu0 0
      %1643 = vmatprep.subr.bf16.mxu0 0
      %1644 = vmatpush1.bf16.msra.mxu0 0
      %1645 = vmatprep.subr.bf16.mxu0 0
      %1646 = vmatpush1.bf16.msra.mxu0 0
      %1647 = vmatprep.subr.bf16.mxu0 0
      %1648 = vmatpush1.bf16.msra.mxu0 0
      %1649 = vmatprep.subr.bf16.mxu0 0
      %1650 = vmatpush1.bf16.msra.mxu0 0
      %1651 = vmatprep.subr.bf16.mxu0 0
      %1652 = vmatpush1.bf16.msra.mxu0 0
      %1653 = vmatprep.subr.bf16.mxu0 0
      %1654 = vmatpush1.bf16.msra.mxu0 0
      %1655 = vmatprep.subr.bf16.mxu0 0
      %1656 = vmatpush1.bf16.msra.mxu0 0
      %1657 = vmatprep.subr.bf16.mxu0 0
      %1658 = vmatpush1.bf16.msra.mxu0 0
      %1659 = vmatprep.subr.bf16.mxu0 0
      %1660 = vmatpush1.bf16.msra.mxu0 0
      %1661 = vmatprep.subr.bf16.mxu0 0
      %1662 = vmatpush1.bf16.msra.mxu0 0
      %1663 = vmatprep.subr.bf16.mxu0 0
      %1664 = vmatpush1.bf16.msra.mxu0 0
      %1665 = vmatprep.subr.bf16.mxu0 0
      %1666 = vmatpush1.bf16.msra.mxu0 0
      %1667 = vmatprep.subr.bf16.mxu0 0
      %1668 = vmatpush1.bf16.msra.mxu0 0
      %1669 = vmatprep.mubr.bf16.mxu0 0
      %1670 = vmatmul.mubr.bf16.gmra.mrb[0].mxu0 %v1626
      %v1671 = vpop.f32.mrb[0].mxu0
      %v1672 = vadd.f32 0.0, %v1671
      %v1673 = vpop.f32.mrb[0].mxu0
      %v1674 = vpop.f32.mrb[0].mxu0
      %v1675 = vadd.f32 0.0, %v1674
      %v1676 = vpop.f32.mrb[0].mxu0
      %1677 = vmatprep.mubr.bf16.mxu0 0
      %1678 = vmatmul.mubr.bf16.gmra.mrb[0].mxu0 %v1629
      %v1679 = vpop.f32.mrb[0].mxu0
      %v1680 = vadd.f32 0.0, %v1679
      %v1681 = vpop.f32.mrb[0].mxu0
      %v1682 = vpop.f32.mrb[0].mxu0
      %v1683 = vadd.f32 0.0, %v1682
      %v1684 = vpop.f32.mrb[0].mxu0
      %1685 = vmatprep.mubr.bf16.mxu0 0
      %1686 = vmatmul.mubr.bf16.gmra.mrb[0].mxu0 %v1632
      %v1687 = vpop.f32.mrb[0].mxu0
      %v1688 = vadd.f32 0.0, %v1687
      %v1689 = vpop.f32.mrb[0].mxu0
      %v1690 = vpop.f32.mrb[0].mxu0
      %v1691 = vadd.f32 0.0, %v1690
      %v1692 = vpop.f32.mrb[0].mxu0
      %1693 = vdwg.mxu0
      %v1694 = vadd.f32 %v1277, %v1672
      %v1695 = vadd.f32 %v1280, %v1675
      %v1696 = vadd.f32 %v1285, %v1680
      %v1697 = vadd.f32 %v1288, %v1683
      %v1698 = vadd.f32 %v1293, %v1688
      %v1699 = vadd.f32 %v1296, %v1691
      %s1700 = scalar_lea.vmem %s1, 48
      %v1701 = vld [vmem:[%s1700] sm:$0xf]
      %v1702 = vld [vmem:[%s1700 + $0x4] sm:$0xf]
      %v1703 = vld [vmem:[%s1700 + $0x8] sm:$0xf]
      %v1704 = vld [vmem:[%s1700 + $0xc] sm:$0xf]
      %s1705 = scalar_lea.vmem %s2, 3
      %v1706 = vld [vmem:[%s1705] sm:$0x1]
      %v1708 = vlaneseq
      %v1709 = vshrl.u32 %v1708, 7
      %v1710 = vsub.s32 0, %v1709
      %v1711 = vrot.slane %v1706, %v1710
      %v1717 = vunpack.c.l.b16 %v1701
      %v1718 = vunpack.c.l.b16 %v1702
      %v1719 = vunpack.c.l.b16 %v1703
      %v1720 = vunpack.c.l.b16 %v1704
      %v1721 = vpack.c.b16 %v1718, %v1717
      %v1722 = vpack.c.b16 %v1720, %v1719
      %1725 = vmatprep.subr.bf16.mxu0 0
      %1726 = vmatpush1.bf16.msra.mxu0 %v1721
      %1727 = vmatprep.subr.bf16.mxu0 0
      %1728 = vmatpush1.bf16.msra.mxu0 %v1722
      %1729 = vmatprep.subr.bf16.mxu0 0
      %1730 = vmatpush1.bf16.msra.mxu0 0
      %1731 = vmatprep.subr.bf16.mxu0 0
      %1732 = vmatpush1.bf16.msra.mxu0 0
      %1733 = vmatprep.subr.bf16.mxu0 0
      %1734 = vmatpush1.bf16.msra.mxu0 0
      %1735 = vmatprep.subr.bf16.mxu0 0
      %1736 = vmatpush1.bf16.msra.mxu0 0
      %1737 = vmatprep.subr.bf16.mxu0 0
      %1738 = vmatpush1.bf16.msra.mxu0 0
      %1739 = vmatprep.subr.bf16.mxu0 0
      %1740 = vmatpush1.bf16.msra.mxu0 0
      %1741 = vmatprep.subr.bf16.mxu0 0
      %1742 = vmatpush1.bf16.msra.mxu0 0
      %1743 = vmatprep.subr.bf16.mxu0 0
      %1744 = vmatpush1.bf16.msra.mxu0 0
      %1745 = vmatprep.subr.bf16.mxu0 0
      %1746 = vmatpush1.bf16.msra.mxu0 0
      %1747 = vmatprep.subr.bf16.mxu0 0
      %1748 = vmatpush1.bf16.msra.mxu0 0
      %1749 = vmatprep.subr.bf16.mxu0 0
      %1750 = vmatpush1.bf16.msra.mxu0 0
      %1751 = vmatprep.subr.bf16.mxu0 0
      %1752 = vmatpush1.bf16.msra.mxu0 0
      %1753 = vmatprep.subr.bf16.mxu0 0
      %1754 = vmatpush1.bf16.msra.mxu0 0
      %1755 = vmatprep.subr.bf16.mxu0 0
      %1756 = vmatpush1.bf16.msra.mxu0 0
      %1757 = vmatprep.mubr.bf16.mxu0 0
      %1758 = vmatmul.mubr.bf16.gmra.mrb[0].mxu0 %v714
      %v1759 = vpop.f32.mrb[0].mxu0
      %v1760 = vadd.f32 %v1711, %v1759
      %v1761 = vpop.f32.mrb[0].mxu0
      %v1762 = vpop.f32.mrb[0].mxu0
      %v1763 = vadd.f32 %v1711, %v1762
      %v1764 = vpop.f32.mrb[0].mxu0
      %1765 = vmatprep.mubr.bf16.mxu0 0
      %1766 = vmatmul.mubr.bf16.gmra.mrb[0].mxu0 %v717
      %v1767 = vpop.f32.mrb[0].mxu0
      %v1768 = vadd.f32 %v1711, %v1767
      %v1769 = vpop.f32.mrb[0].mxu0
      %v1770 = vpop.f32.mrb[0].mxu0
      %v1771 = vadd.f32 %v1711, %v1770
      %v1772 = vpop.f32.mrb[0].mxu0
      %1773 = vmatprep.mubr.bf16.mxu0 0
      %1774 = vmatmul.mubr.bf16.gmra.mrb[0].mxu0 %v720
      %v1775 = vpop.f32.mrb[0].mxu0
      %v1776 = vadd.f32 %v1711, %v1775
      %v1777 = vpop.f32.mrb[0].mxu0
      %v1778 = vpop.f32.mrb[0].mxu0
      %v1779 = vadd.f32 %v1711, %v1778
      %v1780 = vpop.f32.mrb[0].mxu0
      %1781 = vdwg.mxu0
      %v1782 = vmax.f32 %v1760, 0.0
      %v1783 = vmax.f32 %v1763, 0.0
      %v1784 = vmax.f32 %v1768, 0.0
      %v1785 = vmax.f32 %v1771, 0.0
      %v1786 = vmax.f32 %v1776, 0.0
      %v1787 = vmax.f32 %v1779, 0.0
      %s1788 = scalar_lea.vmem %s3, 3
      %v1789 = vld [vmem:[%s1788] sm:$0x1]
      %v1791 = vlaneseq
      %v1792 = vshrl.u32 %v1791, 7
      %v1793 = vsub.s32 0, %v1792
      %v1794 = vrot.slane %v1789, %v1793
      %v1796 = vmul.f32 %v1782, %v1794
      %v1797 = vmul.f32 %v1783, %v1794
      %v1798 = vmul.f32 %v1784, %v1794
      %v1799 = vmul.f32 %v1785, %v1794
      %v1800 = vmul.f32 %v1786, %v1794
      %v1801 = vmul.f32 %v1787, %v1794
      %s1802 = scalar_lea.vmem %s4, 3
      %v1803 = vld [vmem:[%s1802] sm:$0x1]
      %v1805 = vlaneseq
      %v1806 = vshrl.u32 %v1805, 7
      %v1807 = vsub.s32 0, %v1806
      %v1808 = vrot.slane %v1803, %v1807
      %v1810 = vadd.f32 %v1796, %v1808
      %v1811 = vadd.f32 %v1797, %v1808
      %v1812 = vadd.f32 %v1798, %v1808
      %v1813 = vadd.f32 %v1799, %v1808
      %v1814 = vadd.f32 %v1800, %v1808
      %v1815 = vadd.f32 %v1801, %v1808
      %v1816 = vadd.f32 %v1810, %v1614
      %v1817 = vadd.f32 %v1811, %v1615
      %v1818 = vadd.f32 %v1812, %v1616
      %v1819 = vadd.f32 %v1813, %v1617
      %v1820 = vadd.f32 %v1814, %v1618
      %v1821 = vadd.f32 %v1815, %v1619
      %v1822 = vrot.slane %v1816, 7
      %v1823 = vrot.slane %v1817, 7
      %v1824 = vrot.slane %v1818, 7
      %v1825 = vrot.slane %v1819, 7
      %v1826 = vrot.slane %v1820, 7
      %v1827 = vrot.slane %v1821, 7
      %v1828 = vsel %vm937, %v1826, %v1827
      %v1829 = vsel %vm937, %v1825, %v1826
      %v1830 = vsel %vm937, %v1824, %v1825
      %v1831 = vsel %vm937, %v1823, %v1824
      %v1832 = vsel %vm937, %v1822, %v1823
      %v1833 = vsel %vm937, %v1827, %v1822
      %v1834 = vsel %vm950, %v1833, 0.0
      %v1835 = vsel %vm951, %v1832, 0.0
      %v1836 = vsel %vm952, %v1831, 0.0
      %v1837 = vsel %vm953, %v1830, 0.0
      %v1838 = vsel %vm954, %v1829, 0.0
      %v1839 = vsel %vm955, %v1828, 0.0
      %v1840 = vpack.c.bf16 %v1835, %v1834
      %v1841 = vpack.c.bf16 %v1837, %v1836
      %v1842 = vpack.c.bf16 %v1839, %v1838
      %v1843 = vpack.c.bf16 %v1817, %v1816
      %v1844 = vpack.c.bf16 %v1819, %v1818
      %v1845 = vpack.c.bf16 %v1821, %v1820
      %v1846 = vrot.slane %v1816, 1
      %v1847 = vrot.slane %v1817, 1
      %v1848 = vrot.slane %v1818, 1
      %v1849 = vrot.slane %v1819, 1
      %v1850 = vrot.slane %v1820, 1
      %v1851 = vrot.slane %v1821, 1
      %v1852 = vsel %vm974, %v1850, %v1851
      %v1853 = vsel %vm974, %v1849, %v1850
      %v1854 = vsel %vm974, %v1848, %v1849
      %v1855 = vsel %vm974, %v1847, %v1848
      %v1856 = vsel %vm974, %v1846, %v1847
      %v1857 = vsel %vm974, %v1851, %v1846
      %v1858 = vsel %vm987, %v1856, 0.0
      %v1859 = vsel %vm988, %v1855, 0.0
      %v1860 = vsel %vm989, %v1854, 0.0
      %v1861 = vsel %vm990, %v1853, 0.0
      %v1862 = vsel %vm991, %v1852, 0.0
      %v1863 = vsel %vm992, %v1857, 0.0
      %v1864 = vpack.c.bf16 %v1859, %v1858
      %v1865 = vpack.c.bf16 %v1861, %v1860
      %v1866 = vpack.c.bf16 %v1863, %v1862
      %1870 = vrot.lane.b32.xlu0 %v1843, 8
      %v1871 = vpop.permute.xlu0 %1870
      %1872 = vrot.lane.b32.xlu0 %v1844, 8
      %v1873 = vpop.permute.xlu0 %1872
      %1874 = vrot.lane.b32.xlu0 %v1845, 8
      %v1875 = vpop.permute.xlu0 %1874
      %1879 = vrot.lane.b32.xlu0 %v1864, 16
      %v1880 = vpop.permute.xlu0 %1879
      %1881 = vrot.lane.b32.xlu0 %v1865, 16
      %v1882 = vpop.permute.xlu0 %1881
      %1883 = vrot.lane.b32.xlu0 %v1866, 16
      %v1884 = vpop.permute.xlu0 %1883
      %v1887 = vsel %vm1020, %v1840, %v1871
      %v1890 = vsel %vm1020, %v1841, %v1873
      %v1893 = vsel %vm1020, %v1842, %v1875
      %v1895 = vsel %vm1030, %v1887, %v1880
      %v1897 = vsel %vm1030, %v1890, %v1882
      %v1899 = vsel %vm1030, %v1893, %v1884
      %s1900 = scalar_lea.vmem %s5, 24
      %v1901 = vld [vmem:[%s1900] sm:$0xf]
      %v1902 = vld [vmem:[%s1900 + $0x4] sm:$0xf]
      %v1903 = vld [vmem:[%s1900 + $0x8] sm:$0xf]
      %s1904 = scalar_lea.vmem %s6, 2
      %v1905 = vld [vmem:[%s1904] sm:$0x1]
      %v1907 = vlaneseq
      %v1908 = vshrl.u32 %v1907, 7
      %v1909 = vsub.s32 0, %v1908
      %v1910 = vrot.slane %v1905, %v1909
      %v1915 = vunpack.c.l.b16 %v1901
      %v1916 = vunpack.c.l.b16 %v1902
      %v1917 = vunpack.c.l.b16 %v1903
      %v1918 = vpack.c.b16 %v1916, %v1915
      %v1919 = vpack.c.b16 %v1917, %v1917
      %v1921 = vsel %vm1056, %v1895, 0
      %v1923 = vsel %vm1056, %v1897, 0
      %v1925 = vsel %vm1056, %v1899, 0
      %v1928 = vsel %vm1063, %v1919, 0
      %1930 = vmatprep.subr.bf16.mxu0 0
      %1931 = vmatpush1.bf16.msra.mxu0 %v1918
      %1932 = vmatprep.subr.bf16.mxu0 0
      %1933 = vmatpush1.bf16.msra.mxu0 %v1928
      %1934 = vmatprep.subr.bf16.mxu0 0
      %1935 = vmatpush1.bf16.msra.mxu0 0
      %1936 = vmatprep.subr.bf16.mxu0 0
      %1937 = vmatpush1.bf16.msra.mxu0 0
      %1938 = vmatprep.subr.bf16.mxu0 0
      %1939 = vmatpush1.bf16.msra.mxu0 0
      %1940 = vmatprep.subr.bf16.mxu0 0
      %1941 = vmatpush1.bf16.msra.mxu0 0
      %1942 = vmatprep.subr.bf16.mxu0 0
      %1943 = vmatpush1.bf16.msra.mxu0 0
      %1944 = vmatprep.subr.bf16.mxu0 0
      %1945 = vmatpush1.bf16.msra.mxu0 0
      %1946 = vmatprep.subr.bf16.mxu0 0
      %1947 = vmatpush1.bf16.msra.mxu0 0
      %1948 = vmatprep.subr.bf16.mxu0 0
      %1949 = vmatpush1.bf16.msra.mxu0 0
      %1950 = vmatprep.subr.bf16.mxu0 0
      %1951 = vmatpush1.bf16.msra.mxu0 0
      %1952 = vmatprep.subr.bf16.mxu0 0
      %1953 = vmatpush1.bf16.msra.mxu0 0
      %1954 = vmatprep.subr.bf16.mxu0 0
      %1955 = vmatpush1.bf16.msra.mxu0 0
      %1956 = vmatprep.subr.bf16.mxu0 0
      %1957 = vmatpush1.bf16.msra.mxu0 0
      %1958 = vmatprep.subr.bf16.mxu0 0
      %1959 = vmatpush1.bf16.msra.mxu0 0
      %1960 = vmatprep.subr.bf16.mxu0 0
      %1961 = vmatpush1.bf16.msra.mxu0 0
      %1962 = vmatprep.mubr.bf16.mxu0 0
      %1963 = vmatmul.mubr.bf16.gmra.mrb[0].mxu0 %v1921
      %v1964 = vpop.f32.mrb[0].mxu0
      %v1965 = vadd.f32 %v1910, %v1964
      %v1966 = vpop.f32.mrb[0].mxu0
      %v1967 = vpop.f32.mrb[0].mxu0
      %v1968 = vadd.f32 %v1910, %v1967
      %v1969 = vpop.f32.mrb[0].mxu0
      %1970 = vmatprep.mubr.bf16.mxu0 0
      %1971 = vmatmul.mubr.bf16.gmra.mrb[0].mxu0 %v1923
      %v1972 = vpop.f32.mrb[0].mxu0
      %v1973 = vadd.f32 %v1910, %v1972
      %v1974 = vpop.f32.mrb[0].mxu0
      %v1975 = vpop.f32.mrb[0].mxu0
      %v1976 = vadd.f32 %v1910, %v1975
      %v1977 = vpop.f32.mrb[0].mxu0
      %1978 = vmatprep.mubr.bf16.mxu0 0
      %1979 = vmatmul.mubr.bf16.gmra.mrb[0].mxu0 %v1925
      %v1980 = vpop.f32.mrb[0].mxu0
      %v1981 = vadd.f32 %v1910, %v1980
      %v1982 = vpop.f32.mrb[0].mxu0
      %v1983 = vpop.f32.mrb[0].mxu0
      %v1984 = vadd.f32 %v1910, %v1983
      %v1985 = vpop.f32.mrb[0].mxu0
      %1986 = vdwg.mxu0
      %v1987 = vmax.f32 %v1965, 0.0
      %v1988 = vmax.f32 %v1968, 0.0
      %v1989 = vmax.f32 %v1973, 0.0
      %v1990 = vmax.f32 %v1976, 0.0
      %v1991 = vmax.f32 %v1981, 0.0
      %v1992 = vmax.f32 %v1984, 0.0
      %s1993 = scalar_lea.vmem %s7, 2
      %v1994 = vld [vmem:[%s1993] sm:$0x1]
      %v1996 = vlaneseq
      %v1997 = vshrl.u32 %v1996, 7
      %v1998 = vsub.s32 0, %v1997
      %v1999 = vrot.slane %v1994, %v1998
      %v2001 = vmul.f32 %v1987, %v1999
      %v2002 = vmul.f32 %v1988, %v1999
      %v2003 = vmul.f32 %v1989, %v1999
      %v2004 = vmul.f32 %v1990, %v1999
      %v2005 = vmul.f32 %v1991, %v1999
      %v2006 = vmul.f32 %v1992, %v1999
      %s2007 = scalar_lea.vmem %s8, 2
      %v2008 = vld [vmem:[%s2007] sm:$0x1]
      %v2010 = vlaneseq
      %v2011 = vshrl.u32 %v2010, 7
      %v2012 = vsub.s32 0, %v2011
      %v2013 = vrot.slane %v2008, %v2012
      %v2015 = vadd.f32 %v2001, %v2013
      %v2016 = vadd.f32 %v2002, %v2013
      %v2017 = vadd.f32 %v2003, %v2013
      %v2018 = vadd.f32 %v2004, %v2013
      %v2019 = vadd.f32 %v2005, %v2013
      %v2020 = vadd.f32 %v2006, %v2013
      %v2021 = vpack.c.bf16 %v2016, %v2015
      %v2022 = vpack.c.bf16 %v2018, %v2017
      %v2023 = vpack.c.bf16 %v2020, %v2019
      %s2024 = scalar_lea.vmem %s9, 12
      %v2025 = vld [vmem:[%s2024] sm:$0xf]
      %v2027 = vsel %vm1020, %v2021, 0
      %v2030 = vsel %vm1020, %v2022, 0
      %v2033 = vsel %vm1020, %v2023, 0
      %v2036 = vsel %vm1063, %v2025, 0
      %2038 = vmatprep.subr.bf16.mxu0 0
      %2039 = vmatpush1.bf16.msra.mxu0 %v2036
      %2040 = vmatprep.subr.bf16.mxu0 0
      %2041 = vmatpush1.bf16.msra.mxu0 0
      %2042 = vmatprep.subr.bf16.mxu0 0
      %2043 = vmatpush1.bf16.msra.mxu0 0
      %2044 = vmatprep.subr.bf16.mxu0 0
      %2045 = vmatpush1.bf16.msra.mxu0 0
      %2046 = vmatprep.subr.bf16.mxu0 0
      %2047 = vmatpush1.bf16.msra.mxu0 0
      %2048 = vmatprep.subr.bf16.mxu0 0
      %2049 = vmatpush1.bf16.msra.mxu0 0
      %2050 = vmatprep.subr.bf16.mxu0 0
      %2051 = vmatpush1.bf16.msra.mxu0 0
      %2052 = vmatprep.subr.bf16.mxu0 0
      %2053 = vmatpush1.bf16.msra.mxu0 0
      %2054 = vmatprep.subr.bf16.mxu0 0
      %2055 = vmatpush1.bf16.msra.mxu0 0
      %2056 = vmatprep.subr.bf16.mxu0 0
      %2057 = vmatpush1.bf16.msra.mxu0 0
      %2058 = vmatprep.subr.bf16.mxu0 0
      %2059 = vmatpush1.bf16.msra.mxu0 0
      %2060 = vmatprep.subr.bf16.mxu0 0
      %2061 = vmatpush1.bf16.msra.mxu0 0
      %2062 = vmatprep.subr.bf16.mxu0 0
      %2063 = vmatpush1.bf16.msra.mxu0 0
      %2064 = vmatprep.subr.bf16.mxu0 0
      %2065 = vmatpush1.bf16.msra.mxu0 0
      %2066 = vmatprep.subr.bf16.mxu0 0
      %2067 = vmatpush1.bf16.msra.mxu0 0
      %2068 = vmatprep.subr.bf16.mxu0 0
      %2069 = vmatpush1.bf16.msra.mxu0 0
      %2070 = vmatprep.mubr.bf16.mxu0 0
      %2071 = vmatmul.mubr.bf16.gmra.mrb[0].mxu0 %v2027
      %v2072 = vpop.f32.mrb[0].mxu0
      %v2073 = vadd.f32 0.0, %v2072
      %v2074 = vpop.f32.mrb[0].mxu0
      %v2075 = vpop.f32.mrb[0].mxu0
      %v2076 = vadd.f32 0.0, %v2075
      %v2077 = vpop.f32.mrb[0].mxu0
      %2078 = vmatprep.mubr.bf16.mxu0 0
      %2079 = vmatmul.mubr.bf16.gmra.mrb[0].mxu0 %v2030
      %v2080 = vpop.f32.mrb[0].mxu0
      %v2081 = vadd.f32 0.0, %v2080
      %v2082 = vpop.f32.mrb[0].mxu0
      %v2083 = vpop.f32.mrb[0].mxu0
      %v2084 = vadd.f32 0.0, %v2083
      %v2085 = vpop.f32.mrb[0].mxu0
      %2086 = vmatprep.mubr.bf16.mxu0 0
      %2087 = vmatmul.mubr.bf16.gmra.mrb[0].mxu0 %v2033
      %v2088 = vpop.f32.mrb[0].mxu0
      %v2089 = vadd.f32 0.0, %v2088
      %v2090 = vpop.f32.mrb[0].mxu0
      %v2091 = vpop.f32.mrb[0].mxu0
      %v2092 = vadd.f32 0.0, %v2091
      %v2093 = vpop.f32.mrb[0].mxu0
      %2094 = vdwg.mxu0
      %v2095 = vadd.f32 %v1694, %v2073
      %v2096 = vadd.f32 %v1695, %v2076
      %v2097 = vadd.f32 %v1696, %v2081
      %v2098 = vadd.f32 %v1697, %v2084
      %v2099 = vadd.f32 %v1698, %v2089
      %v2100 = vadd.f32 %v1699, %v2092
      %v2101 = vld [vmem:[%s10] sm:$0x1]
      %v2103 = vlaneseq
      %v2104 = vshrl.u32 %v2103, 7
      %v2105 = vsub.s32 0, %v2104
      %v2106 = vrot.slane %v2101, %v2105
      %v2108 = vadd.f32 %v2095, %v2106
      %v2109 = vadd.f32 %v2096, %v2106
      %v2110 = vadd.f32 %v2097, %v2106
      %v2111 = vadd.f32 %v2098, %v2106
      %v2112 = vadd.f32 %v2099, %v2106
      %v2113 = vadd.f32 %v2100, %v2106
      %v2114 = vmax.f32 %v2108, 0.0
      %v2115 = vmax.f32 %v2109, 0.0
      %v2116 = vmax.f32 %v2110, 0.0
      %v2117 = vmax.f32 %v2111, 0.0
      %v2118 = vmax.f32 %v2112, 0.0
      %v2119 = vmax.f32 %v2113, 0.0
      %v2120 = vld [vmem:[%s11] sm:$0x1]
      %v2122 = vlaneseq
      %v2123 = vshrl.u32 %v2122, 7
      %v2124 = vsub.s32 0, %v2123
      %v2125 = vrot.slane %v2120, %v2124
      %v2127 = vmul.f32 %v2114, %v2125
      %v2128 = vmul.f32 %v2115, %v2125
      %v2129 = vmul.f32 %v2116, %v2125
      %v2130 = vmul.f32 %v2117, %v2125
      %v2131 = vmul.f32 %v2118, %v2125
      %v2132 = vmul.f32 %v2119, %v2125
      %v2133 = vld [vmem:[%s12] sm:$0x1]
      %v2135 = vlaneseq
      %v2136 = vshrl.u32 %v2135, 7
      %v2137 = vsub.s32 0, %v2136
      %v2138 = vrot.slane %v2133, %v2137
      %v2140 = vadd.f32 %v2127, %v2138
      %v2141 = vadd.f32 %v2128, %v2138
      %v2142 = vadd.f32 %v2129, %v2138
      %v2143 = vadd.f32 %v2130, %v2138
      %v2144 = vadd.f32 %v2131, %v2138
      %v2145 = vadd.f32 %v2132, %v2138
      %v2146 = vsel %vm712, %v2140, 0.0
      %v2147 = vsel %vm712, %v2141, 0.0
      %v2148 = vadd.f32 %v2146, %v2147
      %v2149 = vsel %vm712, %v2142, 0.0
      %v2150 = vadd.f32 %v2148, %v2149
      %v2151 = vrot.slane %v2150, 4
      %v2152 = vadd.f32 %v2150, %v2151
      %v2153 = vrot.slane %v2152, 2
      %v2154 = vadd.f32 %v2152, %v2153
      %v2155 = vrot.slane %v2154, 1
      %v2156 = vadd.f32 %v2154, %v2155
      %v2157 = vsel %vm712, %v2143, 0.0
      %v2158 = vsel %vm712, %v2144, 0.0
      %v2159 = vadd.f32 %v2157, %v2158
      %v2160 = vsel %vm712, %v2145, 0.0
      %v2161 = vadd.f32 %v2159, %v2160
      %v2162 = vrot.slane %v2161, 4
      %v2163 = vadd.f32 %v2161, %v2162
      %v2164 = vrot.slane %v2163, 2
      %v2165 = vadd.f32 %v2163, %v2164
      %v2166 = vrot.slane %v2165, 1
      %v2167 = vadd.f32 %v2165, %v2166
      %v2168 = vrcp.pop 24.0
      %v2169 = vmul.f32 %v2156, %v2168
      %v2170 = vmul.f32 %v2167, %v2168
      %v2171 = vpack.c.bf16 %v2169, %v2169
      %v2172 = vpack.c.bf16 %v2170, %v2170
      %v2173 = vld [vmem:[%s13] sm:$0xf]
      %v2174 = vld [vmem:[%s13 + $0x4] sm:$0xf]
      %v2175 = vld [vmem:[%s13 + $0x8] sm:$0xf]
      %v2176 = vld [vmem:[%s13 + $0xc] sm:$0xf]
      %v2177 = vld [vmem:[%s14] sm:$0x1]
      %v2179 = vlaneseq
      %v2180 = vshrl.u32 %v2179, 7
      %v2181 = vsub.s32 0, %v2180
      %v2182 = vrot.slane %v2177, %v2181
      %v2186 = vunpack.c.l.b16 %v2171
      %v2187 = vunpack.c.l.b16 %v2172
      %vm2188 = vcmask 1041409
      %v2189 = vsel %vm2188, %v2187, %v2186
      %v2190 = vpack.c.b16 %v2189, %v2189
      %v2195 = vunpack.c.l.b16 %v2173
      %v2196 = vunpack.c.l.b16 %v2174
      %v2197 = vunpack.c.l.b16 %v2175
      %v2198 = vunpack.c.l.b16 %v2176
      %v2199 = vpack.c.b16 %v2196, %v2195
      %v2200 = vpack.c.b16 %v2198, %v2197
      %v2204 = vsel %vm712, %v2190, 0
      %2206 = vmatprep.subr.bf16.mxu0 0
      %2207 = vmatpush1.bf16.msra.mxu0 %v2199
      %2208 = vmatprep.subr.bf16.mxu0 0
      %2209 = vmatpush1.bf16.msra.mxu0 %v2200
      %2210 = vmatprep.subr.bf16.mxu0 0
      %2211 = vmatpush1.bf16.msra.mxu0 0
      %2212 = vmatprep.subr.bf16.mxu0 0
      %2213 = vmatpush1.bf16.msra.mxu0 0
      %2214 = vmatprep.subr.bf16.mxu0 0
      %2215 = vmatpush1.bf16.msra.mxu0 0
      %2216 = vmatprep.subr.bf16.mxu0 0
      %2217 = vmatpush1.bf16.msra.mxu0 0
      %2218 = vmatprep.subr.bf16.mxu0 0
      %2219 = vmatpush1.bf16.msra.mxu0 0
      %2220 = vmatprep.subr.bf16.mxu0 0
      %2221 = vmatpush1.bf16.msra.mxu0 0
      %2222 = vmatprep.subr.bf16.mxu0 0
      %2223 = vmatpush1.bf16.msra.mxu0 0
      %2224 = vmatprep.subr.bf16.mxu0 0
      %2225 = vmatpush1.bf16.msra.mxu0 0
      %2226 = vmatprep.subr.bf16.mxu0 0
      %2227 = vmatpush1.bf16.msra.mxu0 0
      %2228 = vmatprep.subr.bf16.mxu0 0
      %2229 = vmatpush1.bf16.msra.mxu0 0
      %2230 = vmatprep.subr.bf16.mxu0 0
      %2231 = vmatpush1.bf16.msra.mxu0 0
      %2232 = vmatprep.subr.bf16.mxu0 0
      %2233 = vmatpush1.bf16.msra.mxu0 0
      %2234 = vmatprep.subr.bf16.mxu0 0
      %2235 = vmatpush1.bf16.msra.mxu0 0
      %2236 = vmatprep.subr.bf16.mxu0 0
      %2237 = vmatpush1.bf16.msra.mxu0 0
      %2238 = vmatprep.mubr.bf16.mxu0 0
      %2239 = vmatmul.mubr.bf16.gmra.mrb[0].mxu0 %v2204
      %v2240 = vpop.f32.mrb[0].mxu0
      %v2241 = vadd.f32 %v2182, %v2240
      %v2242 = vpop.f32.mrb[0].mxu0
      %v2243 = vpop.f32.mrb[0].mxu0
      %v2244 = vpop.f32.mrb[0].mxu0
      %2245 = vdwg.mxu0
      %v2246 = vmax.f32 %v2241, 0.0
      %v2247 = vpack.c.bf16 %v2246, %v2246
      %v2248 = vld [vmem:[%s15] sm:$0xf]
      %v2249 = vld [vmem:[%s15 + $0x4] sm:$0xf]
      %v2250 = vld [vmem:[%s16] sm:$0x1]
      %v2252 = vlaneseq
      %v2253 = vshrl.u32 %v2252, 7
      %v2254 = vsub.s32 0, %v2253
      %v2255 = vrot.slane %v2250, %v2254
      %v2259 = vunpack.c.l.b16 %v2248
      %v2260 = vunpack.c.l.b16 %v2249
      %v2261 = vpack.c.b16 %v2260, %v2259
      %v2264 = vsel %vm1030, %v2247, 0
      %2266 = vmatprep.subr.bf16.mxu0 0
      %2267 = vmatpush1.bf16.msra.mxu0 %v2261
      %2268 = vmatprep.subr.bf16.mxu0 0
      %2269 = vmatpush1.bf16.msra.mxu0 0
      %2270 = vmatprep.subr.bf16.mxu0 0
      %2271 = vmatpush1.bf16.msra.mxu0 0
      %2272 = vmatprep.subr.bf16.mxu0 0
      %2273 = vmatpush1.bf16.msra.mxu0 0
      %2274 = vmatprep.subr.bf16.mxu0 0
      %2275 = vmatpush1.bf16.msra.mxu0 0
      %2276 = vmatprep.subr.bf16.mxu0 0
      %2277 = vmatpush1.bf16.msra.mxu0 0
      %2278 = vmatprep.subr.bf16.mxu0 0
      %2279 = vmatpush1.bf16.msra.mxu0 0
      %2280 = vmatprep.subr.bf16.mxu0 0
      %2281 = vmatpush1.bf16.msra.mxu0 0
      %2282 = vmatprep.subr.bf16.mxu0 0
      %2283 = vmatpush1.bf16.msra.mxu0 0
      %2284 = vmatprep.subr.bf16.mxu0 0
      %2285 = vmatpush1.bf16.msra.mxu0 0
      %2286 = vmatprep.subr.bf16.mxu0 0
      %2287 = vmatpush1.bf16.msra.mxu0 0
      %2288 = vmatprep.subr.bf16.mxu0 0
      %2289 = vmatpush1.bf16.msra.mxu0 0
      %2290 = vmatprep.subr.bf16.mxu0 0
      %2291 = vmatpush1.bf16.msra.mxu0 0
      %2292 = vmatprep.subr.bf16.mxu0 0
      %2293 = vmatpush1.bf16.msra.mxu0 0
      %2294 = vmatprep.subr.bf16.mxu0 0
      %2295 = vmatpush1.bf16.msra.mxu0 0
      %2296 = vmatprep.subr.bf16.mxu0 0
      %2297 = vmatpush1.bf16.msra.mxu0 0
      %2298 = vmatprep.mubr.bf16.mxu0 0
      %2299 = vmatmul.mubr.bf16.gmra.mrb[0].mxu0 %v2264
      %v2300 = vpop.f32.mrb[0].mxu0
      %v2301 = vadd.f32 %v2255, %v2300
      %v2302 = vpop.f32.mrb[0].mxu0
      %v2303 = vpop.f32.mrb[0].mxu0
      %v2304 = vpop.f32.mrb[0].mxu0
      %2305 = vdwg.mxu0
      %v2306 = vxor.u32 %v2301, 2147483648
      %v2307 = vmul.f32 %v2306, 1.442695
      %v2308 = vpow.pop %v2307
      %v2309 = vadd.f32 %v2308, 1.0
      %v2310 = vrcp.pop %v2309
      %v2311 = vmul.f32 1.0, %v2310
      %v2314 = vunpack.c.l.s4 1966171168
      %v2315 = vunpack.c.0.s8 %v2314
      %v2316 = vlaneseq
      %v2317 = vshrl.u32 %v2316, 7
      %v2318 = vsub.s32 %v2315, %v2317
      %v2319 = vrot.slane %v2311, %v2318
      %v2320 = vcombine.high %v2319, %v2319
      %v2322 = vunpack.c.l.s4 1966171168
      %v2323 = vunpack.c.0.s8 %v2322
      %v2324 = vlaneseq
      %v2325 = vshrl.u32 %v2324, 7
      %v2326 = vsub.s32 %v2323, %v2325
      %v2327 = vrot.slane %v2319, %v2326
      %v2329 = vunpack.c.l.s4 1966171168
      %v2330 = vunpack.c.0.s8 %v2329
      %v2331 = vlaneseq
      %v2332 = vshrl.u32 %v2331, 7
      %v2333 = vsub.s32 %v2330, %v2332
      %v2334 = vrot.slane %v2320, %v2333
      %v2335 = vlaneseq
      %v2336 = vshrl.u32 %v2335, 7
      %v2337 = vsub.s32 0, %v2336
      %v2338 = vrot.slane %v2327, %v2337
      %v2339 = vlaneseq
      %v2340 = vshrl.u32 %v2339, 7
      %v2341 = vsub.s32 0, %v2340
      %v2342 = vrot.slane %v2334, %v2341
      %v2345 = vmul.f32 %v2140, %v2338
      %v2346 = vmul.f32 %v2141, %v2338
      %v2347 = vmul.f32 %v2142, %v2338
      %v2348 = vmul.f32 %v2143, %v2342
      %v2349 = vmul.f32 %v2144, %v2342
      %v2350 = vmul.f32 %v2145, %v2342
      %v2351 = vunpack.c.l.bf16 %v553
      %v2352 = vunpack.c.l.bf16 %v554
      %v2353 = vunpack.c.l.bf16 %v555
      %v2354 = vunpack.c.l.bf16 %v556
      %v2355 = vunpack.c.l.bf16 %v557
      %v2356 = vunpack.c.l.bf16 %v558
      %v2357 = vadd.f32 %v2345, %v2351
      %v2358 = vadd.f32 %v2346, %v2352
      %v2359 = vadd.f32 %v2347, %v2353
      %v2360 = vadd.f32 %v2348, %v2354
      %v2361 = vadd.f32 %v2349, %v2355
      %v2362 = vadd.f32 %v2350, %v2356
      %v2363 = vpack.c.bf16 %v2358, %v2357
      %v2364 = vpack.c.bf16 %v2360, %v2359
      %v2365 = vpack.c.bf16 %v2362, %v2361
      %v2369 = vunpack.c.l.b16 %v2363
      %v2370 = vunpack.c.h.b16 %v2363
      %v2371 = vunpack.c.l.b16 %v2364
      %v2372 = vunpack.c.h.b16 %v2364
      %v2373 = vunpack.c.l.b16 %v2365
      %v2374 = vunpack.c.h.b16 %v2365
      %v2375 = vpack.c.b16 %v2369, %v2369
      %v2376 = vpack.c.b16 %v2370, %v2370
      %v2377 = vpack.c.b16 %v2371, %v2371
      %v2378 = vpack.c.b16 %v2372, %v2372
      %v2379 = vpack.c.b16 %v2373, %v2373
      %v2380 = vpack.c.b16 %v2374, %v2374
      %vm2387 = vcmask 257024
      %2388 = vst.msk [vmem:[%s550] sm:$0xf] %vm2387, %v2375
      %2389 = vst.msk [vmem:[%s550 + $0x4] sm:$0xf] %vm2387, %v2376
      %2390 = vst.msk [vmem:[%s550 + $0x8] sm:$0xf] %vm2387, %v2377
      %2391 = vst.msk [vmem:[%s550 + $0xc] sm:$0xf] %vm2387, %v2378
      %2392 = vst.msk [vmem:[%s550 + $0x10] sm:$0xf] %vm2387, %v2379
      %2393 = vst.msk [vmem:[%s550 + $0x14] sm:$0xf] %vm2387, %v2380
      %s2394 = smul.u32 6, %s28
      %p2395 = scmp.lt.s32.totalorder %s2394, 11
      %s2396 = scalar_select %p2395, %s2394, 11
      %s2397 = smul.addr %s2396, 4
      %s2398 = scalar_lea.vmem %s17, %s2397
      // Predicated region
      $region89: #{tpu_custom_call.1} parent=87 // pred_check
        %p2399 = pneg %p408
      $region90: #{tpu_custom_call.1} parent=87 // pred_check_branch
        %2401 = sbr.rel (%p2399) target = $region92
      $region91: #{tpu_custom_call.1} parent=87 // pred_region
        %s2402 = smul.u32 6, %s28
      $region92: #{tpu_custom_call.1} parent=87 // pred_fallthru
        _
    $region88: #{tpu_custom_call.1} parent=5 // pred_fallthru
      _
    %p2403 = scmp.le.s32.totalorder 2, %s23
    // Predicated region
    $region93: #{tpu_custom_call.1} parent=5 // pred_check
      %p2404 = pneg %p2403
    $region94: #{tpu_custom_call.1} parent=5 // pred_check_branch
      %2406 = sbr.rel (%p2404) target = $region96
    $region95: #{tpu_custom_call.1} parent=5 // pred_region
      %s2407 = ssub.s32 %s23, 2
      // Predicated region
      $region97: #{tpu_custom_call.1} parent=95 // pred_check
        %p2408 = pneg %p414
      $region98: #{tpu_custom_call.1} parent=95 // pred_check_branch
        %2410 = sbr.rel (%p2408) target = $region100
      $region99: #{tpu_custom_call.1} parent=95 // pred_region
        %s2411 = smul.u32 6, %s29
        %p2412 = scmp.lt.s32.totalorder %s2411, 11
        %s2413 = scalar_select %p2412, %s2411, 11
        %s2414 = smul.addr %s2413, 4
        %s2415 = scalar_lea.vmem %s17, %s2414
      $region100: #{tpu_custom_call.1} parent=95 // pred_fallthru
        _
    $region96: #{tpu_custom_call.1} parent=5 // pred_fallthru
      _
  $region6: #{tpu_custom_call.1} parent=0 // loop_footer
    %s27 = sadd.s32 1, %s23
  $region7: #{tpu_custom_call.1} parent=0 // loop_footer_branch
    %22 = sbr.rel target = $region3
  $region8: #{tpu_custom_call.1} parent=0 // loop_exit
    _

// kernel: tpu_custom_call.1
$region0: #{tpu_custom_call.1}
  #allocation0 [shape = 'u32[]', space=smem, size = 0x4, offset = 0x4, fixed_abs, tag = 'smem constant byte address 0x4 - core index']
  #allocation1 [shape = 'u32[144,128]{1,0:T(1,128)}', space=vmem, size = 0x12000, scoped, tag = 'internal scratch']
  %s0 = inlined_call_operand.vmem [shape: bf16[96,32], index: 0, kind: input, shape index: {}]
  %s1 = inlined_call_operand.vmem [shape: bf16[4,32,8], index: 1, kind: input, shape index: {}]
  %s2 = inlined_call_operand.vmem [shape: f32[4,1,8], index: 2, kind: input, shape index: {}]
  %s3 = inlined_call_operand.vmem [shape: f32[4,1,8], index: 3, kind: input, shape index: {}]
  %s4 = inlined_call_operand.vmem [shape: f32[4,1,8], index: 4, kind: input, shape index: {}]
  %s5 = inlined_call_operand.vmem [shape: bf16[3,24,8], index: 5, kind: input, shape index: {}]
  %s6 = inlined_call_operand.vmem [shape: f32[3,1,8], index: 6, kind: input, shape index: {}]
  %s7 = inlined_call_operand.vmem [shape: f32[3,1,8], index: 7, kind: input, shape index: {}]
  %s8 = inlined_call_operand.vmem [shape: f32[3,1,8], index: 8, kind: input, shape index: {}]
  %s9 = inlined_call_operand.vmem [shape: bf16[4,8,32], index: 9, kind: input, shape index: {}]
  %s10 = inlined_call_operand.vmem [shape: f32[1,32], index: 10, kind: input, shape index: {}]
  %s11 = inlined_call_operand.vmem [shape: f32[1,32], index: 11, kind: input, shape index: {}]
  %s12 = inlined_call_operand.vmem [shape: f32[1,32], index: 12, kind: input, shape index: {}]
  %s13 = inlined_call_operand.vmem [shape: bf16[32,16], index: 13, kind: input, shape index: {}]
  %s14 = inlined_call_operand.vmem [shape: f32[1,16], index: 14, kind: input, shape index: {}]
  %s15 = inlined_call_operand.vmem [shape: bf16[16,32], index: 15, kind: input, shape index: {}]
  %s16 = inlined_call_operand.vmem [shape: f32[1,32], index: 16, kind: input, shape index: {}]
  %s17 = inlined_call_operand.vmem [shape: bf16[96,32], index: 17, kind: output, shape index: {}]
  %s18 = sld [smem:[#allocation0]]
  $region101: #{tpu_custom_call.1} parent=0
    _
  %s20 = ssub.s32 1, %s18
  %s21 = scalar_select 0, %s20, %s18
  loop: start=0, step=1, limit=4
  $region2: #{tpu_custom_call.1} parent=0 // loop_pre_header
    _
  $region3: #{tpu_custom_call.1} parent=0 // loop_header
    %s23 = sphi 0, %s27
    %p24 = scmp.ge.s32.totalorder %s23, 4
    %s33 = sphi 0, %s35
    %s36 = sphi 0, %s33
    %s37 = sphi 0, %s36
    %s53 = sphi 0, %s37
    %s57 = sphi 0, %s57
    %s59 = sphi 0, %s57
    %s60 = sphi 0, %s59
    %s74 = sphi 0, %s60
    %s78 = sphi 0, %s78
    %s80 = sphi 0, %s78
    %s81 = sphi 0, %s80
    %s95 = sphi 0, %s81
    %s99 = sphi 0, %s99
    %s101 = sphi 0, %s99
    %s102 = sphi 0, %s101
    %s116 = sphi 0, %s102
    %s120 = sphi 0, %s120
    %s122 = sphi 0, %s120
    %s123 = sphi 0, %s122
    %s137 = sphi 0, %s123
    %s141 = sphi 0, %s141
    %s143 = sphi 0, %s141
    %s144 = sphi 0, %s143
    %s158 = sphi 0, %s144
    %s162 = sphi 0, %s162
    %s164 = sphi 0, %s162
    %s165 = sphi 0, %s164
    %s179 = sphi 0, %s165
    %s183 = sphi 0, %s183
    %s185 = sphi 0, %s183
    %s186 = sphi 0, %s185
    %s200 = sphi 0, %s186
    %s204 = sphi 0, %s204
    %s206 = sphi 0, %s204
    %s207 = sphi 0, %s206
    %s221 = sphi 0, %s207
    %s225 = sphi 0, %s225
    %s227 = sphi 0, %s225
    %s228 = sphi 0, %s227
    %s242 = sphi 0, %s228
    %s246 = sphi 0, %s246
    %s248 = sphi 0, %s246
    %s249 = sphi 0, %s248
    %s263 = sphi 0, %s249
    %s267 = sphi 0, %s267
    %s269 = sphi 0, %s267
    %s270 = sphi 0, %s269
    %s284 = sphi 0, %s270
    %s288 = sphi 0, %s288
    %s290 = sphi 0, %s288
    %s291 = sphi 0, %s290
    %s305 = sphi 0, %s291
    %s309 = sphi 0, %s309
    %s311 = sphi 0, %s309
    %s312 = sphi 0, %s311
    %s326 = sphi 0, %s312
    %s330 = sphi 0, %s330
    %s332 = sphi 0, %s330
    %s333 = sphi 0, %s332
    %s347 = sphi 0, %s333
    %s351 = sphi 0, %s351
    %s353 = sphi 0, %s351
    %s354 = sphi 0, %s353
    %s368 = sphi 0, %s354
    %s372 = sphi 0, %s372
    %s374 = sphi 0, %s372
    %s375 = sphi 0, %s374
    %s389 = sphi 0, %s375
    %s395 = sphi 0, %s397
    %s398 = sphi 0, %s395
    %s399 = sphi 0, %s398
    %s415 = sphi 0, %s399
  $region4: #{tpu_custom_call.1} parent=0 // loop_header_branch
    %26 = sbr.rel (%p24) target = $region8
  $region5: #{tpu_custom_call.1} parent=0 // loop_body
    %s28 = ssub.s32 %s23, 1
    %s29 = ssub.s32 %s23, 2
    %s30 = sadd.s32 %s23, 1
    %s31 = ssub.s32 %s23, %s30
    %p32 = scmp.eq.s32.totalorder %s31, 0
    %s34 = sadd.s32 %s33, 1
    %s35 = scalar_select %p32, %s33, %s34
    %p38 = pneg %p32
    %p39 = scmp.eq.s32.totalorder %s23, 1
    %p40 = por %p38, %p39
    %p41 = scmp.ne.s32.totalorder %s33, %s36
    %p42 = scmp.eq.s32.totalorder %s23, 0
    %p43 = por %p41, %p42
    %p44 = scmp.ne.s32.totalorder %s33, %s36
    %p45 = scmp.eq.s32.totalorder %s28, 1
    %p46 = por %p44, %p45
    %p47 = scmp.ne.s32.totalorder %s36, %s37
    %p48 = scmp.eq.s32.totalorder %s28, 0
    %p49 = por %p47, %p48
    %p50 = scmp.ne.s32.totalorder %s36, %s37
    %p51 = scmp.eq.s32.totalorder %s29, 1
    %p52 = por %p50, %p51
    %p54 = scmp.ne.s32.totalorder %s37, %s53
    %p55 = scmp.eq.s32.totalorder %s29, 0
    %p56 = por %p54, %p55
    %s58 = sadd.s32 %s57, 1
    %p61 = scmp.eq.s32.totalorder %s23, 1
    %p62 = scmp.ne.s32.totalorder %s57, %s59
    %p63 = scmp.eq.s32.totalorder %s23, 0
    %p64 = por %p62, %p63
    %p65 = scmp.ne.s32.totalorder %s57, %s59
    %p66 = scmp.eq.s32.totalorder %s28, 1
    %p67 = por %p65, %p66
    %p68 = scmp.ne.s32.totalorder %s59, %s60
    %p69 = scmp.eq.s32.totalorder %s28, 0
    %p70 = por %p68, %p69
    %p71 = scmp.ne.s32.totalorder %s59, %s60
    %p72 = scmp.eq.s32.totalorder %s29, 1
    %p73 = por %p71, %p72
    %p75 = scmp.ne.s32.totalorder %s60, %s74
    %p76 = scmp.eq.s32.totalorder %s29, 0
    %p77 = por %p75, %p76
    %s79 = sadd.s32 %s78, 1
    %p82 = scmp.eq.s32.totalorder %s23, 1
    %p83 = scmp.ne.s32.totalorder %s78, %s80
    %p84 = scmp.eq.s32.totalorder %s23, 0
    %p85 = por %p83, %p84
    %p86 = scmp.ne.s32.totalorder %s78, %s80
    %p87 = scmp.eq.s32.totalorder %s28, 1
    %p88 = por %p86, %p87
    %p89 = scmp.ne.s32.totalorder %s80, %s81
    %p90 = scmp.eq.s32.totalorder %s28, 0
    %p91 = por %p89, %p90
    %p92 = scmp.ne.s32.totalorder %s80, %s81
    %p93 = scmp.eq.s32.totalorder %s29, 1
    %p94 = por %p92, %p93
    %p96 = scmp.ne.s32.totalorder %s81, %s95
    %p97 = scmp.eq.s32.totalorder %s29, 0
    %p98 = por %p96, %p97
    %s100 = sadd.s32 %s99, 1
    %p103 = scmp.eq.s32.totalorder %s23, 1
    %p104 = scmp.ne.s32.totalorder %s99, %s101
    %p105 = scmp.eq.s32.totalorder %s23, 0
    %p106 = por %p104, %p105
    %p107 = scmp.ne.s32.totalorder %s99, %s101
    %p108 = scmp.eq.s32.totalorder %s28, 1
    %p109 = por %p107, %p108
    %p110 = scmp.ne.s32.totalorder %s101, %s102
    %p111 = scmp.eq.s32.totalorder %s28, 0
    %p112 = por %p110, %p111
    %p113 = scmp.ne.s32.totalorder %s101, %s102
    %p114 = scmp.eq.s32.totalorder %s29, 1
    %p115 = por %p113, %p114
    %p117 = scmp.ne.s32.totalorder %s102, %s116
    %p118 = scmp.eq.s32.totalorder %s29, 0
    %p119 = por %p117, %p118
    %s121 = sadd.s32 %s120, 1
    %p124 = scmp.eq.s32.totalorder %s23, 1
    %p125 = scmp.ne.s32.totalorder %s120, %s122
    %p126 = scmp.eq.s32.totalorder %s23, 0
    %p127 = por %p125, %p126
    %p128 = scmp.ne.s32.totalorder %s120, %s122
    %p129 = scmp.eq.s32.totalorder %s28, 1
    %p130 = por %p128, %p129
    %p131 = scmp.ne.s32.totalorder %s122, %s123
    %p132 = scmp.eq.s32.totalorder %s28, 0
    %p133 = por %p131, %p132
    %p134 = scmp.ne.s32.totalorder %s122, %s123
    %p135 = scmp.eq.s32.totalorder %s29, 1
    %p136 = por %p134, %p135
    %p138 = scmp.ne.s32.totalorder %s123, %s137
    %p139 = scmp.eq.s32.totalorder %s29, 0
    %p140 = por %p138, %p139
    %s142 = sadd.s32 %s141, 1
    %p145 = scmp.eq.s32.totalorder %s23, 1
    %p146 = scmp.ne.s32.totalorder %s141, %s143
    %p147 = scmp.eq.s32.totalorder %s23, 0
    %p148 = por %p146, %p147
    %p149 = scmp.ne.s32.totalorder %s141, %s143
    %p150 = scmp.eq.s32.totalorder %s28, 1
    %p151 = por %p149, %p150
    %p152 = scmp.ne.s32.totalorder %s143, %s144
    %p153 = scmp.eq.s32.totalorder %s28, 0
    %p154 = por %p152, %p153
    %p155 = scmp.ne.s32.totalorder %s143, %s144
    %p156 = scmp.eq.s32.totalorder %s29, 1
    %p157 = por %p155, %p156
    %p159 = scmp.ne.s32.totalorder %s144, %s158
    %p160 = scmp.eq.s32.totalorder %s29, 0
    %p161 = por %p159, %p160
    %s163 = sadd.s32 %s162, 1
    %p166 = scmp.eq.s32.totalorder %s23, 1
    %p167 = scmp.ne.s32.totalorder %s162, %s164
    %p168 = scmp.eq.s32.totalorder %s23, 0
    %p169 = por %p167, %p168
    %p170 = scmp.ne.s32.totalorder %s162, %s164
    %p171 = scmp.eq.s32.totalorder %s28, 1
    %p172 = por %p170, %p171
    %p173 = scmp.ne.s32.totalorder %s164, %s165
    %p174 = scmp.eq.s32.totalorder %s28, 0
    %p175 = por %p173, %p174
    %p176 = scmp.ne.s32.totalorder %s164, %s165
    %p177 = scmp.eq.s32.totalorder %s29, 1
    %p178 = por %p176, %p177
    %p180 = scmp.ne.s32.totalorder %s165, %s179
    %p181 = scmp.eq.s32.totalorder %s29, 0
    %p182 = por %p180, %p181
    %s184 = sadd.s32 %s183, 1
    %p187 = scmp.eq.s32.totalorder %s23, 1
    %p188 = scmp.ne.s32.totalorder %s183, %s185
    %p189 = scmp.eq.s32.totalorder %s23, 0
    %p190 = por %p188, %p189
    %p191 = scmp.ne.s32.totalorder %s183, %s185
    %p192 = scmp.eq.s32.totalorder %s28, 1
    %p193 = por %p191, %p192
    %p194 = scmp.ne.s32.totalorder %s185, %s186
    %p195 = scmp.eq.s32.totalorder %s28, 0
    %p196 = por %p194, %p195
    %p197 = scmp.ne.s32.totalorder %s185, %s186
    %p198 = scmp.eq.s32.totalorder %s29, 1
    %p199 = por %p197, %p198
    %p201 = scmp.ne.s32.totalorder %s186, %s200
    %p202 = scmp.eq.s32.totalorder %s29, 0
    %p203 = por %p201, %p202
    %s205 = sadd.s32 %s204, 1
    %p208 = scmp.eq.s32.totalorder %s23, 1
    %p209 = scmp.ne.s32.totalorder %s204, %s206
    %p210 = scmp.eq.s32.totalorder %s23, 0
    %p211 = por %p209, %p210
    %p212 = scmp.ne.s32.totalorder %s204, %s206
    %p213 = scmp.eq.s32.totalorder %s28, 1
    %p214 = por %p212, %p213
    %p215 = scmp.ne.s32.totalorder %s206, %s207
    %p216 = scmp.eq.s32.totalorder %s28, 0
    %p217 = por %p215, %p216
    %p218 = scmp.ne.s32.totalorder %s206, %s207
    %p219 = scmp.eq.s32.totalorder %s29, 1
    %p220 = por %p218, %p219
    %p222 = scmp.ne.s32.totalorder %s207, %s221
    %p223 = scmp.eq.s32.totalorder %s29, 0
    %p224 = por %p222, %p223
    %s226 = sadd.s32 %s225, 1
    %p229 = scmp.eq.s32.totalorder %s23, 1
    %p230 = scmp.ne.s32.totalorder %s225, %s227
    %p231 = scmp.eq.s32.totalorder %s23, 0
    %p232 = por %p230, %p231
    %p233 = scmp.ne.s32.totalorder %s225, %s227
    %p234 = scmp.eq.s32.totalorder %s28, 1
    %p235 = por %p233, %p234
    %p236 = scmp.ne.s32.totalorder %s227, %s228
    %p237 = scmp.eq.s32.totalorder %s28, 0
    %p238 = por %p236, %p237
    %p239 = scmp.ne.s32.totalorder %s227, %s228
    %p240 = scmp.eq.s32.totalorder %s29, 1
    %p241 = por %p239, %p240
    %p243 = scmp.ne.s32.totalorder %s228, %s242
    %p244 = scmp.eq.s32.totalorder %s29, 0
    %p245 = por %p243, %p244
    %s247 = sadd.s32 %s246, 1
    %p250 = scmp.eq.s32.totalorder %s23, 1
    %p251 = scmp.ne.s32.totalorder %s246, %s248
    %p252 = scmp.eq.s32.totalorder %s23, 0
    %p253 = por %p251, %p252
    %p254 = scmp.ne.s32.totalorder %s246, %s248
    %p255 = scmp.eq.s32.totalorder %s28, 1
    %p256 = por %p254, %p255
    %p257 = scmp.ne.s32.totalorder %s248, %s249
    %p258 = scmp.eq.s32.totalorder %s28, 0
    %p259 = por %p257, %p258
    %p260 = scmp.ne.s32.totalorder %s248, %s249
    %p261 = scmp.eq.s32.totalorder %s29, 1
    %p262 = por %p260, %p261
    %p264 = scmp.ne.s32.totalorder %s249, %s263
    %p265 = scmp.eq.s32.totalorder %s29, 0
    %p266 = por %p264, %p265
    %s268 = sadd.s32 %s267, 1
    %p271 = scmp.eq.s32.totalorder %s23, 1
    %p272 = scmp.ne.s32.totalorder %s267, %s269
    %p273 = scmp.eq.s32.totalorder %s23, 0
    %p274 = por %p272, %p273
    %p275 = scmp.ne.s32.totalorder %s267, %s269
    %p276 = scmp.eq.s32.totalorder %s28, 1
    %p277 = por %p275, %p276
    %p278 = scmp.ne.s32.totalorder %s269, %s270
    %p279 = scmp.eq.s32.totalorder %s28, 0
    %p280 = por %p278, %p279
    %p281 = scmp.ne.s32.totalorder %s269, %s270
    %p282 = scmp.eq.s32.totalorder %s29, 1
    %p283 = por %p281, %p282
    %p285 = scmp.ne.s32.totalorder %s270, %s284
    %p286 = scmp.eq.s32.totalorder %s29, 0
    %p287 = por %p285, %p286
    %s289 = sadd.s32 %s288, 1
    %p292 = scmp.eq.s32.totalorder %s23, 1
    %p293 = scmp.ne.s32.totalorder %s288, %s290
    %p294 = scmp.eq.s32.totalorder %s23, 0
    %p295 = por %p293, %p294
    %p296 = scmp.ne.s32.totalorder %s288, %s290
    %p297 = scmp.eq.s32.totalorder %s28, 1
    %p298 = por %p296, %p297
    %p299 = scmp.ne.s32.totalorder %s290, %s291
    %p300 = scmp.eq.s32.totalorder %s28, 0
    %p301 = por %p299, %p300
    %p302 = scmp.ne.s32.totalorder %s290, %s291
    %p303 = scmp.eq.s32.totalorder %s29, 1
    %p304 = por %p302, %p303
    %p306 = scmp.ne.s32.totalorder %s291, %s305
    %p307 = scmp.eq.s32.totalorder %s29, 0
    %p308 = por %p306, %p307
    %s310 = sadd.s32 %s309, 1
    %p313 = scmp.eq.s32.totalorder %s23, 1
    %p314 = scmp.ne.s32.totalorder %s309, %s311
    %p315 = scmp.eq.s32.totalorder %s23, 0
    %p316 = por %p314, %p315
    %p317 = scmp.ne.s32.totalorder %s309, %s311
    %p318 = scmp.eq.s32.totalorder %s28, 1
    %p319 = por %p317, %p318
    %p320 = scmp.ne.s32.totalorder %s311, %s312
    %p321 = scmp.eq.s32.totalorder %s28, 0
    %p322 = por %p320, %p321
    %p323 = scmp.ne.s32.totalorder %s311, %s312
    %p324 = scmp.eq.s32.totalorder %s29, 1
    %p325 = por %p323, %p324
    %p327 = scmp.ne.s32.totalorder %s312, %s326
    %p328 = scmp.eq.s32.totalorder %s29, 0
    %p329 = por %p327, %p328
    %s331 = sadd.s32 %s330, 1
    %p334 = scmp.eq.s32.totalorder %s23, 1
    %p335 = scmp.ne.s32.totalorder %s330, %s332
    %p336 = scmp.eq.s32.totalorder %s23, 0
    %p337 = por %p335, %p336
    %p338 = scmp.ne.s32.totalorder %s330, %s332
    %p339 = scmp.eq.s32.totalorder %s28, 1
    %p340 = por %p338, %p339
    %p341 = scmp.ne.s32.totalorder %s332, %s333
    %p342 = scmp.eq.s32.totalorder %s28, 0
    %p343 = por %p341, %p342
    %p344 = scmp.ne.s32.totalorder %s332, %s333
    %p345 = scmp.eq.s32.totalorder %s29, 1
    %p346 = por %p344, %p345
    %p348 = scmp.ne.s32.totalorder %s333, %s347
    %p349 = scmp.eq.s32.totalorder %s29, 0
    %p350 = por %p348, %p349
    %s352 = sadd.s32 %s351, 1
    %p355 = scmp.eq.s32.totalorder %s23, 1
    %p356 = scmp.ne.s32.totalorder %s351, %s353
    %p357 = scmp.eq.s32.totalorder %s23, 0
    %p358 = por %p356, %p357
    %p359 = scmp.ne.s32.totalorder %s351, %s353
    %p360 = scmp.eq.s32.totalorder %s28, 1
    %p361 = por %p359, %p360
    %p362 = scmp.ne.s32.totalorder %s353, %s354
    %p363 = scmp.eq.s32.totalorder %s28, 0
    %p364 = por %p362, %p363
    %p365 = scmp.ne.s32.totalorder %s353, %s354
    %p366 = scmp.eq.s32.totalorder %s29, 1
    %p367 = por %p365, %p366
    %p369 = scmp.ne.s32.totalorder %s354, %s368
    %p370 = scmp.eq.s32.totalorder %s29, 0
    %p371 = por %p369, %p370
    %s373 = sadd.s32 %s372, 1
    %p376 = scmp.eq.s32.totalorder %s23, 1
    %p377 = scmp.ne.s32.totalorder %s372, %s374
    %p378 = scmp.eq.s32.totalorder %s23, 0
    %p379 = por %p377, %p378
    %p380 = scmp.ne.s32.totalorder %s372, %s374
    %p381 = scmp.eq.s32.totalorder %s28, 1
    %p382 = por %p380, %p381
    %p383 = scmp.ne.s32.totalorder %s374, %s375
    %p384 = scmp.eq.s32.totalorder %s28, 0
    %p385 = por %p383, %p384
    %p386 = scmp.ne.s32.totalorder %s374, %s375
    %p387 = scmp.eq.s32.totalorder %s29, 1
    %p388 = por %p386, %p387
    %p390 = scmp.ne.s32.totalorder %s375, %s389
    %p391 = scmp.eq.s32.totalorder %s29, 0
    %p392 = por %p390, %p391
    %s393 = ssub.s32 %s23, %s30
    %p394 = scmp.eq.s32.totalorder %s393, 0
    %s396 = sadd.s32 %s395, 1
    %s397 = scalar_select %p394, %s395, %s396
    %p400 = pneg %p394
    %p401 = scmp.eq.s32.totalorder %s23, 1
    %p402 = por %p400, %p401
    %p403 = scmp.ne.s32.totalorder %s395, %s398
    %p404 = scmp.eq.s32.totalorder %s23, 0
    %p405 = por %p403, %p404
    %p406 = scmp.ne.s32.totalorder %s395, %s398
    %p407 = scmp.eq.s32.totalorder %s28, 1
    %p408 = por %p406, %p407
    %p409 = scmp.ne.s32.totalorder %s398, %s399
    %p410 = scmp.eq.s32.totalorder %s28, 0
    %p411 = por %p409, %p410
    %p412 = scmp.ne.s32.totalorder %s398, %s399
    %p413 = scmp.eq.s32.totalorder %s29, 1
    %p414 = por %p412, %p413
    %p416 = scmp.ne.s32.totalorder %s399, %s415
    %p417 = scmp.eq.s32.totalorder %s29, 0
    %p418 = por %p416, %p417
    %p419 = scmp.le.s32.totalorder 1, %s23
    %p420 = scmp.lt.s32.totalorder %s23, 3
    %p421 = pnand %p419, %p420
    %p422 = pneg %p421
    // Predicated region
    $region9: #{tpu_custom_call.1} parent=5 // pred_check
      _
    $region10: #{tpu_custom_call.1} parent=5 // pred_check_branch
      %424 = sbr.rel (%p421) target = $region12
    $region11: #{tpu_custom_call.1} parent=5 // pred_region
      %s425 = ssub.s32 %s23, 1
      // Predicated region
      $region13: #{tpu_custom_call.1} parent=11 // pred_check
        %p426 = pneg %p70
      $region14: #{tpu_custom_call.1} parent=11 // pred_check_branch
        %428 = sbr.rel (%p426) target = $region16
      $region15: #{tpu_custom_call.1} parent=11 // pred_region
        _
      $region16: #{tpu_custom_call.1} parent=11 // pred_fallthru
        _
      // Predicated region
      $region17: #{tpu_custom_call.1} parent=11 // pred_check
        %p429 = pneg %p91
      $region18: #{tpu_custom_call.1} parent=11 // pred_check_branch
        %431 = sbr.rel (%p429) target = $region20
      $region19: #{tpu_custom_call.1} parent=11 // pred_region
        _
      $region20: #{tpu_custom_call.1} parent=11 // pred_fallthru
        _
      // Predicated region
      $region21: #{tpu_custom_call.1} parent=11 // pred_check
        %p432 = pneg %p112
      $region22: #{tpu_custom_call.1} parent=11 // pred_check_branch
        %434 = sbr.rel (%p432) target = $region24
      $region23: #{tpu_custom_call.1} parent=11 // pred_region
        _
      $region24: #{tpu_custom_call.1} parent=11 // pred_fallthru
        _
      // Predicated region
      $region25: #{tpu_custom_call.1} parent=11 // pred_check
        %p435 = pneg %p133
      $region26: #{tpu_custom_call.1} parent=11 // pred_check_branch
        %437 = sbr.rel (%p435) target = $region28
      $region27: #{tpu_custom_call.1} parent=11 // pred_region
        _
      $region28: #{tpu_custom_call.1} parent=11 // pred_fallthru
        _
      // Predicated region
      $region29: #{tpu_custom_call.1} parent=11 // pred_check
        %p438 = pneg %p154
      $region30: #{tpu_custom_call.1} parent=11 // pred_check_branch
        %440 = sbr.rel (%p438) target = $region32
      $region31: #{tpu_custom_call.1} parent=11 // pred_region
        _
      $region32: #{tpu_custom_call.1} parent=11 // pred_fallthru
        _
      // Predicated region
      $region33: #{tpu_custom_call.1} parent=11 // pred_check
        %p441 = pneg %p175
      $region34: #{tpu_custom_call.1} parent=11 // pred_check_branch
        %443 = sbr.rel (%p441) target = $region36
      $region35: #{tpu_custom_call.1} parent=11 // pred_region
        _
      $region36: #{tpu_custom_call.1} parent=11 // pred_fallthru
        _
      // Predicated region
      $region37: #{tpu_custom_call.1} parent=11 // pred_check
        %p444 = pneg %p196
      $region38: #{tpu_custom_call.1} parent=11 // pred_check_branch
        %446 = sbr.rel (%p444) target = $region40
      $region39: #{tpu_custom_call.1} parent=11 // pred_region
        _
      $region40: #{tpu_custom_call.1} parent=11 // pred_fallthru
        _
      // Predicated region
      $region41: #{tpu_custom_call.1} parent=11 // pred_check
        %p447 = pneg %p217
      $region42: #{tpu_custom_call.1} parent=11 // pred_check_branch
        %449 = sbr.rel (%p447) target = $region44
      $region43: #{tpu_custom_call.1} parent=11 // pred_region
        _
      $region44: #{tpu_custom_call.1} parent=11 // pred_fallthru
        _
      // Predicated region
      $region45: #{tpu_custom_call.1} parent=11 // pred_check
        %p450 = pneg %p238
      $region46: #{tpu_custom_call.1} parent=11 // pred_check_branch
        %452 = sbr.rel (%p450) target = $region48
      $region47: #{tpu_custom_call.1} parent=11 // pred_region
        _
      $region48: #{tpu_custom_call.1} parent=11 // pred_fallthru
        _
      // Predicated region
      $region49: #{tpu_custom_call.1} parent=11 // pred_check
        %p453 = pneg %p259
      $region50: #{tpu_custom_call.1} parent=11 // pred_check_branch
        %455 = sbr.rel (%p453) target = $region52
      $region51: #{tpu_custom_call.1} parent=11 // pred_region
        _
      $region52: #{tpu_custom_call.1} parent=11 // pred_fallthru
        _
      // Predicated region
      $region53: #{tpu_custom_call.1} parent=11 // pred_check
        %p456 = pneg %p280
      $region54: #{tpu_custom_call.1} parent=11 // pred_check_branch
        %458 = sbr.rel (%p456) target = $region56
      $region55: #{tpu_custom_call.1} parent=11 // pred_region
        _
      $region56: #{tpu_custom_call.1} parent=11 // pred_fallthru
        _
      // Predicated region
      $region57: #{tpu_custom_call.1} parent=11 // pred_check
        %p459 = pneg %p301
      $region58: #{tpu_custom_call.1} parent=11 // pred_check_branch
        %461 = sbr.rel (%p459) target = $region60
      $region59: #{tpu_custom_call.1} parent=11 // pred_region
        _
      $region60: #{tpu_custom_call.1} parent=11 // pred_fallthru
        _
      // Predicated region
      $region61: #{tpu_custom_call.1} parent=11 // pred_check
        %p462 = pneg %p322
      $region62: #{tpu_custom_call.1} parent=11 // pred_check_branch
        %464 = sbr.rel (%p462) target = $region64
      $region63: #{tpu_custom_call.1} parent=11 // pred_region
        _
      $region64: #{tpu_custom_call.1} parent=11 // pred_fallthru
        _
      // Predicated region
      $region65: #{tpu_custom_call.1} parent=11 // pred_check
        %p465 = pneg %p343
      $region66: #{tpu_custom_call.1} parent=11 // pred_check_branch
        %467 = sbr.rel (%p465) target = $region68
      $region67: #{tpu_custom_call.1} parent=11 // pred_region
        _
      $region68: #{tpu_custom_call.1} parent=11 // pred_fallthru
        _
      // Predicated region
      $region69: #{tpu_custom_call.1} parent=11 // pred_check
        %p468 = pneg %p364
      $region70: #{tpu_custom_call.1} parent=11 // pred_check_branch
        %470 = sbr.rel (%p468) target = $region72
      $region71: #{tpu_custom_call.1} parent=11 // pred_region
        _
      $region72: #{tpu_custom_call.1} parent=11 // pred_fallthru
        _
      // Predicated region
      $region73: #{tpu_custom_call.1} parent=11 // pred_check
        %p471 = pneg %p385
      $region74: #{tpu_custom_call.1} parent=11 // pred_check_branch
        %473 = sbr.rel (%p471) target = $region76
      $region75: #{tpu_custom_call.1} parent=11 // pred_region
        _
      $region76: #{tpu_custom_call.1} parent=11 // pred_fallthru
        _
    $region12: #{tpu_custom_call.1} parent=5 // pred_fallthru
      _
    %p474 = scmp.lt.s32.totalorder %s23, 2
    // Predicated region
    $region77: #{tpu_custom_call.1} parent=5 // pred_check
      %p475 = pneg %p474
    $region78: #{tpu_custom_call.1} parent=5 // pred_check_branch
      %477 = sbr.rel (%p475) target = $region80
    $region79: #{tpu_custom_call.1} parent=5 // pred_region
      // Predicated region
      $region81: #{tpu_custom_call.1} parent=79 // pred_check
        %p478 = pneg %p43
      $region82: #{tpu_custom_call.1} parent=79 // pred_check_branch
        %480 = sbr.rel (%p478) target = $region84
      $region83: #{tpu_custom_call.1} parent=79 // pred_region
        %s481 = smul.u32 6, %s23
        %p482 = scmp.lt.s32.totalorder %s481, 11
        %s483 = scalar_select %p482, %s481, 11
        %s484 = smul.addr %s483, 4
        %s485 = scalar_lea.vmem %s0, %s484
        %s486 = smul.u32 6, %s23
      $region84: #{tpu_custom_call.1} parent=79 // pred_fallthru
        _
    $region80: #{tpu_custom_call.1} parent=5 // pred_fallthru
      _
    %p487 = scmp.le.s32.totalorder 1, %s23
    %p488 = scmp.lt.s32.totalorder %s23, 3
    %p489 = pnand %p487, %p488
    %p490 = pneg %p489
    // Predicated region
    $region85: #{tpu_custom_call.1} parent=5 // pred_check
      _
    $region86: #{tpu_custom_call.1} parent=5 // pred_check_branch
      %492 = sbr.rel (%p489) target = $region88
    $region87: #{tpu_custom_call.1} parent=5 // pred_region
      %s493 = ssub.s32 %s23, 1
      %s494 = smul.u32 6, %s28
      %p495 = scmp.lt.s32.totalorder %s494, 11
      %s496 = scalar_select %p495, %s494, 11
      %s497 = smul.addr %s496, 4
      %s498 = scalar_lea.vmem %s0, %s497
      %p499 = pneg %p49
      %p500 = pneg %p46
      %p501 = pneg %p70
      %p502 = pneg %p67
      %p503 = pneg %p91
      %p504 = pneg %p88
      %p505 = pneg %p112
      %p506 = pneg %p109
      %p507 = pneg %p133
      %p508 = pneg %p130
      %p509 = pneg %p154
      %p510 = pneg %p151
      %p511 = pneg %p175
      %p512 = pneg %p172
      %p513 = pneg %p196
      %p514 = pneg %p193
      %p515 = pneg %p217
      %p516 = pneg %p214
      %p517 = pneg %p238
      %p518 = pneg %p235
      %p519 = pneg %p259
      %p520 = pneg %p256
      %p521 = pneg %p280
      %p522 = pneg %p277
      %p523 = pneg %p301
      %p524 = pneg %p298
      %p525 = pneg %p322
      %p526 = pneg %p319
      %p527 = pneg %p343
      %p528 = pneg %p340
      %p529 = pneg %p364
      %p530 = pneg %p361
      %p531 = pneg %p385
      %p532 = pneg %p382
      %p533 = pneg %p411
      %p534 = pneg %p408
      %s535 = smul.u32 6, %s28
      %p536 = scmp.lt.s32.totalorder %s535, 11
      %s537 = scalar_select %p536, %s535, 11
      %s538 = smul.addr %s537, 4
      %s539 = scalar_lea.vmem %s17, %s538
      %s540 = smul.u32 6, %s28
      %p541 = scmp.lt.s32.totalorder %s540, 11
      %s542 = scalar_select %p541, %s540, 11
      %s543 = smul.addr %s542, 4
      %s544 = scalar_lea.vmem %s0, %s543
      %s545 = smul.u32 6, %s28
      %s546 = smul.u32 6, %s28
      %p547 = scmp.lt.s32.totalorder %s546, 11
      %s548 = scalar_select %p547, %s546, 11
      %s549 = smul.addr %s548, 4
      %s550 = scalar_lea.vmem %s17, %s549
      %s551 = smul.u32 6, %s28
      %v553 = vld [vmem:[%s544] sm:$0xf]
      %v554 = vld [vmem:[%s544 + $0x4] sm:$0xf]
      %v555 = vld [vmem:[%s544 + $0x8] sm:$0xf]
      %v556 = vld [vmem:[%s544 + $0xc] sm:$0xf]
      %v557 = vld [vmem:[%s544 + $0x10] sm:$0xf]
      %v558 = vld [vmem:[%s544 + $0x14] sm:$0xf]
      %v559 = vlaneseq
      %v560 = vshrl.u32 %v559, 7
      %v561 = vadd.s32 %v560, 8
      %v562 = vadd.s32 %v560, 16
      %v563 = vadd.s32 %v560, 24
      %v564 = vadd.s32 %v560, 32
      %v565 = vadd.s32 %v560, 40
      %vm566 = vcmp.lt.s32.totalorder %v560, 0
      %v567 = vsub.s32 0, %v560
      %v568 = vsel %vm566, %v567, %v560
      %v569 = vmul.u32.u64.compose %v568, 2863311531
      %v570 = vextract.low.u32 %v569
      %v571 = vextract.high.u32 %v569
      %v572 = vshrl.u32 %v571, 4
      %v573 = vmul.u32 %v572, 24
      %v574 = vsub.s32 %v568, %v573
      %v575 = vsub.s32 0, %v574
      %v576 = vsel %vm566, %v575, %v574
      %vm577 = vcmp.lt.s32.totalorder %v561, 0
      %v578 = vsub.s32 0, %v561
      %v579 = vsel %vm577, %v578, %v561
      %v580 = vmul.u32.u64.compose %v579, 2863311531
      %v581 = vextract.low.u32 %v580
      %v582 = vextract.high.u32 %v580
      %v583 = vshrl.u32 %v582, 4
      %v584 = vmul.u32 %v583, 24
      %v585 = vsub.s32 %v579, %v584
      %v586 = vsub.s32 0, %v585
      %v587 = vsel %vm577, %v586, %v585
      %vm588 = vcmp.lt.s32.totalorder %v562, 0
      %v589 = vsub.s32 0, %v562
      %v590 = vsel %vm588, %v589, %v562
      %v591 = vmul.u32.u64.compose %v590, 2863311531
      %v592 = vextract.low.u32 %v591
      %v593 = vextract.high.u32 %v591
      %v594 = vshrl.u32 %v593, 4
      %v595 = vmul.u32 %v594, 24
      %v596 = vsub.s32 %v590, %v595
      %v597 = vsub.s32 0, %v596
      %v598 = vsel %vm588, %v597, %v596
      %vm599 = vcmp.lt.s32.totalorder %v563, 0
      %v600 = vsub.s32 0, %v563
      %v601 = vsel %vm599, %v600, %v563
      %v602 = vmul.u32.u64.compose %v601, 2863311531
      %v603 = vextract.low.u32 %v602
      %v604 = vextract.high.u32 %v602
      %v605 = vshrl.u32 %v604, 4
      %v606 = vmul.u32 %v605, 24
      %v607 = vsub.s32 %v601, %v606
      %v608 = vsub.s32 0, %v607
      %v609 = vsel %vm599, %v608, %v607
      %vm610 = vcmp.lt.s32.totalorder %v564, 0
      %v611 = vsub.s32 0, %v564
      %v612 = vsel %vm610, %v611, %v564
      %v613 = vmul.u32.u64.compose %v612, 2863311531
      %v614 = vextract.low.u32 %v613
      %v615 = vextract.high.u32 %v613
      %v616 = vshrl.u32 %v615, 4
      %v617 = vmul.u32 %v616, 24
      %v618 = vsub.s32 %v612, %v617
      %v619 = vsub.s32 0, %v618
      %v620 = vsel %vm610, %v619, %v618
      %vm621 = vcmp.lt.s32.totalorder %v565, 0
      %v622 = vsub.s32 0, %v565
      %v623 = vsel %vm621, %v622, %v565
      %v624 = vmul.u32.u64.compose %v623, 2863311531
      %v625 = vextract.low.u32 %v624
      %v626 = vextract.high.u32 %v624
      %v627 = vshrl.u32 %v626, 4
      %v628 = vmul.u32 %v627, 24
      %v629 = vsub.s32 %v623, %v628
      %v630 = vsub.s32 0, %v629
      %v631 = vsel %vm621, %v630, %v629
      %vm632 = vcmp.ne.s32.totalorder %v576, 0
      %vm633 = vcmp.ne.s32.totalorder %v587, 0
      %vm634 = vcmp.ne.s32.totalorder %v598, 0
      %vm635 = vcmp.ne.s32.totalorder %v609, 0
      %vm636 = vcmp.ne.s32.totalorder %v620, 0
      %vm637 = vcmp.ne.s32.totalorder %v631, 0
      %vm638 = vcmp.lt.s32.totalorder %v576, 0
      %vm639 = vcmp.lt.s32.totalorder %v587, 0
      %vm640 = vcmp.lt.s32.totalorder %v598, 0
      %vm641 = vcmp.lt.s32.totalorder %v609, 0
      %vm642 = vcmp.lt.s32.totalorder %v620, 0
      %vm643 = vcmp.lt.s32.totalorder %v631, 0
      %vm644 = vmand %vm638, %vm632
      %vm645 = vmand %vm639, %vm633
      %vm646 = vmand %vm640, %vm634
      %vm647 = vmand %vm641, %vm635
      %vm648 = vmand %vm642, %vm636
      %vm649 = vmand %vm643, %vm637
      %v650 = vadd.s32 %v576, 24
      %v651 = vadd.s32 %v587, 24
      %v652 = vadd.s32 %v598, 24
      %v653 = vadd.s32 %v609, 24
      %v654 = vadd.s32 %v620, 24
      %v655 = vadd.s32 %v631, 24
      %v656 = vsel %vm644, %v650, %v576
      %v657 = vsel %vm645, %v651, %v587
      %v658 = vsel %vm646, %v652, %v598
      %v659 = vsel %vm647, %v653, %v609
      %v660 = vsel %vm648, %v654, %v620
      %v661 = vsel %vm649, %v655, %v631
      %vm662 = vcmp.ge.s32.totalorder %v656, 1
      %vm663 = vcmp.ge.s32.totalorder %v657, 1
      %vm664 = vcmp.ge.s32.totalorder %v658, 1
      %vm665 = vcmp.ge.s32.totalorder %v659, 1
      %vm666 = vcmp.ge.s32.totalorder %v660, 1
      %vm667 = vcmp.ge.s32.totalorder %v661, 1
      %vm668 = vcmp.lt.s32.totalorder %v656, 23
      %vm669 = vcmp.lt.s32.totalorder %v657, 23
      %vm670 = vcmp.lt.s32.totalorder %v658, 23
      %vm671 = vcmp.lt.s32.totalorder %v659, 23
      %vm672 = vcmp.lt.s32.totalorder %v660, 23
      %vm673 = vcmp.lt.s32.totalorder %v661, 23
      %v674 = vld [vmem:[%s1] sm:$0xf]
      %v675 = vld [vmem:[%s1 + $0x4] sm:$0xf]
      %v676 = vld [vmem:[%s1 + $0x8] sm:$0xf]
      %v677 = vld [vmem:[%s1 + $0xc] sm:$0xf]
      %v678 = vld [vmem:[%s2] sm:$0x1]
      %v680 = vlaneseq
      %v681 = vshrl.u32 %v680, 7
      %v682 = vsub.s32 0, %v681
      %v683 = vrot.slane %v678, %v682
      %v691 = vunpack.c.l.b16 %v553
      %v692 = vunpack.c.l.b16 %v554
      %v693 = vunpack.c.l.b16 %v555
      %v694 = vunpack.c.l.b16 %v556
      %v695 = vunpack.c.l.b16 %v557
      %v696 = vunpack.c.l.b16 %v558
      %v697 = vpack.c.b16 %v692, %v691
      %v698 = vpack.c.b16 %v694, %v693
      %v699 = vpack.c.b16 %v696, %v695
      %v704 = vunpack.c.l.b16 %v674
      %v705 = vunpack.c.l.b16 %v675
      %v706 = vunpack.c.l.b16 %v676
      %v707 = vunpack.c.l.b16 %v677
      %v708 = vpack.c.b16 %v705, %v704
      %v709 = vpack.c.b16 %v707, %v706
      %vm712 = vcmask 261120
      %v714 = vsel %vm712, %v697, 0
      %v717 = vsel %vm712, %v698, 0
      %v720 = vsel %vm712, %v699, 0
      %722 = vmatprep.subr.bf16.mxu0 0
      %723 = vmatpush1.bf16.msra.mxu0 %v708
      %724 = vmatprep.subr.bf16.mxu0 0
      %725 = vmatpush1.bf16.msra.mxu0 %v709
      %726 = vmatprep.subr.bf16.mxu0 0
      %727 = vmatpush1.bf16.msra.mxu0 0
      %728 = vmatprep.subr.bf16.mxu0 0
      %729 = vmatpush1.bf16.msra.mxu0 0
      %730 = vmatprep.subr.bf16.mxu0 0
      %731 = vmatpush1.bf16.msra.mxu0 0
      %732 = vmatprep.subr.bf16.mxu0 0
      %733 = vmatpush1.bf16.msra.mxu0 0
      %734 = vmatprep.subr.bf16.mxu0 0
      %735 = vmatpush1.bf16.msra.mxu0 0
      %736 = vmatprep.subr.bf16.mxu0 0
      %737 = vmatpush1.bf16.msra.mxu0 0
      %738 = vmatprep.subr.bf16.mxu0 0
      %739 = vmatpush1.bf16.msra.mxu0 0
      %740 = vmatprep.subr.bf16.mxu0 0
      %741 = vmatpush1.bf16.msra.mxu0 0
      %742 = vmatprep.subr.bf16.mxu0 0
      %743 = vmatpush1.bf16.msra.mxu0 0
      %744 = vmatprep.subr.bf16.mxu0 0
      %745 = vmatpush1.bf16.msra.mxu0 0
      %746 = vmatprep.subr.bf16.mxu0 0
      %747 = vmatpush1.bf16.msra.mxu0 0
      %748 = vmatprep.subr.bf16.mxu0 0
      %749 = vmatpush1.bf16.msra.mxu0 0
      %750 = vmatprep.subr.bf16.mxu0 0
      %751 = vmatpush1.bf16.msra.mxu0 0
      %752 = vmatprep.subr.bf16.mxu0 0
      %753 = vmatpush1.bf16.msra.mxu0 0
      %754 = vmatprep.mubr.bf16.mxu0 0
      %755 = vmatmul.mubr.bf16.gmra.mrb[0].mxu0 %v714
      %v756 = vpop.f32.mrb[0].mxu0
      %v757 = vadd.f32 %v683, %v756
      %v758 = vpop.f32.mrb[0].mxu0
      %v759 = vpop.f32.mrb[0].mxu0
      %v760 = vadd.f32 %v683, %v759
      %v761 = vpop.f32.mrb[0].mxu0
      %762 = vmatprep.mubr.bf16.mxu0 0
      %763 = vmatmul.mubr.bf16.gmra.mrb[0].mxu0 %v717
      %v764 = vpop.f32.mrb[0].mxu0
      %v765 = vadd.f32 %v683, %v764
      %v766 = vpop.f32.mrb[0].mxu0
      %v767 = vpop.f32.mrb[0].mxu0
      %v768 = vadd.f32 %v683, %v767
      %v769 = vpop.f32.mrb[0].mxu0
      %770 = vmatprep.mubr.bf16.mxu0 0
      %771 = vmatmul.mubr.bf16.gmra.mrb[0].mxu0 %v720
      %v772 = vpop.f32.mrb[0].mxu0
      %v773 = vadd.f32 %v683, %v772
      %v774 = vpop.f32.mrb[0].mxu0
      %v775 = vpop.f32.mrb[0].mxu0
      %v776 = vadd.f32 %v683, %v775
      %v777 = vpop.f32.mrb[0].mxu0
      %778 = vdwg.mxu0
      %v779 = vmax.f32 %v757, 0.0
      %v780 = vmax.f32 %v760, 0.0
      %v781 = vmax.f32 %v765, 0.0
      %v782 = vmax.f32 %v768, 0.0
      %v783 = vmax.f32 %v773, 0.0
      %v784 = vmax.f32 %v776, 0.0
      %v785 = vld [vmem:[%s3] sm:$0x1]
      %v787 = vlaneseq
      %v788 = vshrl.u32 %v787, 7
      %v789 = vsub.s32 0, %v788
      %v790 = vrot.slane %v785, %v789
      %v792 = vmul.f32 %v779, %v790
      %v793 = vmul.f32 %v780, %v790
      %v794 = vmul.f32 %v781, %v790
      %v795 = vmul.f32 %v782, %v790
      %v796 = vmul.f32 %v783, %v790
      %v797 = vmul.f32 %v784, %v790
      %v798 = vld [vmem:[%s4] sm:$0x1]
      %v800 = vlaneseq
      %v801 = vshrl.u32 %v800, 7
      %v802 = vsub.s32 0, %v801
      %v803 = vrot.slane %v798, %v802
      %v805 = vadd.f32 %v792, %v803
      %v806 = vadd.f32 %v793, %v803
      %v807 = vadd.f32 %v794, %v803
      %v808 = vadd.f32 %v795, %v803
      %v809 = vadd.f32 %v796, %v803
      %v810 = vadd.f32 %v797, %v803
      %v811 = vpack.c.bf16 %v806, %v805
      %v812 = vpack.c.bf16 %v808, %v807
      %v813 = vpack.c.bf16 %v810, %v809
      %v814 = vld [vmem:[%s9] sm:$0xf]
      %s815 = scalar_lea.vmem %s1, 16
      %v816 = vld [vmem:[%s815] sm:$0xf]
      %v817 = vld [vmem:[%s815 + $0x4] sm:$0xf]
      %v818 = vld [vmem:[%s815 + $0x8] sm:$0xf]
      %v819 = vld [vmem:[%s815 + $0xc] sm:$0xf]
      %s820 = scalar_lea.vmem %s2, 1
      %v821 = vld [vmem:[%s820] sm:$0x1]
      %v823 = vlaneseq
      %v824 = vshrl.u32 %v823, 7
      %v825 = vsub.s32 0, %v824
      %v826 = vrot.slane %v821, %v825
      %v832 = vunpack.c.l.b16 %v816
      %v833 = vunpack.c.l.b16 %v817
      %v834 = vunpack.c.l.b16 %v818
      %v835 = vunpack.c.l.b16 %v819
      %v836 = vpack.c.b16 %v833, %v832
      %v837 = vpack.c.b16 %v835, %v834
      %840 = vmatprep.subr.bf16.mxu0 0
      %841 = vmatpush1.bf16.msra.mxu0 %v836
      %842 = vmatprep.subr.bf16.mxu0 0
      %843 = vmatpush1.bf16.msra.mxu0 %v837
      %844 = vmatprep.subr.bf16.mxu0 0
      %845 = vmatpush1.bf16.msra.mxu0 0
      %846 = vmatprep.subr.bf16.mxu0 0
      %847 = vmatpush1.bf16.msra.mxu0 0
      %848 = vmatprep.subr.bf16.mxu0 0
      %849 = vmatpush1.bf16.msra.mxu0 0
      %850 = vmatprep.subr.bf16.mxu0 0
      %851 = vmatpush1.bf16.msra.mxu0 0
      %852 = vmatprep.subr.bf16.mxu0 0
      %853 = vmatpush1.bf16.msra.mxu0 0
      %854 = vmatprep.subr.bf16.mxu0 0
      %855 = vmatpush1.bf16.msra.mxu0 0
      %856 = vmatprep.subr.bf16.mxu0 0
      %857 = vmatpush1.bf16.msra.mxu0 0
      %858 = vmatprep.subr.bf16.mxu0 0
      %859 = vmatpush1.bf16.msra.mxu0 0
      %860 = vmatprep.subr.bf16.mxu0 0
      %861 = vmatpush1.bf16.msra.mxu0 0
      %862 = vmatprep.subr.bf16.mxu0 0
      %863 = vmatpush1.bf16.msra.mxu0 0
      %864 = vmatprep.subr.bf16.mxu0 0
      %865 = vmatpush1.bf16.msra.mxu0 0
      %866 = vmatprep.subr.bf16.mxu0 0
      %867 = vmatpush1.bf16.msra.mxu0 0
      %868 = vmatprep.subr.bf16.mxu0 0
      %869 = vmatpush1.bf16.msra.mxu0 0
      %870 = vmatprep.subr.bf16.mxu0 0
      %871 = vmatpush1.bf16.msra.mxu0 0
      %872 = vmatprep.mubr.bf16.mxu0 0
      %873 = vmatmul.mubr.bf16.gmra.mrb[0].mxu0 %v714
      %v874 = vpop.f32.mrb[0].mxu0
      %v875 = vadd.f32 %v826, %v874
      %v876 = vpop.f32.mrb[0].mxu0
      %v877 = vpop.f32.mrb[0].mxu0
      %v878 = vadd.f32 %v826, %v877
      %v879 = vpop.f32.mrb[0].mxu0
      %880 = vmatprep.mubr.bf16.mxu0 0
      %881 = vmatmul.mubr.bf16.gmra.mrb[0].mxu0 %v717
      %v882 = vpop.f32.mrb[0].mxu0
      %v883 = vadd.f32 %v826, %v882
      %v884 = vpop.f32.mrb[0].mxu0
      %v885 = vpop.f32.mrb[0].mxu0
      %v886 = vadd.f32 %v826, %v885
      %v887 = vpop.f32.mrb[0].mxu0
      %888 = vmatprep.mubr.bf16.mxu0 0
      %889 = vmatmul.mubr.bf16.gmra.mrb[0].mxu0 %v720
      %v890 = vpop.f32.mrb[0].mxu0
      %v891 = vadd.f32 %v826, %v890
      %v892 = vpop.f32.mrb[0].mxu0
      %v893 = vpop.f32.mrb[0].mxu0
      %v894 = vadd.f32 %v826, %v893
      %v895 = vpop.f32.mrb[0].mxu0
      %896 = vdwg.mxu0
      %v897 = vmax.f32 %v875, 0.0
      %v898 = vmax.f32 %v878, 0.0
      %v899 = vmax.f32 %v883, 0.0
      %v900 = vmax.f32 %v886, 0.0
      %v901 = vmax.f32 %v891, 0.0
      %v902 = vmax.f32 %v894, 0.0
      %s903 = scalar_lea.vmem %s3, 1
      %v904 = vld [vmem:[%s903] sm:$0x1]
      %v906 = vlaneseq
      %v907 = vshrl.u32 %v906, 7
      %v908 = vsub.s32 0, %v907
      %v909 = vrot.slane %v904, %v908
      %v911 = vmul.f32 %v897, %v909
      %v912 = vmul.f32 %v898, %v909
      %v913 = vmul.f32 %v899, %v909
      %v914 = vmul.f32 %v900, %v909
      %v915 = vmul.f32 %v901, %v909
      %v916 = vmul.f32 %v902, %v909
      %s917 = scalar_lea.vmem %s4, 1
      %v918 = vld [vmem:[%s917] sm:$0x1]
      %v920 = vlaneseq
      %v921 = vshrl.u32 %v920, 7
      %v922 = vsub.s32 0, %v921
      %v923 = vrot.slane %v918, %v922
      %v925 = vadd.f32 %v911, %v923
      %v926 = vadd.f32 %v912, %v923
      %v927 = vadd.f32 %v913, %v923
      %v928 = vadd.f32 %v914, %v923
      %v929 = vadd.f32 %v915, %v923
      %v930 = vadd.f32 %v916, %v923
      %v931 = vrot.slane %v925, 7
      %v932 = vrot.slane %v926, 7
      %v933 = vrot.slane %v927, 7
      %v934 = vrot.slane %v928, 7
      %v935 = vrot.slane %v929, 7
      %v936 = vrot.slane %v930, 7
      %vm937 = vcmp.lt.s32.totalorder %v560, 1
      %v938 = vsel %vm937, %v935, %v936
      %v939 = vsel %vm937, %v934, %v935
      %v940 = vsel %vm937, %v933, %v934
      %v941 = vsel %vm937, %v932, %v933
      %v942 = vsel %vm937, %v931, %v932
      %v943 = vsel %vm937, %v936, %v931
      %v944 = vsel %vm662, 1, 0
      %v945 = vsel %vm663, 1, 0
      %v946 = vsel %vm664, 1, 0
      %v947 = vsel %vm665, 1, 0
      %v948 = vsel %vm666, 1, 0
      %v949 = vsel %vm667, 1, 0
      %vm950 = vcmp.eq.s32.totalorder %v944, 1
      %vm951 = vcmp.eq.s32.totalorder %v945, 1
      %vm952 = vcmp.eq.s32.totalorder %v946, 1
      %vm953 = vcmp.eq.s32.totalorder %v947, 1
      %vm954 = vcmp.eq.s32.totalorder %v948, 1
      %vm955 = vcmp.eq.s32.totalorder %v949, 1
      %v956 = vsel %vm950, %v943, 0.0
      %v957 = vsel %vm951, %v942, 0.0
      %v958 = vsel %vm952, %v941, 0.0
      %v959 = vsel %vm953, %v940, 0.0
      %v960 = vsel %vm954, %v939, 0.0
      %v961 = vsel %vm955, %v938, 0.0
      %v962 = vpack.c.bf16 %v957, %v956
      %v963 = vpack.c.bf16 %v959, %v958
      %v964 = vpack.c.bf16 %v961, %v960
      %v965 = vpack.c.bf16 %v926, %v925
      %v966 = vpack.c.bf16 %v928, %v927
      %v967 = vpack.c.bf16 %v930, %v929
      %v968 = vrot.slane %v925, 1
      %v969 = vrot.slane %v926, 1
      %v970 = vrot.slane %v927, 1
      %v971 = vrot.slane %v928, 1
      %v972 = vrot.slane %v929, 1
      %v973 = vrot.slane %v930, 1
      %vm974 = vcmp.lt.s32.totalorder %v560, 7
      %v975 = vsel %vm974, %v972, %v973
      %v976 = vsel %vm974, %v971, %v972
      %v977 = vsel %vm974, %v970, %v971
      %v978 = vsel %vm974, %v969, %v970
      %v979 = vsel %vm974, %v968, %v969
      %v980 = vsel %vm974, %v973, %v968
      %v981 = vsel %vm668, 1, 0
      %v982 = vsel %vm669, 1, 0
      %v983 = vsel %vm670, 1, 0
      %v984 = vsel %vm671, 1, 0
      %v985 = vsel %vm672, 1, 0
      %v986 = vsel %vm673, 1, 0
      %vm987 = vcmp.eq.s32.totalorder %v981, 1
      %vm988 = vcmp.eq.s32.totalorder %v982, 1
      %vm989 = vcmp.eq.s32.totalorder %v983, 1
      %vm990 = vcmp.eq.s32.totalorder %v984, 1
      %vm991 = vcmp.eq.s32.totalorder %v985, 1
      %vm992 = vcmp.eq.s32.totalorder %v986, 1
      %v993 = vsel %vm987, %v979, 0.0
      %v994 = vsel %vm988, %v978, 0.0
      %v995 = vsel %vm989, %v977, 0.0
      %v996 = vsel %vm990, %v976, 0.0
      %v997 = vsel %vm991, %v975, 0.0
      %v998 = vsel %vm992, %v980, 0.0
      %v999 = vpack.c.bf16 %v994, %v993
      %v1000 = vpack.c.bf16 %v996, %v995
      %v1001 = vpack.c.bf16 %v998, %v997
      %1005 = vrot.lane.b32.xlu0 %v965, 8
      %v1006 = vpop.permute.xlu0 %1005
      %1007 = vrot.lane.b32.xlu0 %v966, 8
      %v1008 = vpop.permute.xlu0 %1007
      %1009 = vrot.lane.b32.xlu0 %v967, 8
      %v1010 = vpop.permute.xlu0 %1009
      %1014 = vrot.lane.b32.xlu0 %v999, 16
      %v1015 = vpop.permute.xlu0 %1014
      %1016 = vrot.lane.b32.xlu0 %v1000, 16
      %v1017 = vpop.permute.xlu0 %1016
      %1018 = vrot.lane.b32.xlu0 %v1001, 16
      %v1019 = vpop.permute.xlu0 %1018
      %vm1020 = vcmask 64512
      %v1023 = vsel %vm1020, %v962, %v1006
      %v1026 = vsel %vm1020, %v963, %v1008
      %v1029 = vsel %vm1020, %v964, %v1010
      %vm1030 = vcmask 130048
      %v1032 = vsel %vm1030, %v1023, %v1015
      %v1034 = vsel %vm1030, %v1026, %v1017
      %v1036 = vsel %vm1030, %v1029, %v1019
      %v1037 = vld [vmem:[%s5] sm:$0xf]
      %v1038 = vld [vmem:[%s5 + $0x4] sm:$0xf]
      %v1039 = vld [vmem:[%s5 + $0x8] sm:$0xf]
      %v1040 = vld [vmem:[%s6] sm:$0x1]
      %v1042 = vlaneseq
      %v1043 = vshrl.u32 %v1042, 7
      %v1044 = vsub.s32 0, %v1043
      %v1045 = vrot.slane %v1040, %v1044
      %v1050 = vunpack.c.l.b16 %v1037
      %v1051 = vunpack.c.l.b16 %v1038
      %v1052 = vunpack.c.l.b16 %v1039
      %v1053 = vpack.c.b16 %v1051, %v1050
      %v1054 = vpack.c.b16 %v1052, %v1052
      %vm1056 = vcmask 195584
      %v1057 = vsel %vm1056, %v1032, 0
      %v1059 = vsel %vm1056, %v1034, 0
      %v1061 = vsel %vm1056, %v1036, 0
      %vm1063 = vcmask 1043456
      %v1065 = vsel %vm1063, %v1054, 0
      %1067 = vmatprep.subr.bf16.mxu0 0
      %1068 = vmatpush1.bf16.msra.mxu0 %v1053
      %1069 = vmatprep.subr.bf16.mxu0 0
      %1070 = vmatpush1.bf16.msra.mxu0 %v1065
      %1071 = vmatprep.subr.bf16.mxu0 0
      %1072 = vmatpush1.bf16.msra.mxu0 0
      %1073 = vmatprep.subr.bf16.mxu0 0
      %1074 = vmatpush1.bf16.msra.mxu0 0
      %1075 = vmatprep.subr.bf16.mxu0 0
      %1076 = vmatpush1.bf16.msra.mxu0 0
      %1077 = vmatprep.subr.bf16.mxu0 0
      %1078 = vmatpush1.bf16.msra.mxu0 0
      %1079 = vmatprep.subr.bf16.mxu0 0
      %1080 = vmatpush1.bf16.msra.mxu0 0
      %1081 = vmatprep.subr.bf16.mxu0 0
      %1082 = vmatpush1.bf16.msra.mxu0 0
      %1083 = vmatprep.subr.bf16.mxu0 0
      %1084 = vmatpush1.bf16.msra.mxu0 0
      %1085 = vmatprep.subr.bf16.mxu0 0
      %1086 = vmatpush1.bf16.msra.mxu0 0
      %1087 = vmatprep.subr.bf16.mxu0 0
      %1088 = vmatpush1.bf16.msra.mxu0 0
      %1089 = vmatprep.subr.bf16.mxu0 0
      %1090 = vmatpush1.bf16.msra.mxu0 0
      %1091 = vmatprep.subr.bf16.mxu0 0
      %1092 = vmatpush1.bf16.msra.mxu0 0
      %1093 = vmatprep.subr.bf16.mxu0 0
      %1094 = vmatpush1.bf16.msra.mxu0 0
      %1095 = vmatprep.subr.bf16.mxu0 0
      %1096 = vmatpush1.bf16.msra.mxu0 0
      %1097 = vmatprep.subr.bf16.mxu0 0
      %1098 = vmatpush1.bf16.msra.mxu0 0
      %1099 = vmatprep.mubr.bf16.mxu0 0
      %1100 = vmatmul.mubr.bf16.gmra.mrb[0].mxu0 %v1057
      %v1101 = vpop.f32.mrb[0].mxu0
      %v1102 = vadd.f32 %v1045, %v1101
      %v1103 = vpop.f32.mrb[0].mxu0
      %v1104 = vpop.f32.mrb[0].mxu0
      %v1105 = vadd.f32 %v1045, %v1104
      %v1106 = vpop.f32.mrb[0].mxu0
      %1107 = vmatprep.mubr.bf16.mxu0 0
      %1108 = vmatmul.mubr.bf16.gmra.mrb[0].mxu0 %v1059
      %v1109 = vpop.f32.mrb[0].mxu0
      %v1110 = vadd.f32 %v1045, %v1109
      %v1111 = vpop.f32.mrb[0].mxu0
      %v1112 = vpop.f32.mrb[0].mxu0
      %v1113 = vadd.f32 %v1045, %v1112
      %v1114 = vpop.f32.mrb[0].mxu0
      %1115 = vmatprep.mubr.bf16.mxu0 0
      %1116 = vmatmul.mubr.bf16.gmra.mrb[0].mxu0 %v1061
      %v1117 = vpop.f32.mrb[0].mxu0
      %v1118 = vadd.f32 %v1045, %v1117
      %v1119 = vpop.f32.mrb[0].mxu0
      %v1120 = vpop.f32.mrb[0].mxu0
      %v1121 = vadd.f32 %v1045, %v1120
      %v1122 = vpop.f32.mrb[0].mxu0
      %1123 = vdwg.mxu0
      %v1124 = vmax.f32 %v1102, 0.0
      %v1125 = vmax.f32 %v1105, 0.0
      %v1126 = vmax.f32 %v1110, 0.0
      %v1127 = vmax.f32 %v1113, 0.0
      %v1128 = vmax.f32 %v1118, 0.0
      %v1129 = vmax.f32 %v1121, 0.0
      %v1130 = vld [vmem:[%s7] sm:$0x1]
      %v1132 = vlaneseq
      %v1133 = vshrl.u32 %v1132, 7
      %v1134 = vsub.s32 0, %v1133
      %v1135 = vrot.slane %v1130, %v1134
      %v1137 = vmul.f32 %v1124, %v1135
      %v1138 = vmul.f32 %v1125, %v1135
      %v1139 = vmul.f32 %v1126, %v1135
      %v1140 = vmul.f32 %v1127, %v1135
      %v1141 = vmul.f32 %v1128, %v1135
      %v1142 = vmul.f32 %v1129, %v1135
      %v1143 = vld [vmem:[%s8] sm:$0x1]
      %v1145 = vlaneseq
      %v1146 = vshrl.u32 %v1145, 7
      %v1147 = vsub.s32 0, %v1146
      %v1148 = vrot.slane %v1143, %v1147
      %v1150 = vadd.f32 %v1137, %v1148
      %v1151 = vadd.f32 %v1138, %v1148
      %v1152 = vadd.f32 %v1139, %v1148
      %v1153 = vadd.f32 %v1140, %v1148
      %v1154 = vadd.f32 %v1141, %v1148
      %v1155 = vadd.f32 %v1142, %v1148
      %v1156 = vpack.c.bf16 %v1151, %v1150
      %v1157 = vpack.c.bf16 %v1153, %v1152
      %v1158 = vpack.c.bf16 %v1155, %v1154
      %s1159 = scalar_lea.vmem %s9, 4
      %v1160 = vld [vmem:[%s1159] sm:$0xf]
      %v1162 = vsel %vm1020, %v1156, 0
      %v1165 = vsel %vm1020, %v1157, 0
      %v1168 = vsel %vm1020, %v1158, 0
      %v1171 = vsel %vm1063, %v1160, 0
      %1173 = vmatprep.subr.bf16.mxu0 0
      %1174 = vmatpush1.bf16.msra.mxu0 %v1171
      %1175 = vmatprep.subr.bf16.mxu0 0
      %1176 = vmatpush1.bf16.msra.mxu0 0
      %1177 = vmatprep.subr.bf16.mxu0 0
      %1178 = vmatpush1.bf16.msra.mxu0 0
      %1179 = vmatprep.subr.bf16.mxu0 0
      %1180 = vmatpush1.bf16.msra.mxu0 0
      %1181 = vmatprep.subr.bf16.mxu0 0
      %1182 = vmatpush1.bf16.msra.mxu0 0
      %1183 = vmatprep.subr.bf16.mxu0 0
      %1184 = vmatpush1.bf16.msra.mxu0 0
      %1185 = vmatprep.subr.bf16.mxu0 0
      %1186 = vmatpush1.bf16.msra.mxu0 0
      %1187 = vmatprep.subr.bf16.mxu0 0
      %1188 = vmatpush1.bf16.msra.mxu0 0
      %1189 = vmatprep.subr.bf16.mxu0 0
      %1190 = vmatpush1.bf16.msra.mxu0 0
      %1191 = vmatprep.subr.bf16.mxu0 0
      %1192 = vmatpush1.bf16.msra.mxu0 0
      %1193 = vmatprep.subr.bf16.mxu0 0
      %1194 = vmatpush1.bf16.msra.mxu0 0
      %1195 = vmatprep.subr.bf16.mxu0 0
      %1196 = vmatpush1.bf16.msra.mxu0 0
      %1197 = vmatprep.subr.bf16.mxu0 0
      %1198 = vmatpush1.bf16.msra.mxu0 0
      %1199 = vmatprep.subr.bf16.mxu0 0
      %1200 = vmatpush1.bf16.msra.mxu0 0
      %1201 = vmatprep.subr.bf16.mxu0 0
      %1202 = vmatpush1.bf16.msra.mxu0 0
      %1203 = vmatprep.subr.bf16.mxu0 0
      %1204 = vmatpush1.bf16.msra.mxu0 0
      %1205 = vmatprep.mubr.bf16.mxu0 0
      %1206 = vmatmul.mubr.bf16.gmra.mrb[0].mxu0 %v1162
      %v1207 = vpop.f32.mrb[0].mxu0
      %v1208 = vadd.f32 0.0, %v1207
      %v1209 = vpop.f32.mrb[0].mxu0
      %v1210 = vpop.f32.mrb[0].mxu0
      %v1211 = vadd.f32 0.0, %v1210
      %v1212 = vpop.f32.mrb[0].mxu0
      %1213 = vmatprep.mubr.bf16.mxu0 0
      %1214 = vmatmul.mubr.bf16.gmra.mrb[0].mxu0 %v1165
      %v1215 = vpop.f32.mrb[0].mxu0
      %v1216 = vadd.f32 0.0, %v1215
      %v1217 = vpop.f32.mrb[0].mxu0
      %v1218 = vpop.f32.mrb[0].mxu0
      %v1219 = vadd.f32 0.0, %v1218
      %v1220 = vpop.f32.mrb[0].mxu0
      %1221 = vmatprep.mubr.bf16.mxu0 0
      %1222 = vmatmul.mubr.bf16.gmra.mrb[0].mxu0 %v1168
      %v1223 = vpop.f32.mrb[0].mxu0
      %v1224 = vadd.f32 0.0, %v1223
      %v1225 = vpop.f32.mrb[0].mxu0
      %v1226 = vpop.f32.mrb[0].mxu0
      %v1227 = vadd.f32 0.0, %v1226
      %v1228 = vpop.f32.mrb[0].mxu0
      %1229 = vdwg.mxu0
      %v1231 = vsel %vm1020, %v811, 0
      %v1234 = vsel %vm1020, %v812, 0
      %v1237 = vsel %vm1020, %v813, 0
      %v1240 = vsel %vm1063, %v814, 0
      %1242 = vmatprep.subr.bf16.mxu0 0
      %1243 = vmatpush1.bf16.msra.mxu0 %v1240
      %1244 = vmatprep.subr.bf16.mxu0 0
      %1245 = vmatpush1.bf16.msra.mxu0 0
      %1246 = vmatprep.subr.bf16.mxu0 0
      %1247 = vmatpush1.bf16.msra.mxu0 0
      %1248 = vmatprep.subr.bf16.mxu0 0
      %1249 = vmatpush1.bf16.msra.mxu0 0
      %1250 = vmatprep.subr.bf16.mxu0 0
      %1251 = vmatpush1.bf16.msra.mxu0 0
      %1252 = vmatprep.subr.bf16.mxu0 0
      %1253 = vmatpush1.bf16.msra.mxu0 0
      %1254 = vmatprep.subr.bf16.mxu0 0
      %1255 = vmatpush1.bf16.msra.mxu0 0
      %1256 = vmatprep.subr.bf16.mxu0 0
      %1257 = vmatpush1.bf16.msra.mxu0 0
      %1258 = vmatprep.subr.bf16.mxu0 0
      %1259 = vmatpush1.bf16.msra.mxu0 0
      %1260 = vmatprep.subr.bf16.mxu0 0
      %1261 = vmatpush1.bf16.msra.mxu0 0
      %1262 = vmatprep.subr.bf16.mxu0 0
      %1263 = vmatpush1.bf16.msra.mxu0 0
      %1264 = vmatprep.subr.bf16.mxu0 0
      %1265 = vmatpush1.bf16.msra.mxu0 0
      %1266 = vmatprep.subr.bf16.mxu0 0
      %1267 = vmatpush1.bf16.msra.mxu0 0
      %1268 = vmatprep.subr.bf16.mxu0 0
      %1269 = vmatpush1.bf16.msra.mxu0 0
      %1270 = vmatprep.subr.bf16.mxu0 0
      %1271 = vmatpush1.bf16.msra.mxu0 0
      %1272 = vmatprep.subr.bf16.mxu0 0
      %1273 = vmatpush1.bf16.msra.mxu0 0
      %1274 = vmatprep.mubr.bf16.mxu0 0
      %1275 = vmatmul.mubr.bf16.gmra.mrb[0].mxu0 %v1231
      %v1276 = vpop.f32.mrb[0].mxu0
      %v1277 = vadd.f32 %v1208, %v1276
      %v1278 = vpop.f32.mrb[0].mxu0
      %v1279 = vpop.f32.mrb[0].mxu0
      %v1280 = vadd.f32 %v1211, %v1279
      %v1281 = vpop.f32.mrb[0].mxu0
      %1282 = vmatprep.mubr.bf16.mxu0 0
      %1283 = vmatmul.mubr.bf16.gmra.mrb[0].mxu0 %v1234
      %v1284 = vpop.f32.mrb[0].mxu0
      %v1285 = vadd.f32 %v1216, %v1284
      %v1286 = vpop.f32.mrb[0].mxu0
      %v1287 = vpop.f32.mrb[0].mxu0
      %v1288 = vadd.f32 %v1219, %v1287
      %v1289 = vpop.f32.mrb[0].mxu0
      %1290 = vmatprep.mubr.bf16.mxu0 0
      %1291 = vmatmul.mubr.bf16.gmra.mrb[0].mxu0 %v1237
      %v1292 = vpop.f32.mrb[0].mxu0
      %v1293 = vadd.f32 %v1224, %v1292
      %v1294 = vpop.f32.mrb[0].mxu0
      %v1295 = vpop.f32.mrb[0].mxu0
      %v1296 = vadd.f32 %v1227, %v1295
      %v1297 = vpop.f32.mrb[0].mxu0
      %1298 = vdwg.mxu0
      %s1299 = scalar_lea.vmem %s1, 32
      %v1300 = vld [vmem:[%s1299] sm:$0xf]
      %v1301 = vld [vmem:[%s1299 + $0x4] sm:$0xf]
      %v1302 = vld [vmem:[%s1299 + $0x8] sm:$0xf]
      %v1303 = vld [vmem:[%s1299 + $0xc] sm:$0xf]
      %s1304 = scalar_lea.vmem %s2, 2
      %v1305 = vld [vmem:[%s1304] sm:$0x1]
      %v1307 = vlaneseq
      %v1308 = vshrl.u32 %v1307, 7
      %v1309 = vsub.s32 0, %v1308
      %v1310 = vrot.slane %v1305, %v1309
      %v1316 = vunpack.c.l.b16 %v1300
      %v1317 = vunpack.c.l.b16 %v1301
      %v1318 = vunpack.c.l.b16 %v1302
      %v1319 = vunpack.c.l.b16 %v1303
      %v1320 = vpack.c.b16 %v1317, %v1316
      %v1321 = vpack.c.b16 %v1319, %v1318
      %1324 = vmatprep.subr.bf16.mxu0 0
      %1325 = vmatpush1.bf16.msra.mxu0 %v1320
      %1326 = vmatprep.subr.bf16.mxu0 0
      %1327 = vmatpush1.bf16.msra.mxu0 %v1321
      %1328 = vmatprep.subr.bf16.mxu0 0
      %1329 = vmatpush1.bf16.msra.mxu0 0
      %1330 = vmatprep.subr.bf16.mxu0 0
      %1331 = vmatpush1.bf16.msra.mxu0 0
      %1332 = vmatprep.subr.bf16.mxu0 0
      %1333 = vmatpush1.bf16.msra.mxu0 0
      %1334 = vmatprep.subr.bf16.mxu0 0
      %1335 = vmatpush1.bf16.msra.mxu0 0
      %1336 = vmatprep.subr.bf16.mxu0 0
      %1337 = vmatpush1.bf16.msra.mxu0 0
      %1338 = vmatprep.subr.bf16.mxu0 0
      %1339 = vmatpush1.bf16.msra.mxu0 0
      %1340 = vmatprep.subr.bf16.mxu0 0
      %1341 = vmatpush1.bf16.msra.mxu0 0
      %1342 = vmatprep.subr.bf16.mxu0 0
      %1343 = vmatpush1.bf16.msra.mxu0 0
      %1344 = vmatprep.subr.bf16.mxu0 0
      %1345 = vmatpush1.bf16.msra.mxu0 0
      %1346 = vmatprep.subr.bf16.mxu0 0
      %1347 = vmatpush1.bf16.msra.mxu0 0
      %1348 = vmatprep.subr.bf16.mxu0 0
      %1349 = vmatpush1.bf16.msra.mxu0 0
      %1350 = vmatprep.subr.bf16.mxu0 0
      %1351 = vmatpush1.bf16.msra.mxu0 0
      %1352 = vmatprep.subr.bf16.mxu0 0
      %1353 = vmatpush1.bf16.msra.mxu0 0
      %1354 = vmatprep.subr.bf16.mxu0 0
      %1355 = vmatpush1.bf16.msra.mxu0 0
      %1356 = vmatprep.mubr.bf16.mxu0 0
      %1357 = vmatmul.mubr.bf16.gmra.mrb[0].mxu0 %v714
      %v1358 = vpop.f32.mrb[0].mxu0
      %v1359 = vadd.f32 %v1310, %v1358
      %v1360 = vpop.f32.mrb[0].mxu0
      %v1361 = vpop.f32.mrb[0].mxu0
      %v1362 = vadd.f32 %v1310, %v1361
      %v1363 = vpop.f32.mrb[0].mxu0
      %1364 = vmatprep.mubr.bf16.mxu0 0
      %1365 = vmatmul.mubr.bf16.gmra.mrb[0].mxu0 %v717
      %v1366 = vpop.f32.mrb[0].mxu0
      %v1367 = vadd.f32 %v1310, %v1366
      %v1368 = vpop.f32.mrb[0].mxu0
      %v1369 = vpop.f32.mrb[0].mxu0
      %v1370 = vadd.f32 %v1310, %v1369
      %v1371 = vpop.f32.mrb[0].mxu0
      %1372 = vmatprep.mubr.bf16.mxu0 0
      %1373 = vmatmul.mubr.bf16.gmra.mrb[0].mxu0 %v720
      %v1374 = vpop.f32.mrb[0].mxu0
      %v1375 = vadd.f32 %v1310, %v1374
      %v1376 = vpop.f32.mrb[0].mxu0
      %v1377 = vpop.f32.mrb[0].mxu0
      %v1378 = vadd.f32 %v1310, %v1377
      %v1379 = vpop.f32.mrb[0].mxu0
      %1380 = vdwg.mxu0
      %v1381 = vmax.f32 %v1359, 0.0
      %v1382 = vmax.f32 %v1362, 0.0
      %v1383 = vmax.f32 %v1367, 0.0
      %v1384 = vmax.f32 %v1370, 0.0
      %v1385 = vmax.f32 %v1375, 0.0
      %v1386 = vmax.f32 %v1378, 0.0
      %s1387 = scalar_lea.vmem %s3, 2
      %v1388 = vld [vmem:[%s1387] sm:$0x1]
      %v1390 = vlaneseq
      %v1391 = vshrl.u32 %v1390, 7
      %v1392 = vsub.s32 0, %v1391
      %v1393 = vrot.slane %v1388, %v1392
      %v1395 = vmul.f32 %v1381, %v1393
      %v1396 = vmul.f32 %v1382, %v1393
      %v1397 = vmul.f32 %v1383, %v1393
      %v1398 = vmul.f32 %v1384, %v1393
      %v1399 = vmul.f32 %v1385, %v1393
      %v1400 = vmul.f32 %v1386, %v1393
      %s1401 = scalar_lea.vmem %s4, 2
      %v1402 = vld [vmem:[%s1401] sm:$0x1]
      %v1404 = vlaneseq
      %v1405 = vshrl.u32 %v1404, 7
      %v1406 = vsub.s32 0, %v1405
      %v1407 = vrot.slane %v1402, %v1406
      %v1409 = vadd.f32 %v1395, %v1407
      %v1410 = vadd.f32 %v1396, %v1407
      %v1411 = vadd.f32 %v1397, %v1407
      %v1412 = vadd.f32 %v1398, %v1407
      %v1413 = vadd.f32 %v1399, %v1407
      %v1414 = vadd.f32 %v1400, %v1407
      %v1415 = vadd.f32 %v1409, %v1150
      %v1416 = vadd.f32 %v1410, %v1151
      %v1417 = vadd.f32 %v1411, %v1152
      %v1418 = vadd.f32 %v1412, %v1153
      %v1419 = vadd.f32 %v1413, %v1154
      %v1420 = vadd.f32 %v1414, %v1155
      %v1421 = vrot.slane %v1415, 7
      %v1422 = vrot.slane %v1416, 7
      %v1423 = vrot.slane %v1417, 7
      %v1424 = vrot.slane %v1418, 7
      %v1425 = vrot.slane %v1419, 7
      %v1426 = vrot.slane %v1420, 7
      %v1427 = vsel %vm937, %v1425, %v1426
      %v1428 = vsel %vm937, %v1424, %v1425
      %v1429 = vsel %vm937, %v1423, %v1424
      %v1430 = vsel %vm937, %v1422, %v1423
      %v1431 = vsel %vm937, %v1421, %v1422
      %v1432 = vsel %vm937, %v1426, %v1421
      %v1433 = vsel %vm950, %v1432, 0.0
      %v1434 = vsel %vm951, %v1431, 0.0
      %v1435 = vsel %vm952, %v1430, 0.0
      %v1436 = vsel %vm953, %v1429, 0.0
      %v1437 = vsel %vm954, %v1428, 0.0
      %v1438 = vsel %vm955, %v1427, 0.0
      %v1439 = vpack.c.bf16 %v1434, %v1433
      %v1440 = vpack.c.bf16 %v1436, %v1435
      %v1441 = vpack.c.bf16 %v1438, %v1437
      %v1442 = vpack.c.bf16 %v1416, %v1415
      %v1443 = vpack.c.bf16 %v1418, %v1417
      %v1444 = vpack.c.bf16 %v1420, %v1419
      %v1445 = vrot.slane %v1415, 1
      %v1446 = vrot.slane %v1416, 1
      %v1447 = vrot.slane %v1417, 1
      %v1448 = vrot.slane %v1418, 1
      %v1449 = vrot.slane %v1419, 1
      %v1450 = vrot.slane %v1420, 1
      %v1451 = vsel %vm974, %v1449, %v1450
      %v1452 = vsel %vm974, %v1448, %v1449
      %v1453 = vsel %vm974, %v1447, %v1448
      %v1454 = vsel %vm974, %v1446, %v1447
      %v1455 = vsel %vm974, %v1445, %v1446
      %v1456 = vsel %vm974, %v1450, %v1445
      %v1457 = vsel %vm987, %v1455, 0.0
      %v1458 = vsel %vm988, %v1454, 0.0
      %v1459 = vsel %vm989, %v1453, 0.0
      %v1460 = vsel %vm990, %v1452, 0.0
      %v1461 = vsel %vm991, %v1451, 0.0
      %v1462 = vsel %vm992, %v1456, 0.0
      %v1463 = vpack.c.bf16 %v1458, %v1457
      %v1464 = vpack.c.bf16 %v1460, %v1459
      %v1465 = vpack.c.bf16 %v1462, %v1461
      %1469 = vrot.lane.b32.xlu0 %v1442, 8
      %v1470 = vpop.permute.xlu0 %1469
      %1471 = vrot.lane.b32.xlu0 %v1443, 8
      %v1472 = vpop.permute.xlu0 %1471
      %1473 = vrot.lane.b32.xlu0 %v1444, 8
      %v1474 = vpop.permute.xlu0 %1473
      %1478 = vrot.lane.b32.xlu0 %v1463, 16
      %v1479 = vpop.permute.xlu0 %1478
      %1480 = vrot.lane.b32.xlu0 %v1464, 16
      %v1481 = vpop.permute.xlu0 %1480
      %1482 = vrot.lane.b32.xlu0 %v1465, 16
      %v1483 = vpop.permute.xlu0 %1482
      %v1486 = vsel %vm1020, %v1439, %v1470
      %v1489 = vsel %vm1020, %v1440, %v1472
      %v1492 = vsel %vm1020, %v1441, %v1474
      %v1494 = vsel %vm1030, %v1486, %v1479
      %v1496 = vsel %vm1030, %v1489, %v1481
      %v1498 = vsel %vm1030, %v1492, %v1483
      %s1499 = scalar_lea.vmem %s5, 12
      %v1500 = vld [vmem:[%s1499] sm:$0xf]
      %v1501 = vld [vmem:[%s1499 + $0x4] sm:$0xf]
      %v1502 = vld [vmem:[%s1499 + $0x8] sm:$0xf]
      %s1503 = scalar_lea.vmem %s6, 1
      %v1504 = vld [vmem:[%s1503] sm:$0x1]
      %v1506 = vlaneseq
      %v1507 = vshrl.u32 %v1506, 7
      %v1508 = vsub.s32 0, %v1507
      %v1509 = vrot.slane %v1504, %v1508
      %v1514 = vunpack.c.l.b16 %v1500
      %v1515 = vunpack.c.l.b16 %v1501
      %v1516 = vunpack.c.l.b16 %v1502
      %v1517 = vpack.c.b16 %v1515, %v1514
      %v1518 = vpack.c.b16 %v1516, %v1516
      %v1520 = vsel %vm1056, %v1494, 0
      %v1522 = vsel %vm1056, %v1496, 0
      %v1524 = vsel %vm1056, %v1498, 0
      %v1527 = vsel %vm1063, %v1518, 0
      %1529 = vmatprep.subr.bf16.mxu0 0
      %1530 = vmatpush1.bf16.msra.mxu0 %v1517
      %1531 = vmatprep.subr.bf16.mxu0 0
      %1532 = vmatpush1.bf16.msra.mxu0 %v1527
      %1533 = vmatprep.subr.bf16.mxu0 0
      %1534 = vmatpush1.bf16.msra.mxu0 0
      %1535 = vmatprep.subr.bf16.mxu0 0
      %1536 = vmatpush1.bf16.msra.mxu0 0
      %1537 = vmatprep.subr.bf16.mxu0 0
      %1538 = vmatpush1.bf16.msra.mxu0 0
      %1539 = vmatprep.subr.bf16.mxu0 0
      %1540 = vmatpush1.bf16.msra.mxu0 0
      %1541 = vmatprep.subr.bf16.mxu0 0
      %1542 = vmatpush1.bf16.msra.mxu0 0
      %1543 = vmatprep.subr.bf16.mxu0 0
      %1544 = vmatpush1.bf16.msra.mxu0 0
      %1545 = vmatprep.subr.bf16.mxu0 0
      %1546 = vmatpush1.bf16.msra.mxu0 0
      %1547 = vmatprep.subr.bf16.mxu0 0
      %1548 = vmatpush1.bf16.msra.mxu0 0
      %1549 = vmatprep.subr.bf16.mxu0 0
      %1550 = vmatpush1.bf16.msra.mxu0 0
      %1551 = vmatprep.subr.bf16.mxu0 0
      %1552 = vmatpush1.bf16.msra.mxu0 0
      %1553 = vmatprep.subr.bf16.mxu0 0
      %1554 = vmatpush1.bf16.msra.mxu0 0
      %1555 = vmatprep.subr.bf16.mxu0 0
      %1556 = vmatpush1.bf16.msra.mxu0 0
      %1557 = vmatprep.subr.bf16.mxu0 0
      %1558 = vmatpush1.bf16.msra.mxu0 0
      %1559 = vmatprep.subr.bf16.mxu0 0
      %1560 = vmatpush1.bf16.msra.mxu0 0
      %1561 = vmatprep.mubr.bf16.mxu0 0
      %1562 = vmatmul.mubr.bf16.gmra.mrb[0].mxu0 %v1520
      %v1563 = vpop.f32.mrb[0].mxu0
      %v1564 = vadd.f32 %v1509, %v1563
      %v1565 = vpop.f32.mrb[0].mxu0
      %v1566 = vpop.f32.mrb[0].mxu0
      %v1567 = vadd.f32 %v1509, %v1566
      %v1568 = vpop.f32.mrb[0].mxu0
      %1569 = vmatprep.mubr.bf16.mxu0 0
      %1570 = vmatmul.mubr.bf16.gmra.mrb[0].mxu0 %v1522
      %v1571 = vpop.f32.mrb[0].mxu0
      %v1572 = vadd.f32 %v1509, %v1571
      %v1573 = vpop.f32.mrb[0].mxu0
      %v1574 = vpop.f32.mrb[0].mxu0
      %v1575 = vadd.f32 %v1509, %v1574
      %v1576 = vpop.f32.mrb[0].mxu0
      %1577 = vmatprep.mubr.bf16.mxu0 0
      %1578 = vmatmul.mubr.bf16.gmra.mrb[0].mxu0 %v1524
      %v1579 = vpop.f32.mrb[0].mxu0
      %v1580 = vadd.f32 %v1509, %v1579
      %v1581 = vpop.f32.mrb[0].mxu0
      %v1582 = vpop.f32.mrb[0].mxu0
      %v1583 = vadd.f32 %v1509, %v1582
      %v1584 = vpop.f32.mrb[0].mxu0
      %1585 = vdwg.mxu0
      %v1586 = vmax.f32 %v1564, 0.0
      %v1587 = vmax.f32 %v1567, 0.0
      %v1588 = vmax.f32 %v1572, 0.0
      %v1589 = vmax.f32 %v1575, 0.0
      %v1590 = vmax.f32 %v1580, 0.0
      %v1591 = vmax.f32 %v1583, 0.0
      %s1592 = scalar_lea.vmem %s7, 1
      %v1593 = vld [vmem:[%s1592] sm:$0x1]
      %v1595 = vlaneseq
      %v1596 = vshrl.u32 %v1595, 7
      %v1597 = vsub.s32 0, %v1596
      %v1598 = vrot.slane %v1593, %v1597
      %v1600 = vmul.f32 %v1586, %v1598
      %v1601 = vmul.f32 %v1587, %v1598
      %v1602 = vmul.f32 %v1588, %v1598
      %v1603 = vmul.f32 %v1589, %v1598
      %v1604 = vmul.f32 %v1590, %v1598
      %v1605 = vmul.f32 %v1591, %v1598
      %s1606 = scalar_lea.vmem %s8, 1
      %v1607 = vld [vmem:[%s1606] sm:$0x1]
      %v1609 = vlaneseq
      %v1610 = vshrl.u32 %v1609, 7
      %v1611 = vsub.s32 0, %v1610
      %v1612 = vrot.slane %v1607, %v1611
      %v1614 = vadd.f32 %v1600, %v1612
      %v1615 = vadd.f32 %v1601, %v1612
      %v1616 = vadd.f32 %v1602, %v1612
      %v1617 = vadd.f32 %v1603, %v1612
      %v1618 = vadd.f32 %v1604, %v1612
      %v1619 = vadd.f32 %v1605, %v1612
      %v1620 = vpack.c.bf16 %v1615, %v1614
      %v1621 = vpack.c.bf16 %v1617, %v1616
      %v1622 = vpack.c.bf16 %v1619, %v1618
      %s1623 = scalar_lea.vmem %s9, 8
      %v1624 = vld [vmem:[%s1623] sm:$0xf]
      %v1626 = vsel %vm1020, %v1620, 0
      %v1629 = vsel %vm1020, %v1621, 0
      %v1632 = vsel %vm1020, %v1622, 0
      %v1635 = vsel %vm1063, %v1624, 0
      %1637 = vmatprep.subr.bf16.mxu0 0
      %1638 = vmatpush1.bf16.msra.mxu0 %v1635
      %1639 = vmatprep.subr.bf16.mxu0 0
      %1640 = vmatpush1.bf16.msra.mxu0 0
      %1641 = vmatprep.subr.bf16.mxu0 0
      %1642 = vmatpush1.bf16.msra.mxu0 0
      %1643 = vmatprep.subr.bf16.mxu0 0
      %1644 = vmatpush1.bf16.msra.mxu0 0
      %1645 = vmatprep.subr.bf16.mxu0 0
      %1646 = vmatpush1.bf16.msra.mxu0 0
      %1647 = vmatprep.subr.bf16.mxu0 0
      %1648 = vmatpush1.bf16.msra.mxu0 0
      %1649 = vmatprep.subr.bf16.mxu0 0
      %1650 = vmatpush1.bf16.msra.mxu0 0
      %1651 = vmatprep.subr.bf16.mxu0 0
      %1652 = vmatpush1.bf16.msra.mxu0 0
      %1653 = vmatprep.subr.bf16.mxu0 0
      %1654 = vmatpush1.bf16.msra.mxu0 0
      %1655 = vmatprep.subr.bf16.mxu0 0
      %1656 = vmatpush1.bf16.msra.mxu0 0
      %1657 = vmatprep.subr.bf16.mxu0 0
      %1658 = vmatpush1.bf16.msra.mxu0 0
      %1659 = vmatprep.subr.bf16.mxu0 0
      %1660 = vmatpush1.bf16.msra.mxu0 0
      %1661 = vmatprep.subr.bf16.mxu0 0
      %1662 = vmatpush1.bf16.msra.mxu0 0
      %1663 = vmatprep.subr.bf16.mxu0 0
      %1664 = vmatpush1.bf16.msra.mxu0 0
      %1665 = vmatprep.subr.bf16.mxu0 0
      %1666 = vmatpush1.bf16.msra.mxu0 0
      %1667 = vmatprep.subr.bf16.mxu0 0
      %1668 = vmatpush1.bf16.msra.mxu0 0
      %1669 = vmatprep.mubr.bf16.mxu0 0
      %1670 = vmatmul.mubr.bf16.gmra.mrb[0].mxu0 %v1626
      %v1671 = vpop.f32.mrb[0].mxu0
      %v1672 = vadd.f32 0.0, %v1671
      %v1673 = vpop.f32.mrb[0].mxu0
      %v1674 = vpop.f32.mrb[0].mxu0
      %v1675 = vadd.f32 0.0, %v1674
      %v1676 = vpop.f32.mrb[0].mxu0
      %1677 = vmatprep.mubr.bf16.mxu0 0
      %1678 = vmatmul.mubr.bf16.gmra.mrb[0].mxu0 %v1629
      %v1679 = vpop.f32.mrb[0].mxu0
      %v1680 = vadd.f32 0.0, %v1679
      %v1681 = vpop.f32.mrb[0].mxu0
      %v1682 = vpop.f32.mrb[0].mxu0
      %v1683 = vadd.f32 0.0, %v1682
      %v1684 = vpop.f32.mrb[0].mxu0
      %1685 = vmatprep.mubr.bf16.mxu0 0
      %1686 = vmatmul.mubr.bf16.gmra.mrb[0].mxu0 %v1632
      %v1687 = vpop.f32.mrb[0].mxu0
      %v1688 = vadd.f32 0.0, %v1687
      %v1689 = vpop.f32.mrb[0].mxu0
      %v1690 = vpop.f32.mrb[0].mxu0
      %v1691 = vadd.f32 0.0, %v1690
      %v1692 = vpop.f32.mrb[0].mxu0
      %1693 = vdwg.mxu0
      %v1694 = vadd.f32 %v1277, %v1672
      %v1695 = vadd.f32 %v1280, %v1675
      %v1696 = vadd.f32 %v1285, %v1680
      %v1697 = vadd.f32 %v1288, %v1683
      %v1698 = vadd.f32 %v1293, %v1688
      %v1699 = vadd.f32 %v1296, %v1691
      %s1700 = scalar_lea.vmem %s1, 48
      %v1701 = vld [vmem:[%s1700] sm:$0xf]
      %v1702 = vld [vmem:[%s1700 + $0x4] sm:$0xf]
      %v1703 = vld [vmem:[%s1700 + $0x8] sm:$0xf]
      %v1704 = vld [vmem:[%s1700 + $0xc] sm:$0xf]
      %s1705 = scalar_lea.vmem %s2, 3
      %v1706 = vld [vmem:[%s1705] sm:$0x1]
      %v1708 = vlaneseq
      %v1709 = vshrl.u32 %v1708, 7
      %v1710 = vsub.s32 0, %v1709
      %v1711 = vrot.slane %v1706, %v1710
      %v1717 = vunpack.c.l.b16 %v1701
      %v1718 = vunpack.c.l.b16 %v1702
      %v1719 = vunpack.c.l.b16 %v1703
      %v1720 = vunpack.c.l.b16 %v1704
      %v1721 = vpack.c.b16 %v1718, %v1717
      %v1722 = vpack.c.b16 %v1720, %v1719
      %1725 = vmatprep.subr.bf16.mxu0 0
      %1726 = vmatpush1.bf16.msra.mxu0 %v1721
      %1727 = vmatprep.subr.bf16.mxu0 0
      %1728 = vmatpush1.bf16.msra.mxu0 %v1722
      %1729 = vmatprep.subr.bf16.mxu0 0
      %1730 = vmatpush1.bf16.msra.mxu0 0
      %1731 = vmatprep.subr.bf16.mxu0 0
      %1732 = vmatpush1.bf16.msra.mxu0 0
      %1733 = vmatprep.subr.bf16.mxu0 0
      %1734 = vmatpush1.bf16.msra.mxu0 0
      %1735 = vmatprep.subr.bf16.mxu0 0
      %1736 = vmatpush1.bf16.msra.mxu0 0
      %1737 = vmatprep.subr.bf16.mxu0 0
      %1738 = vmatpush1.bf16.msra.mxu0 0
      %1739 = vmatprep.subr.bf16.mxu0 0
      %1740 = vmatpush1.bf16.msra.mxu0 0
      %1741 = vmatprep.subr.bf16.mxu0 0
      %1742 = vmatpush1.bf16.msra.mxu0 0
      %1743 = vmatprep.subr.bf16.mxu0 0
      %1744 = vmatpush1.bf16.msra.mxu0 0
      %1745 = vmatprep.subr.bf16.mxu0 0
      %1746 = vmatpush1.bf16.msra.mxu0 0
      %1747 = vmatprep.subr.bf16.mxu0 0
      %1748 = vmatpush1.bf16.msra.mxu0 0
      %1749 = vmatprep.subr.bf16.mxu0 0
      %1750 = vmatpush1.bf16.msra.mxu0 0
      %1751 = vmatprep.subr.bf16.mxu0 0
      %1752 = vmatpush1.bf16.msra.mxu0 0
      %1753 = vmatprep.subr.bf16.mxu0 0
      %1754 = vmatpush1.bf16.msra.mxu0 0
      %1755 = vmatprep.subr.bf16.mxu0 0
      %1756 = vmatpush1.bf16.msra.mxu0 0
      %1757 = vmatprep.mubr.bf16.mxu0 0
      %1758 = vmatmul.mubr.bf16.gmra.mrb[0].mxu0 %v714
      %v1759 = vpop.f32.mrb[0].mxu0
      %v1760 = vadd.f32 %v1711, %v1759
      %v1761 = vpop.f32.mrb[0].mxu0
      %v1762 = vpop.f32.mrb[0].mxu0
      %v1763 = vadd.f32 %v1711, %v1762
      %v1764 = vpop.f32.mrb[0].mxu0
      %1765 = vmatprep.mubr.bf16.mxu0 0
      %1766 = vmatmul.mubr.bf16.gmra.mrb[0].mxu0 %v717
      %v1767 = vpop.f32.mrb[0].mxu0
      %v1768 = vadd.f32 %v1711, %v1767
      %v1769 = vpop.f32.mrb[0].mxu0
      %v1770 = vpop.f32.mrb[0].mxu0
      %v1771 = vadd.f32 %v1711, %v1770
      %v1772 = vpop.f32.mrb[0].mxu0
      %1773 = vmatprep.mubr.bf16.mxu0 0
      %1774 = vmatmul.mubr.bf16.gmra.mrb[0].mxu0 %v720
      %v1775 = vpop.f32.mrb[0].mxu0
      %v1776 = vadd.f32 %v1711, %v1775
      %v1777 = vpop.f32.mrb[0].mxu0
      %v1778 = vpop.f32.mrb[0].mxu0
      %v1779 = vadd.f32 %v1711, %v1778
      %v1780 = vpop.f32.mrb[0].mxu0
      %1781 = vdwg.mxu0
      %v1782 = vmax.f32 %v1760, 0.0
      %v1783 = vmax.f32 %v1763, 0.0
      %v1784 = vmax.f32 %v1768, 0.0
      %v1785 = vmax.f32 %v1771, 0.0
      %v1786 = vmax.f32 %v1776, 0.0
      %v1787 = vmax.f32 %v1779, 0.0
      %s1788 = scalar_lea.vmem %s3, 3
      %v1789 = vld [vmem:[%s1788] sm:$0x1]
      %v1791 = vlaneseq
      %v1792 = vshrl.u32 %v1791, 7
      %v1793 = vsub.s32 0, %v1792
      %v1794 = vrot.slane %v1789, %v1793
      %v1796 = vmul.f32 %v1782, %v1794
      %v1797 = vmul.f32 %v1783, %v1794
      %v1798 = vmul.f32 %v1784, %v1794
      %v1799 = vmul.f32 %v1785, %v1794
      %v1800 = vmul.f32 %v1786, %v1794
      %v1801 = vmul.f32 %v1787, %v1794
      %s1802 = scalar_lea.vmem %s4, 3
      %v1803 = vld [vmem:[%s1802] sm:$0x1]
      %v1805 = vlaneseq
      %v1806 = vshrl.u32 %v1805, 7
      %v1807 = vsub.s32 0, %v1806
      %v1808 = vrot.slane %v1803, %v1807
      %v1810 = vadd.f32 %v1796, %v1808
      %v1811 = vadd.f32 %v1797, %v1808
      %v1812 = vadd.f32 %v1798, %v1808
      %v1813 = vadd.f32 %v1799, %v1808
      %v1814 = vadd.f32 %v1800, %v1808
      %v1815 = vadd.f32 %v1801, %v1808
      %v1816 = vadd.f32 %v1810, %v1614
      %v1817 = vadd.f32 %v1811, %v1615
      %v1818 = vadd.f32 %v1812, %v1616
      %v1819 = vadd.f32 %v1813, %v1617
      %v1820 = vadd.f32 %v1814, %v1618
      %v1821 = vadd.f32 %v1815, %v1619
      %v1822 = vrot.slane %v1816, 7
      %v1823 = vrot.slane %v1817, 7
      %v1824 = vrot.slane %v1818, 7
      %v1825 = vrot.slane %v1819, 7
      %v1826 = vrot.slane %v1820, 7
      %v1827 = vrot.slane %v1821, 7
      %v1828 = vsel %vm937, %v1826, %v1827
      %v1829 = vsel %vm937, %v1825, %v1826
      %v1830 = vsel %vm937, %v1824, %v1825
      %v1831 = vsel %vm937, %v1823, %v1824
      %v1832 = vsel %vm937, %v1822, %v1823
      %v1833 = vsel %vm937, %v1827, %v1822
      %v1834 = vsel %vm950, %v1833, 0.0
      %v1835 = vsel %vm951, %v1832, 0.0
      %v1836 = vsel %vm952, %v1831, 0.0
      %v1837 = vsel %vm953, %v1830, 0.0
      %v1838 = vsel %vm954, %v1829, 0.0
      %v1839 = vsel %vm955, %v1828, 0.0
      %v1840 = vpack.c.bf16 %v1835, %v1834
      %v1841 = vpack.c.bf16 %v1837, %v1836
      %v1842 = vpack.c.bf16 %v1839, %v1838
      %v1843 = vpack.c.bf16 %v1817, %v1816
      %v1844 = vpack.c.bf16 %v1819, %v1818
      %v1845 = vpack.c.bf16 %v1821, %v1820
      %v1846 = vrot.slane %v1816, 1
      %v1847 = vrot.slane %v1817, 1
      %v1848 = vrot.slane %v1818, 1
      %v1849 = vrot.slane %v1819, 1
      %v1850 = vrot.slane %v1820, 1
      %v1851 = vrot.slane %v1821, 1
      %v1852 = vsel %vm974, %v1850, %v1851
      %v1853 = vsel %vm974, %v1849, %v1850
      %v1854 = vsel %vm974, %v1848, %v1849
      %v1855 = vsel %vm974, %v1847, %v1848
      %v1856 = vsel %vm974, %v1846, %v1847
      %v1857 = vsel %vm974, %v1851, %v1846
      %v1858 = vsel %vm987, %v1856, 0.0
      %v1859 = vsel %vm988, %v1855, 0.0
      %v1860 = vsel %vm989, %v1854, 0.0
      %v1861 = vsel %vm990, %v1853, 0.0
      %v1862 = vsel %vm991, %v1852, 0.0
      %v1863 = vsel %vm992, %v1857, 0.0
      %v1864 = vpack.c.bf16 %v1859, %v1858
      %v1865 = vpack.c.bf16 %v1861, %v1860
      %v1866 = vpack.c.bf16 %v1863, %v1862
      %1870 = vrot.lane.b32.xlu0 %v1843, 8
      %v1871 = vpop.permute.xlu0 %1870
      %1872 = vrot.lane.b32.xlu0 %v1844, 8
      %v1873 = vpop.permute.xlu0 %1872
      %1874 = vrot.lane.b32.xlu0 %v1845, 8
      %v1875 = vpop.permute.xlu0 %1874
      %1879 = vrot.lane.b32.xlu0 %v1864, 16
      %v1880 = vpop.permute.xlu0 %1879
      %1881 = vrot.lane.b32.xlu0 %v1865, 16
      %v1882 = vpop.permute.xlu0 %1881
      %1883 = vrot.lane.b32.xlu0 %v1866, 16
      %v1884 = vpop.permute.xlu0 %1883
      %v1887 = vsel %vm1020, %v1840, %v1871
      %v1890 = vsel %vm1020, %v1841, %v1873
      %v1893 = vsel %vm1020, %v1842, %v1875
      %v1895 = vsel %vm1030, %v1887, %v1880
      %v1897 = vsel %vm1030, %v1890, %v1882
      %v1899 = vsel %vm1030, %v1893, %v1884
      %s1900 = scalar_lea.vmem %s5, 24
      %v1901 = vld [vmem:[%s1900] sm:$0xf]
      %v1902 = vld [vmem:[%s1900 + $0x4] sm:$0xf]
      %v1903 = vld [vmem:[%s1900 + $0x8] sm:$0xf]
      %s1904 = scalar_lea.vmem %s6, 2
      %v1905 = vld [vmem:[%s1904] sm:$0x1]
      %v1907 = vlaneseq
      %v1908 = vshrl.u32 %v1907, 7
      %v1909 = vsub.s32 0, %v1908
      %v1910 = vrot.slane %v1905, %v1909
      %v1915 = vunpack.c.l.b16 %v1901
      %v1916 = vunpack.c.l.b16 %v1902
      %v1917 = vunpack.c.l.b16 %v1903
      %v1918 = vpack.c.b16 %v1916, %v1915
      %v1919 = vpack.c.b16 %v1917, %v1917
      %v1921 = vsel %vm1056, %v1895, 0
      %v1923 = vsel %vm1056, %v1897, 0
      %v1925 = vsel %vm1056, %v1899, 0
      %v1928 = vsel %vm1063, %v1919, 0
      %1930 = vmatprep.subr.bf16.mxu0 0
      %1931 = vmatpush1.bf16.msra.mxu0 %v1918
      %1932 = vmatprep.subr.bf16.mxu0 0
      %1933 = vmatpush1.bf16.msra.mxu0 %v1928
      %1934 = vmatprep.subr.bf16.mxu0 0
      %1935 = vmatpush1.bf16.msra.mxu0 0
      %1936 = vmatprep.subr.bf16.mxu0 0
      %1937 = vmatpush1.bf16.msra.mxu0 0
      %1938 = vmatprep.subr.bf16.mxu0 0
      %1939 = vmatpush1.bf16.msra.mxu0 0
      %1940 = vmatprep.subr.bf16.mxu0 0
      %1941 = vmatpush1.bf16.msra.mxu0 0
      %1942 = vmatprep.subr.bf16.mxu0 0
      %1943 = vmatpush1.bf16.msra.mxu0 0
      %1944 = vmatprep.subr.bf16.mxu0 0
      %1945 = vmatpush1.bf16.msra.mxu0 0
      %1946 = vmatprep.subr.bf16.mxu0 0
      %1947 = vmatpush1.bf16.msra.mxu0 0
      %1948 = vmatprep.subr.bf16.mxu0 0
      %1949 = vmatpush1.bf16.msra.mxu0 0
      %1950 = vmatprep.subr.bf16.mxu0 0
      %1951 = vmatpush1.bf16.msra.mxu0 0
      %1952 = vmatprep.subr.bf16.mxu0 0
      %1953 = vmatpush1.bf16.msra.mxu0 0
      %1954 = vmatprep.subr.bf16.mxu0 0
      %1955 = vmatpush1.bf16.msra.mxu0 0
      %1956 = vmatprep.subr.bf16.mxu0 0
      %1957 = vmatpush1.bf16.msra.mxu0 0
      %1958 = vmatprep.subr.bf16.mxu0 0
      %1959 = vmatpush1.bf16.msra.mxu0 0
      %1960 = vmatprep.subr.bf16.mxu0 0
      %1961 = vmatpush1.bf16.msra.mxu0 0
      %1962 = vmatprep.mubr.bf16.mxu0 0
      %1963 = vmatmul.mubr.bf16.gmra.mrb[0].mxu0 %v1921
      %v1964 = vpop.f32.mrb[0].mxu0
      %v1965 = vadd.f32 %v1910, %v1964
      %v1966 = vpop.f32.mrb[0].mxu0
      %v1967 = vpop.f32.mrb[0].mxu0
      %v1968 = vadd.f32 %v1910, %v1967
      %v1969 = vpop.f32.mrb[0].mxu0
      %1970 = vmatprep.mubr.bf16.mxu0 0
      %1971 = vmatmul.mubr.bf16.gmra.mrb[0].mxu0 %v1923
      %v1972 = vpop.f32.mrb[0].mxu0
      %v1973 = vadd.f32 %v1910, %v1972
      %v1974 = vpop.f32.mrb[0].mxu0
      %v1975 = vpop.f32.mrb[0].mxu0
      %v1976 = vadd.f32 %v1910, %v1975
      %v1977 = vpop.f32.mrb[0].mxu0
      %1978 = vmatprep.mubr.bf16.mxu0 0
      %1979 = vmatmul.mubr.bf16.gmra.mrb[0].mxu0 %v1925
      %v1980 = vpop.f32.mrb[0].mxu0
      %v1981 = vadd.f32 %v1910, %v1980
      %v1982 = vpop.f32.mrb[0].mxu0
      %v1983 = vpop.f32.mrb[0].mxu0
      %v1984 = vadd.f32 %v1910, %v1983
      %v1985 = vpop.f32.mrb[0].mxu0
      %1986 = vdwg.mxu0
      %v1987 = vmax.f32 %v1965, 0.0
      %v1988 = vmax.f32 %v1968, 0.0
      %v1989 = vmax.f32 %v1973, 0.0
      %v1990 = vmax.f32 %v1976, 0.0
      %v1991 = vmax.f32 %v1981, 0.0
      %v1992 = vmax.f32 %v1984, 0.0
      %s1993 = scalar_lea.vmem %s7, 2
      %v1994 = vld [vmem:[%s1993] sm:$0x1]
      %v1996 = vlaneseq
      %v1997 = vshrl.u32 %v1996, 7
      %v1998 = vsub.s32 0, %v1997
      %v1999 = vrot.slane %v1994, %v1998
      %v2001 = vmul.f32 %v1987, %v1999
      %v2002 = vmul.f32 %v1988, %v1999
      %v2003 = vmul.f32 %v1989, %v1999
      %v2004 = vmul.f32 %v1990, %v1999
      %v2005 = vmul.f32 %v1991, %v1999
      %v2006 = vmul.f32 %v1992, %v1999
      %s2007 = scalar_lea.vmem %s8, 2
      %v2008 = vld [vmem:[%s2007] sm:$0x1]
      %v2010 = vlaneseq
      %v2011 = vshrl.u32 %v2010, 7
      %v2012 = vsub.s32 0, %v2011
      %v2013 = vrot.slane %v2008, %v2012
      %v2015 = vadd.f32 %v2001, %v2013
      %v2016 = vadd.f32 %v2002, %v2013
      %v2017 = vadd.f32 %v2003, %v2013
      %v2018 = vadd.f32 %v2004, %v2013
      %v2019 = vadd.f32 %v2005, %v2013
      %v2020 = vadd.f32 %v2006, %v2013
      %v2021 = vpack.c.bf16 %v2016, %v2015
      %v2022 = vpack.c.bf16 %v2018, %v2017
      %v2023 = vpack.c.bf16 %v2020, %v2019
      %s2024 = scalar_lea.vmem %s9, 12
      %v2025 = vld [vmem:[%s2024] sm:$0xf]
      %v2027 = vsel %vm1020, %v2021, 0
      %v2030 = vsel %vm1020, %v2022, 0
      %v2033 = vsel %vm1020, %v2023, 0
      %v2036 = vsel %vm1063, %v2025, 0
      %2038 = vmatprep.subr.bf16.mxu0 0
      %2039 = vmatpush1.bf16.msra.mxu0 %v2036
      %2040 = vmatprep.subr.bf16.mxu0 0
      %2041 = vmatpush1.bf16.msra.mxu0 0
      %2042 = vmatprep.subr.bf16.mxu0 0
      %2043 = vmatpush1.bf16.msra.mxu0 0
      %2044 = vmatprep.subr.bf16.mxu0 0
      %2045 = vmatpush1.bf16.msra.mxu0 0
      %2046 = vmatprep.subr.bf16.mxu0 0
      %2047 = vmatpush1.bf16.msra.mxu0 0
      %2048 = vmatprep.subr.bf16.mxu0 0
      %2049 = vmatpush1.bf16.msra.mxu0 0
      %2050 = vmatprep.subr.bf16.mxu0 0
      %2051 = vmatpush1.bf16.msra.mxu0 0
      %2052 = vmatprep.subr.bf16.mxu0 0
      %2053 = vmatpush1.bf16.msra.mxu0 0
      %2054 = vmatprep.subr.bf16.mxu0 0
      %2055 = vmatpush1.bf16.msra.mxu0 0
      %2056 = vmatprep.subr.bf16.mxu0 0
      %2057 = vmatpush1.bf16.msra.mxu0 0
      %2058 = vmatprep.subr.bf16.mxu0 0
      %2059 = vmatpush1.bf16.msra.mxu0 0
      %2060 = vmatprep.subr.bf16.mxu0 0
      %2061 = vmatpush1.bf16.msra.mxu0 0
      %2062 = vmatprep.subr.bf16.mxu0 0
      %2063 = vmatpush1.bf16.msra.mxu0 0
      %2064 = vmatprep.subr.bf16.mxu0 0
      %2065 = vmatpush1.bf16.msra.mxu0 0
      %2066 = vmatprep.subr.bf16.mxu0 0
      %2067 = vmatpush1.bf16.msra.mxu0 0
      %2068 = vmatprep.subr.bf16.mxu0 0
      %2069 = vmatpush1.bf16.msra.mxu0 0
      %2070 = vmatprep.mubr.bf16.mxu0 0
      %2071 = vmatmul.mubr.bf16.gmra.mrb[0].mxu0 %v2027
      %v2072 = vpop.f32.mrb[0].mxu0
      %v2073 = vadd.f32 0.0, %v2072
      %v2074 = vpop.f32.mrb[0].mxu0
      %v2075 = vpop.f32.mrb[0].mxu0
      %v2076 = vadd.f32 0.0, %v2075
      %v2077 = vpop.f32.mrb[0].mxu0
      %2078 = vmatprep.mubr.bf16.mxu0 0
      %2079 = vmatmul.mubr.bf16.gmra.mrb[0].mxu0 %v2030
      %v2080 = vpop.f32.mrb[0].mxu0
      %v2081 = vadd.f32 0.0, %v2080
      %v2082 = vpop.f32.mrb[0].mxu0
      %v2083 = vpop.f32.mrb[0].mxu0
      %v2084 = vadd.f32 0.0, %v2083
      %v2085 = vpop.f32.mrb[0].mxu0
      %2086 = vmatprep.mubr.bf16.mxu0 0
      %2087 = vmatmul.mubr.bf16.gmra.mrb[0].mxu0 %v2033
      %v2088 = vpop.f32.mrb[0].mxu0
      %v2089 = vadd.f32 0.0, %v2088
      %v2090 = vpop.f32.mrb[0].mxu0
      %v2091 = vpop.f32.mrb[0].mxu0
      %v2092 = vadd.f32 0.0, %v2091
      %v2093 = vpop.f32.mrb[0].mxu0
      %2094 = vdwg.mxu0
      %v2095 = vadd.f32 %v1694, %v2073
      %v2096 = vadd.f32 %v1695, %v2076
      %v2097 = vadd.f32 %v1696, %v2081
      %v2098 = vadd.f32 %v1697, %v2084
      %v2099 = vadd.f32 %v1698, %v2089
      %v2100 = vadd.f32 %v1699, %v2092
      %v2101 = vld [vmem:[%s10] sm:$0x1]
      %v2103 = vlaneseq
      %v2104 = vshrl.u32 %v2103, 7
      %v2105 = vsub.s32 0, %v2104
      %v2106 = vrot.slane %v2101, %v2105
      %v2108 = vadd.f32 %v2095, %v2106
      %v2109 = vadd.f32 %v2096, %v2106
      %v2110 = vadd.f32 %v2097, %v2106
      %v2111 = vadd.f32 %v2098, %v2106
      %v2112 = vadd.f32 %v2099, %v2106
      %v2113 = vadd.f32 %v2100, %v2106
      %v2114 = vmax.f32 %v2108, 0.0
      %v2115 = vmax.f32 %v2109, 0.0
      %v2116 = vmax.f32 %v2110, 0.0
      %v2117 = vmax.f32 %v2111, 0.0
      %v2118 = vmax.f32 %v2112, 0.0
      %v2119 = vmax.f32 %v2113, 0.0
      %v2120 = vld [vmem:[%s11] sm:$0x1]
      %v2122 = vlaneseq
      %v2123 = vshrl.u32 %v2122, 7
      %v2124 = vsub.s32 0, %v2123
      %v2125 = vrot.slane %v2120, %v2124
      %v2127 = vmul.f32 %v2114, %v2125
      %v2128 = vmul.f32 %v2115, %v2125
      %v2129 = vmul.f32 %v2116, %v2125
      %v2130 = vmul.f32 %v2117, %v2125
      %v2131 = vmul.f32 %v2118, %v2125
      %v2132 = vmul.f32 %v2119, %v2125
      %v2133 = vld [vmem:[%s12] sm:$0x1]
      %v2135 = vlaneseq
      %v2136 = vshrl.u32 %v2135, 7
      %v2137 = vsub.s32 0, %v2136
      %v2138 = vrot.slane %v2133, %v2137
      %v2140 = vadd.f32 %v2127, %v2138
      %v2141 = vadd.f32 %v2128, %v2138
      %v2142 = vadd.f32 %v2129, %v2138
      %v2143 = vadd.f32 %v2130, %v2138
      %v2144 = vadd.f32 %v2131, %v2138
      %v2145 = vadd.f32 %v2132, %v2138
      %v2146 = vsel %vm712, %v2140, 0.0
      %v2147 = vsel %vm712, %v2141, 0.0
      %v2148 = vadd.f32 %v2146, %v2147
      %v2149 = vsel %vm712, %v2142, 0.0
      %v2150 = vadd.f32 %v2148, %v2149
      %v2151 = vrot.slane %v2150, 4
      %v2152 = vadd.f32 %v2150, %v2151
      %v2153 = vrot.slane %v2152, 2
      %v2154 = vadd.f32 %v2152, %v2153
      %v2155 = vrot.slane %v2154, 1
      %v2156 = vadd.f32 %v2154, %v2155
      %v2157 = vsel %vm712, %v2143, 0.0
      %v2158 = vsel %vm712, %v2144, 0.0
      %v2159 = vadd.f32 %v2157, %v2158
      %v2160 = vsel %vm712, %v2145, 0.0
      %v2161 = vadd.f32 %v2159, %v2160
      %v2162 = vrot.slane %v2161, 4
      %v2163 = vadd.f32 %v2161, %v2162
      %v2164 = vrot.slane %v2163, 2
      %v2165 = vadd.f32 %v2163, %v2164
      %v2166 = vrot.slane %v2165, 1
      %v2167 = vadd.f32 %v2165, %v2166
      %v2168 = vrcp.pop 24.0
      %v2169 = vmul.f32 %v2156, %v2168
      %v2170 = vmul.f32 %v2167, %v2168
      %v2171 = vpack.c.bf16 %v2169, %v2169
      %v2172 = vpack.c.bf16 %v2170, %v2170
      %v2173 = vld [vmem:[%s13] sm:$0xf]
      %v2174 = vld [vmem:[%s13 + $0x4] sm:$0xf]
      %v2175 = vld [vmem:[%s13 + $0x8] sm:$0xf]
      %v2176 = vld [vmem:[%s13 + $0xc] sm:$0xf]
      %v2177 = vld [vmem:[%s14] sm:$0x1]
      %v2179 = vlaneseq
      %v2180 = vshrl.u32 %v2179, 7
      %v2181 = vsub.s32 0, %v2180
      %v2182 = vrot.slane %v2177, %v2181
      %v2186 = vunpack.c.l.b16 %v2171
      %v2187 = vunpack.c.l.b16 %v2172
      %vm2188 = vcmask 1041409
      %v2189 = vsel %vm2188, %v2187, %v2186
      %v2190 = vpack.c.b16 %v2189, %v2189
      %v2195 = vunpack.c.l.b16 %v2173
      %v2196 = vunpack.c.l.b16 %v2174
      %v2197 = vunpack.c.l.b16 %v2175
      %v2198 = vunpack.c.l.b16 %v2176
      %v2199 = vpack.c.b16 %v2196, %v2195
      %v2200 = vpack.c.b16 %v2198, %v2197
      %v2204 = vsel %vm712, %v2190, 0
      %2206 = vmatprep.subr.bf16.mxu0 0
      %2207 = vmatpush1.bf16.msra.mxu0 %v2199
      %2208 = vmatprep.subr.bf16.mxu0 0
      %2209 = vmatpush1.bf16.msra.mxu0 %v2200
      %2210 = vmatprep.subr.bf16.mxu0 0
      %2211 = vmatpush1.bf16.msra.mxu0 0
      %2212 = vmatprep.subr.bf16.mxu0 0
      %2213 = vmatpush1.bf16.msra.mxu0 0
      %2214 = vmatprep.subr.bf16.mxu0 0
      %2215 = vmatpush1.bf16.msra.mxu0 0
      %2216 = vmatprep.subr.bf16.mxu0 0
      %2217 = vmatpush1.bf16.msra.mxu0 0
      %2218 = vmatprep.subr.bf16.mxu0 0
      %2219 = vmatpush1.bf16.msra.mxu0 0
      %2220 = vmatprep.subr.bf16.mxu0 0
      %2221 = vmatpush1.bf16.msra.mxu0 0
      %2222 = vmatprep.subr.bf16.mxu0 0
      %2223 = vmatpush1.bf16.msra.mxu0 0
      %2224 = vmatprep.subr.bf16.mxu0 0
      %2225 = vmatpush1.bf16.msra.mxu0 0
      %2226 = vmatprep.subr.bf16.mxu0 0
      %2227 = vmatpush1.bf16.msra.mxu0 0
      %2228 = vmatprep.subr.bf16.mxu0 0
      %2229 = vmatpush1.bf16.msra.mxu0 0
      %2230 = vmatprep.subr.bf16.mxu0 0
      %2231 = vmatpush1.bf16.msra.mxu0 0
      %2232 = vmatprep.subr.bf16.mxu0 0
      %2233 = vmatpush1.bf16.msra.mxu0 0
      %2234 = vmatprep.subr.bf16.mxu0 0
      %2235 = vmatpush1.bf16.msra.mxu0 0
      %2236 = vmatprep.subr.bf16.mxu0 0
      %2237 = vmatpush1.bf16.msra.mxu0 0
      %2238 = vmatprep.mubr.bf16.mxu0 0
      %2239 = vmatmul.mubr.bf16.gmra.mrb[0].mxu0 %v2204
      %v2240 = vpop.f32.mrb[0].mxu0
      %v2241 = vadd.f32 %v2182, %v2240
      %v2242 = vpop.f32.mrb[0].mxu0
      %v2243 = vpop.f32.mrb[0].mxu0
      %v2244 = vpop.f32.mrb[0].mxu0
      %2245 = vdwg.mxu0
      %v2246 = vmax.f32 %v2241, 0.0
      %v2247 = vpack.c.bf16 %v2246, %v2246
      %v2248 = vld [vmem:[%s15] sm:$0xf]
      %v2249 = vld [vmem:[%s15 + $0x4] sm:$0xf]
      %v2250 = vld [vmem:[%s16] sm:$0x1]
      %v2252 = vlaneseq
      %v2253 = vshrl.u32 %v2252, 7
      %v2254 = vsub.s32 0, %v2253
      %v2255 = vrot.slane %v2250, %v2254
      %v2259 = vunpack.c.l.b16 %v2248
      %v2260 = vunpack.c.l.b16 %v2249
      %v2261 = vpack.c.b16 %v2260, %v2259
      %v2264 = vsel %vm1030, %v2247, 0
      %2266 = vmatprep.subr.bf16.mxu0 0
      %2267 = vmatpush1.bf16.msra.mxu0 %v2261
      %2268 = vmatprep.subr.bf16.mxu0 0
      %2269 = vmatpush1.bf16.msra.mxu0 0
      %2270 = vmatprep.subr.bf16.mxu0 0
      %2271 = vmatpush1.bf16.msra.mxu0 0
      %2272 = vmatprep.subr.bf16.mxu0 0
      %2273 = vmatpush1.bf16.msra.mxu0 0
      %2274 = vmatprep.subr.bf16.mxu0 0
      %2275 = vmatpush1.bf16.msra.mxu0 0
      %2276 = vmatprep.subr.bf16.mxu0 0
      %2277 = vmatpush1.bf16.msra.mxu0 0
      %2278 = vmatprep.subr.bf16.mxu0 0
      %2279 = vmatpush1.bf16.msra.mxu0 0
      %2280 = vmatprep.subr.bf16.mxu0 0
      %2281 = vmatpush1.bf16.msra.mxu0 0
      %2282 = vmatprep.subr.bf16.mxu0 0
      %2283 = vmatpush1.bf16.msra.mxu0 0
      %2284 = vmatprep.subr.bf16.mxu0 0
      %2285 = vmatpush1.bf16.msra.mxu0 0
      %2286 = vmatprep.subr.bf16.mxu0 0
      %2287 = vmatpush1.bf16.msra.mxu0 0
      %2288 = vmatprep.subr.bf16.mxu0 0
      %2289 = vmatpush1.bf16.msra.mxu0 0
      %2290 = vmatprep.subr.bf16.mxu0 0
      %2291 = vmatpush1.bf16.msra.mxu0 0
      %2292 = vmatprep.subr.bf16.mxu0 0
      %2293 = vmatpush1.bf16.msra.mxu0 0
      %2294 = vmatprep.subr.bf16.mxu0 0
      %2295 = vmatpush1.bf16.msra.mxu0 0
      %2296 = vmatprep.subr.bf16.mxu0 0
      %2297 = vmatpush1.bf16.msra.mxu0 0
      %2298 = vmatprep.mubr.bf16.mxu0 0
      %2299 = vmatmul.mubr.bf16.gmra.mrb[0].mxu0 %v2264
      %v2300 = vpop.f32.mrb[0].mxu0
      %v2301 = vadd.f32 %v2255, %v2300
      %v2302 = vpop.f32.mrb[0].mxu0
      %v2303 = vpop.f32.mrb[0].mxu0
      %v2304 = vpop.f32.mrb[0].mxu0
      %2305 = vdwg.mxu0
      %v2306 = vxor.u32 %v2301, 2147483648
      %v2307 = vmul.f32 %v2306, 1.442695
      %v2308 = vpow.pop %v2307
      %v2309 = vadd.f32 %v2308, 1.0
      %v2310 = vrcp.pop %v2309
      %v2311 = vmul.f32 1.0, %v2310
      %v2314 = vunpack.c.l.s4 1966171168
      %v2315 = vunpack.c.0.s8 %v2314
      %v2316 = vlaneseq
      %v2317 = vshrl.u32 %v2316, 7
      %v2318 = vsub.s32 %v2315, %v2317
      %v2319 = vrot.slane %v2311, %v2318
      %v2320 = vcombine.high %v2319, %v2319
      %v2322 = vunpack.c.l.s4 1966171168
      %v2323 = vunpack.c.0.s8 %v2322
      %v2324 = vlaneseq
      %v2325 = vshrl.u32 %v2324, 7
      %v2326 = vsub.s32 %v2323, %v2325
      %v2327 = vrot.slane %v2319, %v2326
      %v2329 = vunpack.c.l.s4 1966171168
      %v2330 = vunpack.c.0.s8 %v2329
      %v2331 = vlaneseq
      %v2332 = vshrl.u32 %v2331, 7
      %v2333 = vsub.s32 %v2330, %v2332
      %v2334 = vrot.slane %v2320, %v2333
      %v2335 = vlaneseq
      %v2336 = vshrl.u32 %v2335, 7
      %v2337 = vsub.s32 0, %v2336
      %v2338 = vrot.slane %v2327, %v2337
      %v2339 = vlaneseq
      %v2340 = vshrl.u32 %v2339, 7
      %v2341 = vsub.s32 0, %v2340
      %v2342 = vrot.slane %v2334, %v2341
      %v2345 = vmul.f32 %v2140, %v2338
      %v2346 = vmul.f32 %v2141, %v2338
      %v2347 = vmul.f32 %v2142, %v2338
      %v2348 = vmul.f32 %v2143, %v2342
      %v2349 = vmul.f32 %v2144, %v2342
      %v2350 = vmul.f32 %v2145, %v2342
      %v2351 = vunpack.c.l.bf16 %v553
      %v2352 = vunpack.c.l.bf16 %v554
      %v2353 = vunpack.c.l.bf16 %v555
      %v2354 = vunpack.c.l.bf16 %v556
      %v2355 = vunpack.c.l.bf16 %v557
      %v2356 = vunpack.c.l.bf16 %v558
      %v2357 = vadd.f32 %v2345, %v2351
      %v2358 = vadd.f32 %v2346, %v2352
      %v2359 = vadd.f32 %v2347, %v2353
      %v2360 = vadd.f32 %v2348, %v2354
      %v2361 = vadd.f32 %v2349, %v2355
      %v2362 = vadd.f32 %v2350, %v2356
      %v2363 = vpack.c.bf16 %v2358, %v2357
      %v2364 = vpack.c.bf16 %v2360, %v2359
      %v2365 = vpack.c.bf16 %v2362, %v2361
      %v2369 = vunpack.c.l.b16 %v2363
      %v2370 = vunpack.c.h.b16 %v2363
      %v2371 = vunpack.c.l.b16 %v2364
      %v2372 = vunpack.c.h.b16 %v2364
      %v2373 = vunpack.c.l.b16 %v2365
      %v2374 = vunpack.c.h.b16 %v2365
      %v2375 = vpack.c.b16 %v2369, %v2369
      %v2376 = vpack.c.b16 %v2370, %v2370
      %v2377 = vpack.c.b16 %v2371, %v2371
      %v2378 = vpack.c.b16 %v2372, %v2372
      %v2379 = vpack.c.b16 %v2373, %v2373
      %v2380 = vpack.c.b16 %v2374, %v2374
      %vm2387 = vcmask 257024
      %2388 = vst.msk [vmem:[%s550] sm:$0xf] %vm2387, %v2375
      %2389 = vst.msk [vmem:[%s550 + $0x4] sm:$0xf] %vm2387, %v2376
      %2390 = vst.msk [vmem:[%s550 + $0x8] sm:$0xf] %vm2387, %v2377
      %2391 = vst.msk [vmem:[%s550 + $0xc] sm:$0xf] %vm2387, %v2378
      %2392 = vst.msk [vmem:[%s550 + $0x10] sm:$0xf] %vm2387, %v2379
      %2393 = vst.msk [vmem:[%s550 + $0x14] sm:$0xf] %vm2387, %v2380
      %s2394 = smul.u32 6, %s28
      %p2395 = scmp.lt.s32.totalorder %s2394, 11
      %s2396 = scalar_select %p2395, %s2394, 11
      %s2397 = smul.addr %s2396, 4
      %s2398 = scalar_lea.vmem %s17, %s2397
      // Predicated region
      $region89: #{tpu_custom_call.1} parent=87 // pred_check
        %p2399 = pneg %p408
      $region90: #{tpu_custom_call.1} parent=87 // pred_check_branch
        %2401 = sbr.rel (%p2399) target = $region92
      $region91: #{tpu_custom_call.1} parent=87 // pred_region
        %s2402 = smul.u32 6, %s28
      $region92: #{tpu_custom_call.1} parent=87 // pred_fallthru
        _
    $region88: #{tpu_custom_call.1} parent=5 // pred_fallthru
      _
    %p2403 = scmp.le.s32.totalorder 2, %s23
    // Predicated region
    $region93: #{tpu_custom_call.1} parent=5 // pred_check
      %p2404 = pneg %p2403
    $region94: #{tpu_custom_call.1} parent=5 // pred_check_branch
      %2406 = sbr.rel (%p2404) target = $region96
    $region95: #{tpu_custom_call.1} parent=5 // pred_region
      %s2407 = ssub.s32 %s23, 2
      // Predicated region
      $region97: #{tpu_custom_call.1} parent=95 // pred_check
        %p2408 = pneg %p414
      $region98: #{tpu_custom_call.1} parent=95 // pred_check_branch
        %2410 = sbr.rel (%p2408) target = $region100
      $region99: #{tpu_custom_call.1} parent=95 // pred_region
        %s2411 = smul.u32 6, %s29
        %p2412 = scmp.lt.s32.totalorder %s2411, 11
        %s2413 = scalar_select %p2412, %s2411, 11
        %s2414 = smul.addr %s2413, 4
        %s2415 = scalar_lea.vmem %s17, %s2414
      $region100: #{tpu_custom_call.1} parent=95 // pred_fallthru
        _
    $region96: #{tpu_custom_call.1} parent=5 // pred_fallthru
      _
  $region6: #{tpu_custom_call.1} parent=0 // loop_footer
    %s27 = sadd.s32 1, %s23
  $region7: #{tpu_custom_call.1} parent=0 // loop_footer_branch
    %22 = sbr.rel target = $region3
  $region8: #{tpu_custom_call.1} parent=0 // loop_exit
    _

</llo_original>
